<compile_context>
chip_gen: v7x
topology: tpu7x:2x2x1
jax: 0.10.0
libtpu: 0.0.40
codegen_flags: <defaults>
</compile_context>

<pallas_src>
import functools
import math

import jax
import jax.numpy as jnp
from jax import lax
from jax.experimental import pallas as pl
from jax.experimental.pallas import tpu as pltpu

CFG = dict(
    vocab_size=100,
    hidden=64,
    num_layers=2,
    num_heads=4,
    head_dim=16,
    intermediate=128,
    max_pos=40,
    type_vocab=1,
    pad_token_id=1,          # RoBERTa pad token / padding_idx
    layer_norm_eps=1e-5,
    num_classes=3,
)


# ----------------------------------------------------------------------------
# In-kernel helpers (pure value -> value, traced inside the Pallas body)
# ----------------------------------------------------------------------------
def _erf(x):
    # Abramowitz & Stegun 7.1.26 rational approximation (~1.5e-7 abs err),
    # built only from ops guaranteed to lower on Mosaic.
    sign = jnp.where(x >= 0.0, 1.0, -1.0)
    a = jnp.abs(x)
    t = 1.0 / (1.0 + 0.3275911 * a)
    poly = t * (0.254829592 + t * (-0.284496736 + t * (1.421413741
                + t * (-1.453152027 + t * 1.061405429))))
    return sign * (1.0 - poly * jnp.exp(-a * a))


def _gelu_exact(x):
    # HF RoBERTa uses exact (erf-based) GELU.
    return 0.5 * x * (1.0 + _erf(x * 0.7071067811865476))


def _layer_norm(x, gamma, beta, eps):
    mean = jnp.mean(x, axis=-1, keepdims=True)
    var = jnp.mean(jnp.square(x - mean), axis=-1, keepdims=True)
    return (x - mean) * lax.rsqrt(var + eps) * gamma + beta


# ----------------------------------------------------------------------------
# Fully fused forward kernel: embeddings-LN -> encoder layers -> pooler -> head
# ----------------------------------------------------------------------------
def _roberta_kernel(
    # inputs
    emb_ref, mask_ref, eg_ref, eb_ref,
    wqkv_ref, bqkv_ref, wo_ref, bo_ref, ln1g_ref, ln1b_ref,
    wi_ref, bi_ref, wf_ref, bf_ref, ln2g_ref, ln2b_ref,
    poolw_ref, poolb_ref, clsw_ref, clsb_ref,
    # output
    out_ref,
    # scratch
    ctx_ref,
    *, num_layers, batch, seq, num_heads, head_dim, hidden, eps,
):
    scale = 1.0 / math.sqrt(head_dim)

    # Embedding LayerNorm (no residual).
    x = _layer_norm(emb_ref[...], eg_ref[...], eb_ref[...], eps)   # (B*S, H)
    # Block-diagonal additive mask: masks both padded keys and cross-batch keys,
    # so the batch dim can be folded into the sequence axis for attention.
    add_mask = mask_ref[...]                                       # (B*S, B*S)

    for l in range(num_layers):
        # ---- fused Q|K|V projection: one MXU pass, output last dim 3H ----
        qkv = jnp.dot(x, wqkv_ref[l],
                      preferred_element_type=jnp.float32) + bqkv_ref[l]  # (B*S, 3H)

        # ---- attention, per head, batch folded into rows ----
        for h in range(num_heads):
            c0 = h * head_dim
            q = qkv[:, c0:c0 + head_dim]                               # (B*S, D)
            k = qkv[:, hidden + c0:hidden + c0 + head_dim]             # (B*S, D)
            v = qkv[:, 2 * hidden + c0:2 * hidden + c0 + head_dim]     # (B*S, D)
            # QK^T via dot_general contracting on last dims (no k.T copy).
            s = lax.dot_general(q, k, (((1,), (1,)), ((), ())),
                                preferred_element_type=jnp.float32) * scale
            s = s + add_mask                                           # (B*S, B*S)
            s = s - jnp.max(s, axis=-1, keepdims=True)
            p = jnp.exp(s)
            p = p * pl.reciprocal(jnp.sum(p, axis=-1, keepdims=True), approx=True)
            ctx_ref[:, c0:c0 + head_dim] = jnp.dot(
                p, v, preferred_element_type=jnp.float32)
        ctx = ctx_ref[...]                                             # (B*S, H)

        # ---- attention output projection + residual + LayerNorm ----
        attn = jnp.dot(ctx, wo_ref[l],
                       preferred_element_type=jnp.float32) + bo_ref[l]
        x = _layer_norm(attn + x, ln1g_ref[l], ln1b_ref[l], eps)

        # ---- FFN (GELU) + residual + LayerNorm ----
        inter = _gelu_exact(
            jnp.dot(x, wi_ref[l], preferred_element_type=jnp.float32) + bi_ref[l])
        ffn = jnp.dot(inter, wf_ref[l],
                      preferred_element_type=jnp.float32) + bf_ref[l]
        x = _layer_norm(ffn + x, ln2g_ref[l], ln2b_ref[l], eps)

    # ---- pooler (tanh dense on token 0 of each sequence) + classifier ----
    cls_rows = jnp.concatenate(
        [x[b * seq:b * seq + 1, :] for b in range(batch)], axis=0)     # (B, H)
    pooled = jnp.tanh(
        jnp.dot(cls_rows, poolw_ref[...],
                preferred_element_type=jnp.float32) + poolb_ref[...])
    out_ref[...] = jnp.dot(pooled, clsw_ref[...],
                           preferred_element_type=jnp.float32) + clsb_ref[...]


def _full_spec(shape):
    nd = len(shape)
    return pl.BlockSpec(tuple(shape), lambda i, _nd=nd: (0,) * _nd)


# ----------------------------------------------------------------------------
# Forward wrapper (embedding gathers + mask build + one pallas_call)
# ----------------------------------------------------------------------------
def roberta_forward(params, input_ids, attention_mask, cfg):
    B, S = input_ids.shape
    H, nh, dh = cfg["hidden"], cfg["num_heads"], cfg["head_dim"]
    I, L, C = cfg["intermediate"], cfg["num_layers"], cfg["num_classes"]
    pad = cfg["pad_token_id"]
    eps = cfg["layer_norm_eps"]
    BS = B * S

    # ---- embeddings ---------------------------------------------------------
    # RoBERTa position ids: cumsum over non-pad tokens, offset by padding_idx.
    mask_tok = (input_ids != pad).astype(jnp.int32)
    position_ids = jnp.cumsum(mask_tok, axis=1) * mask_tok + pad
    # TODO(synk): embedding row gathers are data-dependent lookups; kept in JAX glue.
    word = jnp.take(params["word_emb"], input_ids, axis=0)
    pos = jnp.take(params["pos_emb"], position_ids, axis=0)
    tok = jnp.take(params["type_emb"], jnp.zeros_like(input_ids), axis=0)
    emb = (word + pos + tok).astype(jnp.float32).reshape(BS, H)

    # Block-diagonal extended attention mask over (query_row, key_row):
    # 0 where key is in the same sequence and not padded, finfo(float32).min otherwise.
    neg = jnp.finfo(jnp.float32).min
    batch_id = jnp.arange(BS, dtype=jnp.int32) // S
    same_batch = batch_id[:, None] == batch_id[None, :]
    key_valid = (attention_mask.reshape(BS) > 0)[None, :]
    add_mask = jnp.where(jnp.logical_and(same_batch, key_valid),
                         0.0, neg).astype(jnp.float32)               # (B*S, B*S)

    args = (
        emb, add_mask,
        params["emb_ln_g"].reshape(1, H), params["emb_ln_b"].reshape(1, H),
        params["wqkv"], params["bqkv"].reshape(L, 1, 3 * H),
        params["wo"], params["bo"].reshape(L, 1, H),
        params["ln1_g"].reshape(L, 1, H), params["ln1_b"].reshape(L, 1, H),
        params["wi"], params["bi"].reshape(L, 1, I),
        params["wf"], params["bf"].reshape(L, 1, H),
        params["ln2_g"].reshape(L, 1, H), params["ln2_b"].reshape(L, 1, H),
        params["pool_w"], params["pool_b"].reshape(1, H),
        params["cls_w"], params["cls_b"].reshape(1, C),
    )

    kernel = functools.partial(
        _roberta_kernel,
        num_layers=L, batch=B, seq=S,
        num_heads=nh, head_dim=dh, hidden=H, eps=eps)

    return pl.pallas_call(
        kernel,
        out_shape=jax.ShapeDtypeStruct((B, C), jnp.float32),
        grid=(1,),
        in_specs=[_full_spec(a.shape) for a in args],
        out_specs=_full_spec((B, C)),
        scratch_shapes=[pltpu.VMEM((BS, H), jnp.float32)],
        compiler_params=pltpu.CompilerParams(
            dimension_semantics=("arbitrary",)),
    )(*args)


# ----------------------------------------------------------------------------
# Deterministic parameter init (weights stacked over layers, QKV pre-fused)
# ----------------------------------------------------------------------------
def init_params(key, cfg):
    H, I, L = cfg["hidden"], cfg["intermediate"], cfg["num_layers"]
    keys = iter(jax.random.split(key, 64))

    def dense(*shape):
        return jax.random.normal(next(keys), shape, jnp.float32) * 0.02

    return dict(
        word_emb=dense(cfg["vocab_size"], H),
        pos_emb=dense(cfg["max_pos"], H),
        type_emb=dense(cfg["type_vocab"], H),
        emb_ln_g=jnp.ones((H,), jnp.float32),
        emb_ln_b=jnp.zeros((H,), jnp.float32),
        # fused Q|K|V projection, stacked over layers
        wqkv=dense(L, H, 3 * H), bqkv=jnp.zeros((L, 3 * H), jnp.float32),
        wo=dense(L, H, H), bo=jnp.zeros((L, H), jnp.float32),
        ln1_g=jnp.ones((L, H), jnp.float32), ln1_b=jnp.zeros((L, H), jnp.float32),
        wi=dense(L, H, I), bi=jnp.zeros((L, I), jnp.float32),
        wf=dense(L, I, H), bf=jnp.zeros((L, H), jnp.float32),
        ln2_g=jnp.ones((L, H), jnp.float32), ln2_b=jnp.zeros((L, H), jnp.float32),
        pool_w=dense(H, H), pool_b=jnp.zeros((H,), jnp.float32),
        cls_w=dense(H, cfg["num_classes"]),
        cls_b=jnp.zeros((cfg["num_classes"],), jnp.float32),
    )


if __name__ == "__main__":
    key = jax.random.PRNGKey(0)
    pkey, ikey = jax.random.split(key)
    params = init_params(pkey, CFG)

    B, S = 2, 8
    input_ids = jax.random.randint(ikey, (B, S), 2, CFG["vocab_size"], dtype=jnp.int32)
    input_ids = input_ids.at[:, 0].set(0)                         # <s> token
    input_ids = input_ids.at[1, -2:].set(CFG["pad_token_id"])     # pad tail of sample 1
    attention_mask = (input_ids != CFG["pad_token_id"]).astype(jnp.float32)

    fwd = jax.jit(lambda p, ids, m: roberta_forward(p, ids, m, CFG))
    logits = fwd(params, input_ids, attention_mask)
    logits = jax.block_until_ready(logits)

    assert logits.shape == (B, CFG["num_classes"])
    assert bool(jnp.all(jnp.isfinite(logits)))
    print("KERNEL_OK")
</pallas_src>

<mosaic_0001>
module attributes {stable_mosaic.version = 11 : i64} {
  func.func @_roberta_kernel(%arg0: i32, %arg1: memref<16x64xf32, #tpu.memory_space<vmem>>, %arg2: memref<16x16xf32, #tpu.memory_space<vmem>>, %arg3: memref<1x64xf32, #tpu.memory_space<vmem>>, %arg4: memref<1x64xf32, #tpu.memory_space<vmem>>, %arg5: memref<2x64x192xf32, #tpu.memory_space<vmem>>, %arg6: memref<2x1x192xf32, #tpu.memory_space<vmem>>, %arg7: memref<2x64x64xf32, #tpu.memory_space<vmem>>, %arg8: memref<2x1x64xf32, #tpu.memory_space<vmem>>, %arg9: memref<2x1x64xf32, #tpu.memory_space<vmem>>, %arg10: memref<2x1x64xf32, #tpu.memory_space<vmem>>, %arg11: memref<2x64x128xf32, #tpu.memory_space<vmem>>, %arg12: memref<2x1x128xf32, #tpu.memory_space<vmem>>, %arg13: memref<2x128x64xf32, #tpu.memory_space<vmem>>, %arg14: memref<2x1x64xf32, #tpu.memory_space<vmem>>, %arg15: memref<2x1x64xf32, #tpu.memory_space<vmem>>, %arg16: memref<2x1x64xf32, #tpu.memory_space<vmem>>, %arg17: memref<64x64xf32, #tpu.memory_space<vmem>>, %arg18: memref<1x64xf32, #tpu.memory_space<vmem>>, %arg19: memref<64x3xf32, #tpu.memory_space<vmem>>, %arg20: memref<1x3xf32, #tpu.memory_space<vmem>>, %arg21: memref<2x3xf32, #tpu.memory_space<vmem>>, %arg22: memref<16x64xf32, #tpu.memory_space<vmem>>) attributes {dimension_semantics = [#tpu.dimension_semantics<arbitrary>], iteration_bounds = array<i64: 1>, scalar_prefetch = 0 : i64, scratch_operands = 1 : i64, tpu.core_type = #tpu.core_type<tc>, window_params = [{pipeline_mode = #tpu.pipeline_mode<synchronous>, transform_indices = @transform_0, window_bounds = array<i64: 16, 64>}, {pipeline_mode = #tpu.pipeline_mode<synchronous>, transform_indices = @transform_1, window_bounds = array<i64: 16, 16>}, {pipeline_mode = #tpu.pipeline_mode<synchronous>, transform_indices = @transform_2, window_bounds = array<i64: 1, 64>}, {pipeline_mode = #tpu.pipeline_mode<synchronous>, transform_indices = @transform_3, window_bounds = array<i64: 1, 64>}, {pipeline_mode = #tpu.pipeline_mode<synchronous>, transform_indices = @transform_4, window_bounds = array<i64: 2, 64, 192>}, {pipeline_mode = #tpu.pipeline_mode<synchronous>, transform_indices = @transform_5, window_bounds = array<i64: 2, 1, 192>}, {pipeline_mode = #tpu.pipeline_mode<synchronous>, transform_indices = @transform_6, window_bounds = array<i64: 2, 64, 64>}, {pipeline_mode = #tpu.pipeline_mode<synchronous>, transform_indices = @transform_7, window_bounds = array<i64: 2, 1, 64>}, {pipeline_mode = #tpu.pipeline_mode<synchronous>, transform_indices = @transform_8, window_bounds = array<i64: 2, 1, 64>}, {pipeline_mode = #tpu.pipeline_mode<synchronous>, transform_indices = @transform_9, window_bounds = array<i64: 2, 1, 64>}, {pipeline_mode = #tpu.pipeline_mode<synchronous>, transform_indices = @transform_10, window_bounds = array<i64: 2, 64, 128>}, {pipeline_mode = #tpu.pipeline_mode<synchronous>, transform_indices = @transform_11, window_bounds = array<i64: 2, 1, 128>}, {pipeline_mode = #tpu.pipeline_mode<synchronous>, transform_indices = @transform_12, window_bounds = array<i64: 2, 128, 64>}, {pipeline_mode = #tpu.pipeline_mode<synchronous>, transform_indices = @transform_13, window_bounds = array<i64: 2, 1, 64>}, {pipeline_mode = #tpu.pipeline_mode<synchronous>, transform_indices = @transform_14, window_bounds = array<i64: 2, 1, 64>}, {pipeline_mode = #tpu.pipeline_mode<synchronous>, transform_indices = @transform_15, window_bounds = array<i64: 2, 1, 64>}, {pipeline_mode = #tpu.pipeline_mode<synchronous>, transform_indices = @transform_16, window_bounds = array<i64: 64, 64>}, {pipeline_mode = #tpu.pipeline_mode<synchronous>, transform_indices = @transform_17, window_bounds = array<i64: 1, 64>}, {pipeline_mode = #tpu.pipeline_mode<synchronous>, transform_indices = @transform_18, window_bounds = array<i64: 64, 3>}, {pipeline_mode = #tpu.pipeline_mode<synchronous>, transform_indices = @transform_19, window_bounds = array<i64: 1, 3>}, {pipeline_mode = #tpu.pipeline_mode<synchronous>, transform_indices = @transform_20, window_bounds = array<i64: 2, 3>}]} {
    %c0 = arith.constant 0 : index
    %c0_0 = arith.constant 0 : index
    %0 = vector.load %arg1[%c0, %c0_0] : memref<16x64xf32, #tpu.memory_space<vmem>>, vector<16x64xf32>
    %c0_1 = arith.constant 0 : index
    %c0_2 = arith.constant 0 : index
    %1 = vector.load %arg3[%c0_1, %c0_2] : memref<1x64xf32, #tpu.memory_space<vmem>>, vector<1x64xf32>
    %c0_3 = arith.constant 0 : index
    %c0_4 = arith.constant 0 : index
    %2 = vector.load %arg4[%c0_3, %c0_4] : memref<1x64xf32, #tpu.memory_space<vmem>>, vector<1x64xf32>
    %cst = arith.constant dense<0.000000e+00> : vector<16xf32>
    %3 = vector.multi_reduction <add>, %0, %cst [1] : vector<16x64xf32> to vector<16xf32>
    %4 = vector.shape_cast %3 : vector<16xf32> to vector<16x1xf32>
    %cst_5 = arith.constant 6.400000e+01 : f32
    %5 = vector.broadcast %cst_5 : f32 to vector<16x1xf32>
    %6 = arith.divf %4, %5 : vector<16x1xf32>
    %7 = vector.broadcast %6 : vector<16x1xf32> to vector<16x64xf32>
    %8 = arith.subf %0, %7 : vector<16x64xf32>
    %9 = arith.mulf %8, %8 : vector<16x64xf32>
    %cst_6 = arith.constant dense<0.000000e+00> : vector<16xf32>
    %10 = vector.multi_reduction <add>, %9, %cst_6 [1] : vector<16x64xf32> to vector<16xf32>
    %11 = vector.shape_cast %10 : vector<16xf32> to vector<16x1xf32>
    %cst_7 = arith.constant 6.400000e+01 : f32
    %12 = vector.broadcast %cst_7 : f32 to vector<16x1xf32>
    %13 = arith.divf %11, %12 : vector<16x1xf32>
    %14 = vector.broadcast %6 : vector<16x1xf32> to vector<16x64xf32>
    %15 = arith.subf %0, %14 : vector<16x64xf32>
    %cst_8 = arith.constant 9.99999974E-6 : f32
    %16 = vector.broadcast %cst_8 : f32 to vector<16x1xf32>
    %17 = arith.addf %13, %16 : vector<16x1xf32>
    %18 = math.rsqrt %17 : vector<16x1xf32>
    %19 = vector.broadcast %18 : vector<16x1xf32> to vector<16x64xf32>
    %20 = arith.mulf %15, %19 : vector<16x64xf32>
    %21 = vector.broadcast %1 : vector<1x64xf32> to vector<16x64xf32>
    %22 = arith.mulf %20, %21 : vector<16x64xf32>
    %23 = vector.broadcast %2 : vector<1x64xf32> to vector<16x64xf32>
    %24 = arith.addf %22, %23 : vector<16x64xf32>
    %c0_9 = arith.constant 0 : index
    %c0_10 = arith.constant 0 : index
    %25 = vector.load %arg2[%c0_9, %c0_10] : memref<16x16xf32, #tpu.memory_space<vmem>>, vector<16x16xf32>
    %c0_11 = arith.constant 0 : index
    %c0_12 = arith.constant 0 : index
    %c0_13 = arith.constant 0 : index
    %26 = vector.load %arg5[%c0_11, %c0_12, %c0_13] : memref<2x64x192xf32, #tpu.memory_space<vmem>>, vector<1x64x192xf32>
    %27 = vector.shape_cast %26 : vector<1x64x192xf32> to vector<64x192xf32>
    %cst_14 = arith.constant dense<0.000000e+00> : vector<16x192xf32>
    %28 = tpu.matmul %24, %27, %cst_14 {dimension_numbers = #tpu.dot_dimension_numbers<[1], [0], [0], [1], [0, 0, 1, 1], [], []>} : vector<16x64xf32>, vector<64x192xf32>, vector<16x192xf32> -> vector<16x192xf32>
    %c0_15 = arith.constant 0 : index
    %c0_16 = arith.constant 0 : index
    %c0_17 = arith.constant 0 : index
    %29 = vector.load %arg6[%c0_15, %c0_16, %c0_17] : memref<2x1x192xf32, #tpu.memory_space<vmem>>, vector<1x1x192xf32>
    %30 = vector.shape_cast %29 : vector<1x1x192xf32> to vector<1x192xf32>
    %31 = vector.broadcast %30 : vector<1x192xf32> to vector<16x192xf32>
    %32 = arith.addf %28, %31 : vector<16x192xf32>
    %33 = vector.extract_strided_slice %32 {offsets = [0, 0], sizes = [16, 16], strides = [1, 1]} : vector<16x192xf32> to vector<16x16xf32>
    %34 = vector.extract_strided_slice %32 {offsets = [0, 64], sizes = [16, 16], strides = [1, 1]} : vector<16x192xf32> to vector<16x16xf32>
    %35 = vector.extract_strided_slice %32 {offsets = [0, 128], sizes = [16, 16], strides = [1, 1]} : vector<16x192xf32> to vector<16x16xf32>
    %cst_18 = arith.constant dense<0.000000e+00> : vector<16x16xf32>
    %36 = tpu.matmul %33, %34, %cst_18 {dimension_numbers = #tpu.dot_dimension_numbers<[1], [1], [0], [0], [0, 0, 1, 0], [], []>} : vector<16x16xf32>, vector<16x16xf32>, vector<16x16xf32> -> vector<16x16xf32>
    %cst_19 = arith.constant 2.500000e-01 : f32
    %37 = vector.broadcast %cst_19 : f32 to vector<16x16xf32>
    %38 = arith.mulf %36, %37 : vector<16x16xf32>
    %39 = arith.addf %38, %25 : vector<16x16xf32>
    %cst_20 = arith.constant dense<0xFF800000> : vector<16xf32>
    %40 = vector.multi_reduction <maximumf>, %39, %cst_20 [1] : vector<16x16xf32> to vector<16xf32>
    %41 = vector.shape_cast %40 : vector<16xf32> to vector<16x1xf32>
    %42 = vector.broadcast %41 : vector<16x1xf32> to vector<16x16xf32>
    %43 = arith.subf %39, %42 : vector<16x16xf32>
    %44 = math.exp %43 : vector<16x16xf32>
    %cst_21 = arith.constant dense<0.000000e+00> : vector<16xf32>
    %45 = vector.multi_reduction <add>, %44, %cst_21 [1] : vector<16x16xf32> to vector<16xf32>
    %46 = vector.shape_cast %45 : vector<16xf32> to vector<16x1xf32>
    %47 = tpu.reciprocal %46 {approx = true} : vector<16x1xf32> -> vector<16x1xf32>
    %48 = vector.broadcast %47 : vector<16x1xf32> to vector<16x16xf32>
    %49 = arith.mulf %44, %48 : vector<16x16xf32>
    %cst_22 = arith.constant dense<0.000000e+00> : vector<16x16xf32>
    %50 = tpu.matmul %49, %35, %cst_22 {dimension_numbers = #tpu.dot_dimension_numbers<[1], [0], [0], [1], [0, 0, 1, 1], [], []>} : vector<16x16xf32>, vector<16x16xf32>, vector<16x16xf32> -> vector<16x16xf32>
    %c0_23 = arith.constant 0 : index
    %c0_24 = arith.constant 0 : index
    %51 = vector.load %arg22[%c0_23, %c0_24] : memref<16x64xf32, #tpu.memory_space<vmem>>, vector<16x16xf32>
    tpu.vector_store %arg22[%c0_23, %c0_24], %50 {strides = array<i32>} : memref<16x64xf32, #tpu.memory_space<vmem>>, vector<16x16xf32>,
    %52 = vector.extract_strided_slice %32 {offsets = [0, 16], sizes = [16, 16], strides = [1, 1]} : vector<16x192xf32> to vector<16x16xf32>
    %53 = vector.extract_strided_slice %32 {offsets = [0, 80], sizes = [16, 16], strides = [1, 1]} : vector<16x192xf32> to vector<16x16xf32>
    %54 = vector.extract_strided_slice %32 {offsets = [0, 144], sizes = [16, 16], strides = [1, 1]} : vector<16x192xf32> to vector<16x16xf32>
    %cst_25 = arith.constant dense<0.000000e+00> : vector<16x16xf32>
    %55 = tpu.matmul %52, %53, %cst_25 {dimension_numbers = #tpu.dot_dimension_numbers<[1], [1], [0], [0], [0, 0, 1, 0], [], []>} : vector<16x16xf32>, vector<16x16xf32>, vector<16x16xf32> -> vector<16x16xf32>
    %cst_26 = arith.constant 2.500000e-01 : f32
    %56 = vector.broadcast %cst_26 : f32 to vector<16x16xf32>
    %57 = arith.mulf %55, %56 : vector<16x16xf32>
    %58 = arith.addf %57, %25 : vector<16x16xf32>
    %cst_27 = arith.constant dense<0xFF800000> : vector<16xf32>
    %59 = vector.multi_reduction <maximumf>, %58, %cst_27 [1] : vector<16x16xf32> to vector<16xf32>
    %60 = vector.shape_cast %59 : vector<16xf32> to vector<16x1xf32>
    %61 = vector.broadcast %60 : vector<16x1xf32> to vector<16x16xf32>
    %62 = arith.subf %58, %61 : vector<16x16xf32>
    %63 = math.exp %62 : vector<16x16xf32>
    %cst_28 = arith.constant dense<0.000000e+00> : vector<16xf32>
    %64 = vector.multi_reduction <add>, %63, %cst_28 [1] : vector<16x16xf32> to vector<16xf32>
    %65 = vector.shape_cast %64 : vector<16xf32> to vector<16x1xf32>
    %66 = tpu.reciprocal %65 {approx = true} : vector<16x1xf32> -> vector<16x1xf32>
    %67 = vector.broadcast %66 : vector<16x1xf32> to vector<16x16xf32>
    %68 = arith.mulf %63, %67 : vector<16x16xf32>
    %cst_29 = arith.constant dense<0.000000e+00> : vector<16x16xf32>
    %69 = tpu.matmul %68, %54, %cst_29 {dimension_numbers = #tpu.dot_dimension_numbers<[1], [0], [0], [1], [0, 0, 1, 1], [], []>} : vector<16x16xf32>, vector<16x16xf32>, vector<16x16xf32> -> vector<16x16xf32>
    %c0_30 = arith.constant 0 : index
    %c16 = arith.constant 16 : index
    %70 = vector.load %arg22[%c0_30, %c16] : memref<16x64xf32, #tpu.memory_space<vmem>>, vector<16x16xf32>
    tpu.vector_store %arg22[%c0_30, %c16], %69 {strides = array<i32>} : memref<16x64xf32, #tpu.memory_space<vmem>>, vector<16x16xf32>,
    %71 = vector.extract_strided_slice %32 {offsets = [0, 32], sizes = [16, 16], strides = [1, 1]} : vector<16x192xf32> to vector<16x16xf32>
    %72 = vector.extract_strided_slice %32 {offsets = [0, 96], sizes = [16, 16], strides = [1, 1]} : vector<16x192xf32> to vector<16x16xf32>
    %73 = vector.extract_strided_slice %32 {offsets = [0, 160], sizes = [16, 16], strides = [1, 1]} : vector<16x192xf32> to vector<16x16xf32>
    %cst_31 = arith.constant dense<0.000000e+00> : vector<16x16xf32>
    %74 = tpu.matmul %71, %72, %cst_31 {dimension_numbers = #tpu.dot_dimension_numbers<[1], [1], [0], [0], [0, 0, 1, 0], [], []>} : vector<16x16xf32>, vector<16x16xf32>, vector<16x16xf32> -> vector<16x16xf32>
    %cst_32 = arith.constant 2.500000e-01 : f32
    %75 = vector.broadcast %cst_32 : f32 to vector<16x16xf32>
    %76 = arith.mulf %74, %75 : vector<16x16xf32>
    %77 = arith.addf %76, %25 : vector<16x16xf32>
    %cst_33 = arith.constant dense<0xFF800000> : vector<16xf32>
    %78 = vector.multi_reduction <maximumf>, %77, %cst_33 [1] : vector<16x16xf32> to vector<16xf32>
    %79 = vector.shape_cast %78 : vector<16xf32> to vector<16x1xf32>
    %80 = vector.broadcast %79 : vector<16x1xf32> to vector<16x16xf32>
    %81 = arith.subf %77, %80 : vector<16x16xf32>
    %82 = math.exp %81 : vector<16x16xf32>
    %cst_34 = arith.constant dense<0.000000e+00> : vector<16xf32>
    %83 = vector.multi_reduction <add>, %82, %cst_34 [1] : vector<16x16xf32> to vector<16xf32>
    %84 = vector.shape_cast %83 : vector<16xf32> to vector<16x1xf32>
    %85 = tpu.reciprocal %84 {approx = true} : vector<16x1xf32> -> vector<16x1xf32>
    %86 = vector.broadcast %85 : vector<16x1xf32> to vector<16x16xf32>
    %87 = arith.mulf %82, %86 : vector<16x16xf32>
    %cst_35 = arith.constant dense<0.000000e+00> : vector<16x16xf32>
    %88 = tpu.matmul %87, %73, %cst_35 {dimension_numbers = #tpu.dot_dimension_numbers<[1], [0], [0], [1], [0, 0, 1, 1], [], []>} : vector<16x16xf32>, vector<16x16xf32>, vector<16x16xf32> -> vector<16x16xf32>
    %c0_36 = arith.constant 0 : index
    %c32 = arith.constant 32 : index
    %89 = vector.load %arg22[%c0_36, %c32] : memref<16x64xf32, #tpu.memory_space<vmem>>, vector<16x16xf32>
    tpu.vector_store %arg22[%c0_36, %c32], %88 {strides = array<i32>} : memref<16x64xf32, #tpu.memory_space<vmem>>, vector<16x16xf32>,
    %90 = vector.extract_strided_slice %32 {offsets = [0, 48], sizes = [16, 16], strides = [1, 1]} : vector<16x192xf32> to vector<16x16xf32>
    %91 = vector.extract_strided_slice %32 {offsets = [0, 112], sizes = [16, 16], strides = [1, 1]} : vector<16x192xf32> to vector<16x16xf32>
    %92 = vector.extract_strided_slice %32 {offsets = [0, 176], sizes = [16, 16], strides = [1, 1]} : vector<16x192xf32> to vector<16x16xf32>
    %cst_37 = arith.constant dense<0.000000e+00> : vector<16x16xf32>
    %93 = tpu.matmul %90, %91, %cst_37 {dimension_numbers = #tpu.dot_dimension_numbers<[1], [1], [0], [0], [0, 0, 1, 0], [], []>} : vector<16x16xf32>, vector<16x16xf32>, vector<16x16xf32> -> vector<16x16xf32>
    %cst_38 = arith.constant 2.500000e-01 : f32
    %94 = vector.broadcast %cst_38 : f32 to vector<16x16xf32>
    %95 = arith.mulf %93, %94 : vector<16x16xf32>
    %96 = arith.addf %95, %25 : vector<16x16xf32>
    %cst_39 = arith.constant dense<0xFF800000> : vector<16xf32>
    %97 = vector.multi_reduction <maximumf>, %96, %cst_39 [1] : vector<16x16xf32> to vector<16xf32>
    %98 = vector.shape_cast %97 : vector<16xf32> to vector<16x1xf32>
    %99 = vector.broadcast %98 : vector<16x1xf32> to vector<16x16xf32>
    %100 = arith.subf %96, %99 : vector<16x16xf32>
    %101 = math.exp %100 : vector<16x16xf32>
    %cst_40 = arith.constant dense<0.000000e+00> : vector<16xf32>
    %102 = vector.multi_reduction <add>, %101, %cst_40 [1] : vector<16x16xf32> to vector<16xf32>
    %103 = vector.shape_cast %102 : vector<16xf32> to vector<16x1xf32>
    %104 = tpu.reciprocal %103 {approx = true} : vector<16x1xf32> -> vector<16x1xf32>
    %105 = vector.broadcast %104 : vector<16x1xf32> to vector<16x16xf32>
    %106 = arith.mulf %101, %105 : vector<16x16xf32>
    %cst_41 = arith.constant dense<0.000000e+00> : vector<16x16xf32>
    %107 = tpu.matmul %106, %92, %cst_41 {dimension_numbers = #tpu.dot_dimension_numbers<[1], [0], [0], [1], [0, 0, 1, 1], [], []>} : vector<16x16xf32>, vector<16x16xf32>, vector<16x16xf32> -> vector<16x16xf32>
    %c0_42 = arith.constant 0 : index
    %c48 = arith.constant 48 : index
    %108 = vector.load %arg22[%c0_42, %c48] : memref<16x64xf32, #tpu.memory_space<vmem>>, vector<16x16xf32>
    tpu.vector_store %arg22[%c0_42, %c48], %107 {strides = array<i32>} : memref<16x64xf32, #tpu.memory_space<vmem>>, vector<16x16xf32>,
    %c0_43 = arith.constant 0 : index
    %c0_44 = arith.constant 0 : index
    %109 = vector.load %arg22[%c0_43, %c0_44] : memref<16x64xf32, #tpu.memory_space<vmem>>, vector<16x64xf32>
    %c0_45 = arith.constant 0 : index
    %c0_46 = arith.constant 0 : index
    %c0_47 = arith.constant 0 : index
    %110 = vector.load %arg7[%c0_45, %c0_46, %c0_47] : memref<2x64x64xf32, #tpu.memory_space<vmem>>, vector<1x64x64xf32>
    %111 = vector.shape_cast %110 : vector<1x64x64xf32> to vector<64x64xf32>
    %cst_48 = arith.constant dense<0.000000e+00> : vector<16x64xf32>
    %112 = tpu.matmul %109, %111, %cst_48 {dimension_numbers = #tpu.dot_dimension_numbers<[1], [0], [0], [1], [0, 0, 1, 1], [], []>} : vector<16x64xf32>, vector<64x64xf32>, vector<16x64xf32> -> vector<16x64xf32>
    %c0_49 = arith.constant 0 : index
    %c0_50 = arith.constant 0 : index
    %c0_51 = arith.constant 0 : index
    %113 = vector.load %arg8[%c0_49, %c0_50, %c0_51] : memref<2x1x64xf32, #tpu.memory_space<vmem>>, vector<1x1x64xf32>
    %114 = vector.shape_cast %113 : vector<1x1x64xf32> to vector<1x64xf32>
    %115 = vector.broadcast %114 : vector<1x64xf32> to vector<16x64xf32>
    %116 = arith.addf %112, %115 : vector<16x64xf32>
    %117 = arith.addf %116, %24 : vector<16x64xf32>
    %c0_52 = arith.constant 0 : index
    %c0_53 = arith.constant 0 : index
    %c0_54 = arith.constant 0 : index
    %118 = vector.load %arg9[%c0_52, %c0_53, %c0_54] : memref<2x1x64xf32, #tpu.memory_space<vmem>>, vector<1x1x64xf32>
    %119 = vector.shape_cast %118 : vector<1x1x64xf32> to vector<1x64xf32>
    %c0_55 = arith.constant 0 : index
    %c0_56 = arith.constant 0 : index
    %c0_57 = arith.constant 0 : index
    %120 = vector.load %arg10[%c0_55, %c0_56, %c0_57] : memref<2x1x64xf32, #tpu.memory_space<vmem>>, vector<1x1x64xf32>
    %121 = vector.shape_cast %120 : vector<1x1x64xf32> to vector<1x64xf32>
    %cst_58 = arith.constant dense<0.000000e+00> : vector<16xf32>
    %122 = vector.multi_reduction <add>, %117, %cst_58 [1] : vector<16x64xf32> to vector<16xf32>
    %123 = vector.shape_cast %122 : vector<16xf32> to vector<16x1xf32>
    %cst_59 = arith.constant 6.400000e+01 : f32
    %124 = vector.broadcast %cst_59 : f32 to vector<16x1xf32>
    %125 = arith.divf %123, %124 : vector<16x1xf32>
    %126 = vector.broadcast %125 : vector<16x1xf32> to vector<16x64xf32>
    %127 = arith.subf %117, %126 : vector<16x64xf32>
    %128 = arith.mulf %127, %127 : vector<16x64xf32>
    %cst_60 = arith.constant dense<0.000000e+00> : vector<16xf32>
    %129 = vector.multi_reduction <add>, %128, %cst_60 [1] : vector<16x64xf32> to vector<16xf32>
    %130 = vector.shape_cast %129 : vector<16xf32> to vector<16x1xf32>
    %cst_61 = arith.constant 6.400000e+01 : f32
    %131 = vector.broadcast %cst_61 : f32 to vector<16x1xf32>
    %132 = arith.divf %130, %131 : vector<16x1xf32>
    %133 = vector.broadcast %125 : vector<16x1xf32> to vector<16x64xf32>
    %134 = arith.subf %117, %133 : vector<16x64xf32>
    %cst_62 = arith.constant 9.99999974E-6 : f32
    %135 = vector.broadcast %cst_62 : f32 to vector<16x1xf32>
    %136 = arith.addf %132, %135 : vector<16x1xf32>
    %137 = math.rsqrt %136 : vector<16x1xf32>
    %138 = vector.broadcast %137 : vector<16x1xf32> to vector<16x64xf32>
    %139 = arith.mulf %134, %138 : vector<16x64xf32>
    %140 = vector.broadcast %119 : vector<1x64xf32> to vector<16x64xf32>
    %141 = arith.mulf %139, %140 : vector<16x64xf32>
    %142 = vector.broadcast %121 : vector<1x64xf32> to vector<16x64xf32>
    %143 = arith.addf %141, %142 : vector<16x64xf32>
    %c0_63 = arith.constant 0 : index
    %c0_64 = arith.constant 0 : index
    %c0_65 = arith.constant 0 : index
    %144 = vector.load %arg11[%c0_63, %c0_64, %c0_65] : memref<2x64x128xf32, #tpu.memory_space<vmem>>, vector<1x64x128xf32>
    %145 = vector.shape_cast %144 : vector<1x64x128xf32> to vector<64x128xf32>
    %cst_66 = arith.constant dense<0.000000e+00> : vector<16x128xf32>
    %146 = tpu.matmul %143, %145, %cst_66 {dimension_numbers = #tpu.dot_dimension_numbers<[1], [0], [0], [1], [0, 0, 1, 1], [], []>} : vector<16x64xf32>, vector<64x128xf32>, vector<16x128xf32> -> vector<16x128xf32>
    %c0_67 = arith.constant 0 : index
    %c0_68 = arith.constant 0 : index
    %c0_69 = arith.constant 0 : index
    %147 = vector.load %arg12[%c0_67, %c0_68, %c0_69] : memref<2x1x128xf32, #tpu.memory_space<vmem>>, vector<1x1x128xf32>
    %148 = vector.shape_cast %147 : vector<1x1x128xf32> to vector<1x128xf32>
    %149 = vector.broadcast %148 : vector<1x128xf32> to vector<16x128xf32>
    %150 = arith.addf %146, %149 : vector<16x128xf32>
    %cst_70 = arith.constant 5.000000e-01 : f32
    %151 = vector.broadcast %cst_70 : f32 to vector<16x128xf32>
    %152 = arith.mulf %151, %150 : vector<16x128xf32>
    %cst_71 = arith.constant 0.707106769 : f32
    %153 = vector.broadcast %cst_71 : f32 to vector<16x128xf32>
    %154 = arith.mulf %150, %153 : vector<16x128xf32>
    %cst_72 = arith.constant 0.000000e+00 : f32
    %155 = vector.broadcast %cst_72 : f32 to vector<16x128xf32>
    %156 = arith.cmpf oge, %154, %155 : vector<16x128xf32>
    %cst_73 = arith.constant 1.000000e+00 : f32
    %cst_74 = arith.constant -1.000000e+00 : f32
    %157 = vector.broadcast %cst_73 : f32 to vector<16x128xf32>
    %158 = vector.broadcast %cst_74 : f32 to vector<16x128xf32>
    %159 = arith.select %156, %157, %158 : vector<16x128xi1>, vector<16x128xf32>
    %160 = math.absf %154 : vector<16x128xf32>
    %cst_75 = arith.constant 0.327591091 : f32
    %161 = vector.broadcast %cst_75 : f32 to vector<16x128xf32>
    %162 = arith.mulf %161, %160 : vector<16x128xf32>
    %cst_76 = arith.constant 1.000000e+00 : f32
    %163 = vector.broadcast %cst_76 : f32 to vector<16x128xf32>
    %164 = arith.addf %163, %162 : vector<16x128xf32>
    %cst_77 = arith.constant 1.000000e+00 : f32
    %165 = vector.broadcast %cst_77 : f32 to vector<16x128xf32>
    %166 = arith.divf %165, %164 : vector<16x128xf32>
    %cst_78 = arith.constant 1.06140542 : f32
    %167 = vector.broadcast %cst_78 : f32 to vector<16x128xf32>
    %168 = arith.mulf %166, %167 : vector<16x128xf32>
    %cst_79 = arith.constant -1.45315206 : f32
    %169 = vector.broadcast %cst_79 : f32 to vector<16x128xf32>
    %170 = arith.addf %169, %168 : vector<16x128xf32>
    %171 = arith.mulf %166, %170 : vector<16x128xf32>
    %cst_80 = arith.constant 1.42141378 : f32
    %172 = vector.broadcast %cst_80 : f32 to vector<16x128xf32>
    %173 = arith.addf %172, %171 : vector<16x128xf32>
    %174 = arith.mulf %166, %173 : vector<16x128xf32>
    %cst_81 = arith.constant -0.284496725 : f32
    %175 = vector.broadcast %cst_81 : f32 to vector<16x128xf32>
    %176 = arith.addf %175, %174 : vector<16x128xf32>
    %177 = arith.mulf %166, %176 : vector<16x128xf32>
    %cst_82 = arith.constant 0.254829586 : f32
    %178 = vector.broadcast %cst_82 : f32 to vector<16x128xf32>
    %179 = arith.addf %178, %177 : vector<16x128xf32>
    %180 = arith.mulf %166, %179 : vector<16x128xf32>
    %cst_83 = arith.constant 0.000000e+00 : f32
    %181 = vector.broadcast %cst_83 : f32 to vector<16x128xf32>
    %182 = arith.subf %181, %160 : vector<16x128xf32>
    %183 = arith.mulf %182, %160 : vector<16x128xf32>
    %184 = math.exp %183 : vector<16x128xf32>
    %185 = arith.mulf %180, %184 : vector<16x128xf32>
    %cst_84 = arith.constant 1.000000e+00 : f32
    %186 = vector.broadcast %cst_84 : f32 to vector<16x128xf32>
    %187 = arith.subf %186, %185 : vector<16x128xf32>
    %188 = arith.mulf %159, %187 : vector<16x128xf32>
    %cst_85 = arith.constant 1.000000e+00 : f32
    %189 = vector.broadcast %cst_85 : f32 to vector<16x128xf32>
    %190 = arith.addf %189, %188 : vector<16x128xf32>
    %191 = arith.mulf %152, %190 : vector<16x128xf32>
    %c0_86 = arith.constant 0 : index
    %c0_87 = arith.constant 0 : index
    %c0_88 = arith.constant 0 : index
    %192 = vector.load %arg13[%c0_86, %c0_87, %c0_88] : memref<2x128x64xf32, #tpu.memory_space<vmem>>, vector<1x128x64xf32>
    %193 = vector.shape_cast %192 : vector<1x128x64xf32> to vector<128x64xf32>
    %cst_89 = arith.constant dense<0.000000e+00> : vector<16x64xf32>
    %194 = tpu.matmul %191, %193, %cst_89 {dimension_numbers = #tpu.dot_dimension_numbers<[1], [0], [0], [1], [0, 0, 1, 1], [], []>} : vector<16x128xf32>, vector<128x64xf32>, vector<16x64xf32> -> vector<16x64xf32>
    %c0_90 = arith.constant 0 : index
    %c0_91 = arith.constant 0 : index
    %c0_92 = arith.constant 0 : index
    %195 = vector.load %arg14[%c0_90, %c0_91, %c0_92] : memref<2x1x64xf32, #tpu.memory_space<vmem>>, vector<1x1x64xf32>
    %196 = vector.shape_cast %195 : vector<1x1x64xf32> to vector<1x64xf32>
    %197 = vector.broadcast %196 : vector<1x64xf32> to vector<16x64xf32>
    %198 = arith.addf %194, %197 : vector<16x64xf32>
    %199 = arith.addf %198, %143 : vector<16x64xf32>
    %c0_93 = arith.constant 0 : index
    %c0_94 = arith.constant 0 : index
    %c0_95 = arith.constant 0 : index
    %200 = vector.load %arg15[%c0_93, %c0_94, %c0_95] : memref<2x1x64xf32, #tpu.memory_space<vmem>>, vector<1x1x64xf32>
    %201 = vector.shape_cast %200 : vector<1x1x64xf32> to vector<1x64xf32>
    %c0_96 = arith.constant 0 : index
    %c0_97 = arith.constant 0 : index
    %c0_98 = arith.constant 0 : index
    %202 = vector.load %arg16[%c0_96, %c0_97, %c0_98] : memref<2x1x64xf32, #tpu.memory_space<vmem>>, vector<1x1x64xf32>
    %203 = vector.shape_cast %202 : vector<1x1x64xf32> to vector<1x64xf32>
    %cst_99 = arith.constant dense<0.000000e+00> : vector<16xf32>
    %204 = vector.multi_reduction <add>, %199, %cst_99 [1] : vector<16x64xf32> to vector<16xf32>
    %205 = vector.shape_cast %204 : vector<16xf32> to vector<16x1xf32>
    %cst_100 = arith.constant 6.400000e+01 : f32
    %206 = vector.broadcast %cst_100 : f32 to vector<16x1xf32>
    %207 = arith.divf %205, %206 : vector<16x1xf32>
    %208 = vector.broadcast %207 : vector<16x1xf32> to vector<16x64xf32>
    %209 = arith.subf %199, %208 : vector<16x64xf32>
    %210 = arith.mulf %209, %209 : vector<16x64xf32>
    %cst_101 = arith.constant dense<0.000000e+00> : vector<16xf32>
    %211 = vector.multi_reduction <add>, %210, %cst_101 [1] : vector<16x64xf32> to vector<16xf32>
    %212 = vector.shape_cast %211 : vector<16xf32> to vector<16x1xf32>
    %cst_102 = arith.constant 6.400000e+01 : f32
    %213 = vector.broadcast %cst_102 : f32 to vector<16x1xf32>
    %214 = arith.divf %212, %213 : vector<16x1xf32>
    %215 = vector.broadcast %207 : vector<16x1xf32> to vector<16x64xf32>
    %216 = arith.subf %199, %215 : vector<16x64xf32>
    %cst_103 = arith.constant 9.99999974E-6 : f32
    %217 = vector.broadcast %cst_103 : f32 to vector<16x1xf32>
    %218 = arith.addf %214, %217 : vector<16x1xf32>
    %219 = math.rsqrt %218 : vector<16x1xf32>
    %220 = vector.broadcast %219 : vector<16x1xf32> to vector<16x64xf32>
    %221 = arith.mulf %216, %220 : vector<16x64xf32>
    %222 = vector.broadcast %201 : vector<1x64xf32> to vector<16x64xf32>
    %223 = arith.mulf %221, %222 : vector<16x64xf32>
    %224 = vector.broadcast %203 : vector<1x64xf32> to vector<16x64xf32>
    %225 = arith.addf %223, %224 : vector<16x64xf32>
    %c1 = arith.constant 1 : index
    %c0_104 = arith.constant 0 : index
    %c0_105 = arith.constant 0 : index
    %226 = vector.load %arg5[%c1, %c0_104, %c0_105] : memref<2x64x192xf32, #tpu.memory_space<vmem>>, vector<1x64x192xf32>
    %227 = vector.shape_cast %226 : vector<1x64x192xf32> to vector<64x192xf32>
    %cst_106 = arith.constant dense<0.000000e+00> : vector<16x192xf32>
    %228 = tpu.matmul %225, %227, %cst_106 {dimension_numbers = #tpu.dot_dimension_numbers<[1], [0], [0], [1], [0, 0, 1, 1], [], []>} : vector<16x64xf32>, vector<64x192xf32>, vector<16x192xf32> -> vector<16x192xf32>
    %c1_107 = arith.constant 1 : index
    %c0_108 = arith.constant 0 : index
    %c0_109 = arith.constant 0 : index
    %229 = vector.load %arg6[%c1_107, %c0_108, %c0_109] : memref<2x1x192xf32, #tpu.memory_space<vmem>>, vector<1x1x192xf32>
    %230 = vector.shape_cast %229 : vector<1x1x192xf32> to vector<1x192xf32>
    %231 = vector.broadcast %230 : vector<1x192xf32> to vector<16x192xf32>
    %232 = arith.addf %228, %231 : vector<16x192xf32>
    %233 = vector.extract_strided_slice %232 {offsets = [0, 0], sizes = [16, 16], strides = [1, 1]} : vector<16x192xf32> to vector<16x16xf32>
    %234 = vector.extract_strided_slice %232 {offsets = [0, 64], sizes = [16, 16], strides = [1, 1]} : vector<16x192xf32> to vector<16x16xf32>
    %235 = vector.extract_strided_slice %232 {offsets = [0, 128], sizes = [16, 16], strides = [1, 1]} : vector<16x192xf32> to vector<16x16xf32>
    %cst_110 = arith.constant dense<0.000000e+00> : vector<16x16xf32>
    %236 = tpu.matmul %233, %234, %cst_110 {dimension_numbers = #tpu.dot_dimension_numbers<[1], [1], [0], [0], [0, 0, 1, 0], [], []>} : vector<16x16xf32>, vector<16x16xf32>, vector<16x16xf32> -> vector<16x16xf32>
    %cst_111 = arith.constant 2.500000e-01 : f32
    %237 = vector.broadcast %cst_111 : f32 to vector<16x16xf32>
    %238 = arith.mulf %236, %237 : vector<16x16xf32>
    %239 = arith.addf %238, %25 : vector<16x16xf32>
    %cst_112 = arith.constant dense<0xFF800000> : vector<16xf32>
    %240 = vector.multi_reduction <maximumf>, %239, %cst_112 [1] : vector<16x16xf32> to vector<16xf32>
    %241 = vector.shape_cast %240 : vector<16xf32> to vector<16x1xf32>
    %242 = vector.broadcast %241 : vector<16x1xf32> to vector<16x16xf32>
    %243 = arith.subf %239, %242 : vector<16x16xf32>
    %244 = math.exp %243 : vector<16x16xf32>
    %cst_113 = arith.constant dense<0.000000e+00> : vector<16xf32>
    %245 = vector.multi_reduction <add>, %244, %cst_113 [1] : vector<16x16xf32> to vector<16xf32>
    %246 = vector.shape_cast %245 : vector<16xf32> to vector<16x1xf32>
    %247 = tpu.reciprocal %246 {approx = true} : vector<16x1xf32> -> vector<16x1xf32>
    %248 = vector.broadcast %247 : vector<16x1xf32> to vector<16x16xf32>
    %249 = arith.mulf %244, %248 : vector<16x16xf32>
    %cst_114 = arith.constant dense<0.000000e+00> : vector<16x16xf32>
    %250 = tpu.matmul %249, %235, %cst_114 {dimension_numbers = #tpu.dot_dimension_numbers<[1], [0], [0], [1], [0, 0, 1, 1], [], []>} : vector<16x16xf32>, vector<16x16xf32>, vector<16x16xf32> -> vector<16x16xf32>
    %c0_115 = arith.constant 0 : index
    %c0_116 = arith.constant 0 : index
    %251 = vector.load %arg22[%c0_115, %c0_116] : memref<16x64xf32, #tpu.memory_space<vmem>>, vector<16x16xf32>
    tpu.vector_store %arg22[%c0_115, %c0_116], %250 {strides = array<i32>} : memref<16x64xf32, #tpu.memory_space<vmem>>, vector<16x16xf32>,
    %252 = vector.extract_strided_slice %232 {offsets = [0, 16], sizes = [16, 16], strides = [1, 1]} : vector<16x192xf32> to vector<16x16xf32>
    %253 = vector.extract_strided_slice %232 {offsets = [0, 80], sizes = [16, 16], strides = [1, 1]} : vector<16x192xf32> to vector<16x16xf32>
    %254 = vector.extract_strided_slice %232 {offsets = [0, 144], sizes = [16, 16], strides = [1, 1]} : vector<16x192xf32> to vector<16x16xf32>
    %cst_117 = arith.constant dense<0.000000e+00> : vector<16x16xf32>
    %255 = tpu.matmul %252, %253, %cst_117 {dimension_numbers = #tpu.dot_dimension_numbers<[1], [1], [0], [0], [0, 0, 1, 0], [], []>} : vector<16x16xf32>, vector<16x16xf32>, vector<16x16xf32> -> vector<16x16xf32>
    %cst_118 = arith.constant 2.500000e-01 : f32
    %256 = vector.broadcast %cst_118 : f32 to vector<16x16xf32>
    %257 = arith.mulf %255, %256 : vector<16x16xf32>
    %258 = arith.addf %257, %25 : vector<16x16xf32>
    %cst_119 = arith.constant dense<0xFF800000> : vector<16xf32>
    %259 = vector.multi_reduction <maximumf>, %258, %cst_119 [1] : vector<16x16xf32> to vector<16xf32>
    %260 = vector.shape_cast %259 : vector<16xf32> to vector<16x1xf32>
    %261 = vector.broadcast %260 : vector<16x1xf32> to vector<16x16xf32>
    %262 = arith.subf %258, %261 : vector<16x16xf32>
    %263 = math.exp %262 : vector<16x16xf32>
    %cst_120 = arith.constant dense<0.000000e+00> : vector<16xf32>
    %264 = vector.multi_reduction <add>, %263, %cst_120 [1] : vector<16x16xf32> to vector<16xf32>
    %265 = vector.shape_cast %264 : vector<16xf32> to vector<16x1xf32>
    %266 = tpu.reciprocal %265 {approx = true} : vector<16x1xf32> -> vector<16x1xf32>
    %267 = vector.broadcast %266 : vector<16x1xf32> to vector<16x16xf32>
    %268 = arith.mulf %263, %267 : vector<16x16xf32>
    %cst_121 = arith.constant dense<0.000000e+00> : vector<16x16xf32>
    %269 = tpu.matmul %268, %254, %cst_121 {dimension_numbers = #tpu.dot_dimension_numbers<[1], [0], [0], [1], [0, 0, 1, 1], [], []>} : vector<16x16xf32>, vector<16x16xf32>, vector<16x16xf32> -> vector<16x16xf32>
    %c0_122 = arith.constant 0 : index
    %c16_123 = arith.constant 16 : index
    %270 = vector.load %arg22[%c0_122, %c16_123] : memref<16x64xf32, #tpu.memory_space<vmem>>, vector<16x16xf32>
    tpu.vector_store %arg22[%c0_122, %c16_123], %269 {strides = array<i32>} : memref<16x64xf32, #tpu.memory_space<vmem>>, vector<16x16xf32>,
    %271 = vector.extract_strided_slice %232 {offsets = [0, 32], sizes = [16, 16], strides = [1, 1]} : vector<16x192xf32> to vector<16x16xf32>
    %272 = vector.extract_strided_slice %232 {offsets = [0, 96], sizes = [16, 16], strides = [1, 1]} : vector<16x192xf32> to vector<16x16xf32>
    %273 = vector.extract_strided_slice %232 {offsets = [0, 160], sizes = [16, 16], strides = [1, 1]} : vector<16x192xf32> to vector<16x16xf32>
    %cst_124 = arith.constant dense<0.000000e+00> : vector<16x16xf32>
    %274 = tpu.matmul %271, %272, %cst_124 {dimension_numbers = #tpu.dot_dimension_numbers<[1], [1], [0], [0], [0, 0, 1, 0], [], []>} : vector<16x16xf32>, vector<16x16xf32>, vector<16x16xf32> -> vector<16x16xf32>
    %cst_125 = arith.constant 2.500000e-01 : f32
    %275 = vector.broadcast %cst_125 : f32 to vector<16x16xf32>
    %276 = arith.mulf %274, %275 : vector<16x16xf32>
    %277 = arith.addf %276, %25 : vector<16x16xf32>
    %cst_126 = arith.constant dense<0xFF800000> : vector<16xf32>
    %278 = vector.multi_reduction <maximumf>, %277, %cst_126 [1] : vector<16x16xf32> to vector<16xf32>
    %279 = vector.shape_cast %278 : vector<16xf32> to vector<16x1xf32>
    %280 = vector.broadcast %279 : vector<16x1xf32> to vector<16x16xf32>
    %281 = arith.subf %277, %280 : vector<16x16xf32>
    %282 = math.exp %281 : vector<16x16xf32>
    %cst_127 = arith.constant dense<0.000000e+00> : vector<16xf32>
    %283 = vector.multi_reduction <add>, %282, %cst_127 [1] : vector<16x16xf32> to vector<16xf32>
    %284 = vector.shape_cast %283 : vector<16xf32> to vector<16x1xf32>
    %285 = tpu.reciprocal %284 {approx = true} : vector<16x1xf32> -> vector<16x1xf32>
    %286 = vector.broadcast %285 : vector<16x1xf32> to vector<16x16xf32>
    %287 = arith.mulf %282, %286 : vector<16x16xf32>
    %cst_128 = arith.constant dense<0.000000e+00> : vector<16x16xf32>
    %288 = tpu.matmul %287, %273, %cst_128 {dimension_numbers = #tpu.dot_dimension_numbers<[1], [0], [0], [1], [0, 0, 1, 1], [], []>} : vector<16x16xf32>, vector<16x16xf32>, vector<16x16xf32> -> vector<16x16xf32>
    %c0_129 = arith.constant 0 : index
    %c32_130 = arith.constant 32 : index
    %289 = vector.load %arg22[%c0_129, %c32_130] : memref<16x64xf32, #tpu.memory_space<vmem>>, vector<16x16xf32>
    tpu.vector_store %arg22[%c0_129, %c32_130], %288 {strides = array<i32>} : memref<16x64xf32, #tpu.memory_space<vmem>>, vector<16x16xf32>,
    %290 = vector.extract_strided_slice %232 {offsets = [0, 48], sizes = [16, 16], strides = [1, 1]} : vector<16x192xf32> to vector<16x16xf32>
    %291 = vector.extract_strided_slice %232 {offsets = [0, 112], sizes = [16, 16], strides = [1, 1]} : vector<16x192xf32> to vector<16x16xf32>
    %292 = vector.extract_strided_slice %232 {offsets = [0, 176], sizes = [16, 16], strides = [1, 1]} : vector<16x192xf32> to vector<16x16xf32>
    %cst_131 = arith.constant dense<0.000000e+00> : vector<16x16xf32>
    %293 = tpu.matmul %290, %291, %cst_131 {dimension_numbers = #tpu.dot_dimension_numbers<[1], [1], [0], [0], [0, 0, 1, 0], [], []>} : vector<16x16xf32>, vector<16x16xf32>, vector<16x16xf32> -> vector<16x16xf32>
    %cst_132 = arith.constant 2.500000e-01 : f32
    %294 = vector.broadcast %cst_132 : f32 to vector<16x16xf32>
    %295 = arith.mulf %293, %294 : vector<16x16xf32>
    %296 = arith.addf %295, %25 : vector<16x16xf32>
    %cst_133 = arith.constant dense<0xFF800000> : vector<16xf32>
    %297 = vector.multi_reduction <maximumf>, %296, %cst_133 [1] : vector<16x16xf32> to vector<16xf32>
    %298 = vector.shape_cast %297 : vector<16xf32> to vector<16x1xf32>
    %299 = vector.broadcast %298 : vector<16x1xf32> to vector<16x16xf32>
    %300 = arith.subf %296, %299 : vector<16x16xf32>
    %301 = math.exp %300 : vector<16x16xf32>
    %cst_134 = arith.constant dense<0.000000e+00> : vector<16xf32>
    %302 = vector.multi_reduction <add>, %301, %cst_134 [1] : vector<16x16xf32> to vector<16xf32>
    %303 = vector.shape_cast %302 : vector<16xf32> to vector<16x1xf32>
    %304 = tpu.reciprocal %303 {approx = true} : vector<16x1xf32> -> vector<16x1xf32>
    %305 = vector.broadcast %304 : vector<16x1xf32> to vector<16x16xf32>
    %306 = arith.mulf %301, %305 : vector<16x16xf32>
    %cst_135 = arith.constant dense<0.000000e+00> : vector<16x16xf32>
    %307 = tpu.matmul %306, %292, %cst_135 {dimension_numbers = #tpu.dot_dimension_numbers<[1], [0], [0], [1], [0, 0, 1, 1], [], []>} : vector<16x16xf32>, vector<16x16xf32>, vector<16x16xf32> -> vector<16x16xf32>
    %c0_136 = arith.constant 0 : index
    %c48_137 = arith.constant 48 : index
    %308 = vector.load %arg22[%c0_136, %c48_137] : memref<16x64xf32, #tpu.memory_space<vmem>>, vector<16x16xf32>
    tpu.vector_store %arg22[%c0_136, %c48_137], %307 {strides = array<i32>} : memref<16x64xf32, #tpu.memory_space<vmem>>, vector<16x16xf32>,
    %c0_138 = arith.constant 0 : index
    %c0_139 = arith.constant 0 : index
    %309 = vector.load %arg22[%c0_138, %c0_139] : memref<16x64xf32, #tpu.memory_space<vmem>>, vector<16x64xf32>
    %c1_140 = arith.constant 1 : index
    %c0_141 = arith.constant 0 : index
    %c0_142 = arith.constant 0 : index
    %310 = vector.load %arg7[%c1_140, %c0_141, %c0_142] : memref<2x64x64xf32, #tpu.memory_space<vmem>>, vector<1x64x64xf32>
    %311 = vector.shape_cast %310 : vector<1x64x64xf32> to vector<64x64xf32>
    %cst_143 = arith.constant dense<0.000000e+00> : vector<16x64xf32>
    %312 = tpu.matmul %309, %311, %cst_143 {dimension_numbers = #tpu.dot_dimension_numbers<[1], [0], [0], [1], [0, 0, 1, 1], [], []>} : vector<16x64xf32>, vector<64x64xf32>, vector<16x64xf32> -> vector<16x64xf32>
    %c1_144 = arith.constant 1 : index
    %c0_145 = arith.constant 0 : index
    %c0_146 = arith.constant 0 : index
    %313 = vector.load %arg8[%c1_144, %c0_145, %c0_146] : memref<2x1x64xf32, #tpu.memory_space<vmem>>, vector<1x1x64xf32>
    %314 = vector.shape_cast %313 : vector<1x1x64xf32> to vector<1x64xf32>
    %315 = vector.broadcast %314 : vector<1x64xf32> to vector<16x64xf32>
    %316 = arith.addf %312, %315 : vector<16x64xf32>
    %317 = arith.addf %316, %225 : vector<16x64xf32>
    %c1_147 = arith.constant 1 : index
    %c0_148 = arith.constant 0 : index
    %c0_149 = arith.constant 0 : index
    %318 = vector.load %arg9[%c1_147, %c0_148, %c0_149] : memref<2x1x64xf32, #tpu.memory_space<vmem>>, vector<1x1x64xf32>
    %319 = vector.shape_cast %318 : vector<1x1x64xf32> to vector<1x64xf32>
    %c1_150 = arith.constant 1 : index
    %c0_151 = arith.constant 0 : index
    %c0_152 = arith.constant 0 : index
    %320 = vector.load %arg10[%c1_150, %c0_151, %c0_152] : memref<2x1x64xf32, #tpu.memory_space<vmem>>, vector<1x1x64xf32>
    %321 = vector.shape_cast %320 : vector<1x1x64xf32> to vector<1x64xf32>
    %cst_153 = arith.constant dense<0.000000e+00> : vector<16xf32>
    %322 = vector.multi_reduction <add>, %317, %cst_153 [1] : vector<16x64xf32> to vector<16xf32>
    %323 = vector.shape_cast %322 : vector<16xf32> to vector<16x1xf32>
    %cst_154 = arith.constant 6.400000e+01 : f32
    %324 = vector.broadcast %cst_154 : f32 to vector<16x1xf32>
    %325 = arith.divf %323, %324 : vector<16x1xf32>
    %326 = vector.broadcast %325 : vector<16x1xf32> to vector<16x64xf32>
    %327 = arith.subf %317, %326 : vector<16x64xf32>
    %328 = arith.mulf %327, %327 : vector<16x64xf32>
    %cst_155 = arith.constant dense<0.000000e+00> : vector<16xf32>
    %329 = vector.multi_reduction <add>, %328, %cst_155 [1] : vector<16x64xf32> to vector<16xf32>
    %330 = vector.shape_cast %329 : vector<16xf32> to vector<16x1xf32>
    %cst_156 = arith.constant 6.400000e+01 : f32
    %331 = vector.broadcast %cst_156 : f32 to vector<16x1xf32>
    %332 = arith.divf %330, %331 : vector<16x1xf32>
    %333 = vector.broadcast %325 : vector<16x1xf32> to vector<16x64xf32>
    %334 = arith.subf %317, %333 : vector<16x64xf32>
    %cst_157 = arith.constant 9.99999974E-6 : f32
    %335 = vector.broadcast %cst_157 : f32 to vector<16x1xf32>
    %336 = arith.addf %332, %335 : vector<16x1xf32>
    %337 = math.rsqrt %336 : vector<16x1xf32>
    %338 = vector.broadcast %337 : vector<16x1xf32> to vector<16x64xf32>
    %339 = arith.mulf %334, %338 : vector<16x64xf32>
    %340 = vector.broadcast %319 : vector<1x64xf32> to vector<16x64xf32>
    %341 = arith.mulf %339, %340 : vector<16x64xf32>
    %342 = vector.broadcast %321 : vector<1x64xf32> to vector<16x64xf32>
    %343 = arith.addf %341, %342 : vector<16x64xf32>
    %c1_158 = arith.constant 1 : index
    %c0_159 = arith.constant 0 : index
    %c0_160 = arith.constant 0 : index
    %344 = vector.load %arg11[%c1_158, %c0_159, %c0_160] : memref<2x64x128xf32, #tpu.memory_space<vmem>>, vector<1x64x128xf32>
    %345 = vector.shape_cast %344 : vector<1x64x128xf32> to vector<64x128xf32>
    %cst_161 = arith.constant dense<0.000000e+00> : vector<16x128xf32>
    %346 = tpu.matmul %343, %345, %cst_161 {dimension_numbers = #tpu.dot_dimension_numbers<[1], [0], [0], [1], [0, 0, 1, 1], [], []>} : vector<16x64xf32>, vector<64x128xf32>, vector<16x128xf32> -> vector<16x128xf32>
    %c1_162 = arith.constant 1 : index
    %c0_163 = arith.constant 0 : index
    %c0_164 = arith.constant 0 : index
    %347 = vector.load %arg12[%c1_162, %c0_163, %c0_164] : memref<2x1x128xf32, #tpu.memory_space<vmem>>, vector<1x1x128xf32>
    %348 = vector.shape_cast %347 : vector<1x1x128xf32> to vector<1x128xf32>
    %349 = vector.broadcast %348 : vector<1x128xf32> to vector<16x128xf32>
    %350 = arith.addf %346, %349 : vector<16x128xf32>
    %cst_165 = arith.constant 5.000000e-01 : f32
    %351 = vector.broadcast %cst_165 : f32 to vector<16x128xf32>
    %352 = arith.mulf %351, %350 : vector<16x128xf32>
    %cst_166 = arith.constant 0.707106769 : f32
    %353 = vector.broadcast %cst_166 : f32 to vector<16x128xf32>
    %354 = arith.mulf %350, %353 : vector<16x128xf32>
    %cst_167 = arith.constant 0.000000e+00 : f32
    %355 = vector.broadcast %cst_167 : f32 to vector<16x128xf32>
    %356 = arith.cmpf oge, %354, %355 : vector<16x128xf32>
    %cst_168 = arith.constant 1.000000e+00 : f32
    %cst_169 = arith.constant -1.000000e+00 : f32
    %357 = vector.broadcast %cst_168 : f32 to vector<16x128xf32>
    %358 = vector.broadcast %cst_169 : f32 to vector<16x128xf32>
    %359 = arith.select %356, %357, %358 : vector<16x128xi1>, vector<16x128xf32>
    %360 = math.absf %354 : vector<16x128xf32>
    %cst_170 = arith.constant 0.327591091 : f32
    %361 = vector.broadcast %cst_170 : f32 to vector<16x128xf32>
    %362 = arith.mulf %361, %360 : vector<16x128xf32>
    %cst_171 = arith.constant 1.000000e+00 : f32
    %363 = vector.broadcast %cst_171 : f32 to vector<16x128xf32>
    %364 = arith.addf %363, %362 : vector<16x128xf32>
    %cst_172 = arith.constant 1.000000e+00 : f32
    %365 = vector.broadcast %cst_172 : f32 to vector<16x128xf32>
    %366 = arith.divf %365, %364 : vector<16x128xf32>
    %cst_173 = arith.constant 1.06140542 : f32
    %367 = vector.broadcast %cst_173 : f32 to vector<16x128xf32>
    %368 = arith.mulf %366, %367 : vector<16x128xf32>
    %cst_174 = arith.constant -1.45315206 : f32
    %369 = vector.broadcast %cst_174 : f32 to vector<16x128xf32>
    %370 = arith.addf %369, %368 : vector<16x128xf32>
    %371 = arith.mulf %366, %370 : vector<16x128xf32>
    %cst_175 = arith.constant 1.42141378 : f32
    %372 = vector.broadcast %cst_175 : f32 to vector<16x128xf32>
    %373 = arith.addf %372, %371 : vector<16x128xf32>
    %374 = arith.mulf %366, %373 : vector<16x128xf32>
    %cst_176 = arith.constant -0.284496725 : f32
    %375 = vector.broadcast %cst_176 : f32 to vector<16x128xf32>
    %376 = arith.addf %375, %374 : vector<16x128xf32>
    %377 = arith.mulf %366, %376 : vector<16x128xf32>
    %cst_177 = arith.constant 0.254829586 : f32
    %378 = vector.broadcast %cst_177 : f32 to vector<16x128xf32>
    %379 = arith.addf %378, %377 : vector<16x128xf32>
    %380 = arith.mulf %366, %379 : vector<16x128xf32>
    %cst_178 = arith.constant 0.000000e+00 : f32
    %381 = vector.broadcast %cst_178 : f32 to vector<16x128xf32>
    %382 = arith.subf %381, %360 : vector<16x128xf32>
    %383 = arith.mulf %382, %360 : vector<16x128xf32>
    %384 = math.exp %383 : vector<16x128xf32>
    %385 = arith.mulf %380, %384 : vector<16x128xf32>
    %cst_179 = arith.constant 1.000000e+00 : f32
    %386 = vector.broadcast %cst_179 : f32 to vector<16x128xf32>
    %387 = arith.subf %386, %385 : vector<16x128xf32>
    %388 = arith.mulf %359, %387 : vector<16x128xf32>
    %cst_180 = arith.constant 1.000000e+00 : f32
    %389 = vector.broadcast %cst_180 : f32 to vector<16x128xf32>
    %390 = arith.addf %389, %388 : vector<16x128xf32>
    %391 = arith.mulf %352, %390 : vector<16x128xf32>
    %c1_181 = arith.constant 1 : index
    %c0_182 = arith.constant 0 : index
    %c0_183 = arith.constant 0 : index
    %392 = vector.load %arg13[%c1_181, %c0_182, %c0_183] : memref<2x128x64xf32, #tpu.memory_space<vmem>>, vector<1x128x64xf32>
    %393 = vector.shape_cast %392 : vector<1x128x64xf32> to vector<128x64xf32>
    %cst_184 = arith.constant dense<0.000000e+00> : vector<16x64xf32>
    %394 = tpu.matmul %391, %393, %cst_184 {dimension_numbers = #tpu.dot_dimension_numbers<[1], [0], [0], [1], [0, 0, 1, 1], [], []>} : vector<16x128xf32>, vector<128x64xf32>, vector<16x64xf32> -> vector<16x64xf32>
    %c1_185 = arith.constant 1 : index
    %c0_186 = arith.constant 0 : index
    %c0_187 = arith.constant 0 : index
    %395 = vector.load %arg14[%c1_185, %c0_186, %c0_187] : memref<2x1x64xf32, #tpu.memory_space<vmem>>, vector<1x1x64xf32>
    %396 = vector.shape_cast %395 : vector<1x1x64xf32> to vector<1x64xf32>
    %397 = vector.broadcast %396 : vector<1x64xf32> to vector<16x64xf32>
    %398 = arith.addf %394, %397 : vector<16x64xf32>
    %399 = arith.addf %398, %343 : vector<16x64xf32>
    %c1_188 = arith.constant 1 : index
    %c0_189 = arith.constant 0 : index
    %c0_190 = arith.constant 0 : index
    %400 = vector.load %arg15[%c1_188, %c0_189, %c0_190] : memref<2x1x64xf32, #tpu.memory_space<vmem>>, vector<1x1x64xf32>
    %401 = vector.shape_cast %400 : vector<1x1x64xf32> to vector<1x64xf32>
    %c1_191 = arith.constant 1 : index
    %c0_192 = arith.constant 0 : index
    %c0_193 = arith.constant 0 : index
    %402 = vector.load %arg16[%c1_191, %c0_192, %c0_193] : memref<2x1x64xf32, #tpu.memory_space<vmem>>, vector<1x1x64xf32>
    %403 = vector.shape_cast %402 : vector<1x1x64xf32> to vector<1x64xf32>
    %cst_194 = arith.constant dense<0.000000e+00> : vector<16xf32>
    %404 = vector.multi_reduction <add>, %399, %cst_194 [1] : vector<16x64xf32> to vector<16xf32>
    %405 = vector.shape_cast %404 : vector<16xf32> to vector<16x1xf32>
    %cst_195 = arith.constant 6.400000e+01 : f32
    %406 = vector.broadcast %cst_195 : f32 to vector<16x1xf32>
    %407 = arith.divf %405, %406 : vector<16x1xf32>
    %408 = vector.broadcast %407 : vector<16x1xf32> to vector<16x64xf32>
    %409 = arith.subf %399, %408 : vector<16x64xf32>
    %410 = arith.mulf %409, %409 : vector<16x64xf32>
    %cst_196 = arith.constant dense<0.000000e+00> : vector<16xf32>
    %411 = vector.multi_reduction <add>, %410, %cst_196 [1] : vector<16x64xf32> to vector<16xf32>
    %412 = vector.shape_cast %411 : vector<16xf32> to vector<16x1xf32>
    %cst_197 = arith.constant 6.400000e+01 : f32
    %413 = vector.broadcast %cst_197 : f32 to vector<16x1xf32>
    %414 = arith.divf %412, %413 : vector<16x1xf32>
    %415 = vector.broadcast %407 : vector<16x1xf32> to vector<16x64xf32>
    %416 = arith.subf %399, %415 : vector<16x64xf32>
    %cst_198 = arith.constant 9.99999974E-6 : f32
    %417 = vector.broadcast %cst_198 : f32 to vector<16x1xf32>
    %418 = arith.addf %414, %417 : vector<16x1xf32>
    %419 = math.rsqrt %418 : vector<16x1xf32>
    %420 = vector.broadcast %419 : vector<16x1xf32> to vector<16x64xf32>
    %421 = arith.mulf %416, %420 : vector<16x64xf32>
    %422 = vector.broadcast %401 : vector<1x64xf32> to vector<16x64xf32>
    %423 = arith.mulf %421, %422 : vector<16x64xf32>
    %424 = vector.broadcast %403 : vector<1x64xf32> to vector<16x64xf32>
    %425 = arith.addf %423, %424 : vector<16x64xf32>
    %426 = vector.extract_strided_slice %425 {offsets = [0, 0], sizes = [1, 64], strides = [1, 1]} : vector<16x64xf32> to vector<1x64xf32>
    %427 = vector.extract_strided_slice %425 {offsets = [8, 0], sizes = [1, 64], strides = [1, 1]} : vector<16x64xf32> to vector<1x64xf32>
    %428 = tpu.concatenate %426, %427 in 0 : vector<1x64xf32>, vector<1x64xf32> -> vector<2x64xf32>
    %c0_199 = arith.constant 0 : index
    %c0_200 = arith.constant 0 : index
    %429 = vector.load %arg17[%c0_199, %c0_200] : memref<64x64xf32, #tpu.memory_space<vmem>>, vector<64x64xf32>
    %cst_201 = arith.constant dense<0.000000e+00> : vector<2x64xf32>
    %430 = tpu.matmul %428, %429, %cst_201 {dimension_numbers = #tpu.dot_dimension_numbers<[1], [0], [0], [1], [0, 0, 1, 1], [], []>} : vector<2x64xf32>, vector<64x64xf32>, vector<2x64xf32> -> vector<2x64xf32>
    %c0_202 = arith.constant 0 : index
    %c0_203 = arith.constant 0 : index
    %431 = vector.load %arg18[%c0_202, %c0_203] : memref<1x64xf32, #tpu.memory_space<vmem>>, vector<1x64xf32>
    %432 = vector.broadcast %431 : vector<1x64xf32> to vector<2x64xf32>
    %433 = arith.addf %430, %432 : vector<2x64xf32>
    %434 = math.tanh %433 : vector<2x64xf32>
    %c0_204 = arith.constant 0 : index
    %c0_205 = arith.constant 0 : index
    %435 = vector.load %arg19[%c0_204, %c0_205] : memref<64x3xf32, #tpu.memory_space<vmem>>, vector<64x3xf32>
    %cst_206 = arith.constant dense<0.000000e+00> : vector<2x3xf32>
    %436 = tpu.matmul %434, %435, %cst_206 {dimension_numbers = #tpu.dot_dimension_numbers<[1], [0], [0], [1], [0, 0, 1, 1], [], []>} : vector<2x64xf32>, vector<64x3xf32>, vector<2x3xf32> -> vector<2x3xf32>
    %c0_207 = arith.constant 0 : index
    %c0_208 = arith.constant 0 : index
    %437 = vector.load %arg20[%c0_207, %c0_208] : memref<1x3xf32, #tpu.memory_space<vmem>>, vector<1x3xf32>
    %438 = vector.broadcast %437 : vector<1x3xf32> to vector<2x3xf32>
    %439 = arith.addf %436, %438 : vector<2x3xf32>
    %c0_209 = arith.constant 0 : index
    %c0_210 = arith.constant 0 : index
    %440 = vector.load %arg21[%c0_209, %c0_210] : memref<2x3xf32, #tpu.memory_space<vmem>>, vector<2x3xf32>
    tpu.vector_store %arg21[%c0_209, %c0_210], %439 {strides = array<i32>} : memref<2x3xf32, #tpu.memory_space<vmem>>, vector<2x3xf32>,
    return
  }
  func.func @transform_0(%arg0: i32) -> (i32, i32) {
    %c0_i32 = arith.constant 0 : i32
    %c0_i32_0 = arith.constant 0 : i32
    %c0_i32_1 = arith.constant 0 : i32
    return %c0_i32, %c0_i32_0 : i32, i32
  }
  func.func @transform_1(%arg0: i32) -> (i32, i32) {
    %c0_i32 = arith.constant 0 : i32
    %c0_i32_0 = arith.constant 0 : i32
    %c0_i32_1 = arith.constant 0 : i32
    return %c0_i32, %c0_i32_0 : i32, i32
  }
  func.func @transform_2(%arg0: i32) -> (i32, i32) {
    %c0_i32 = arith.constant 0 : i32
    %c0_i32_0 = arith.constant 0 : i32
    %c0_i32_1 = arith.constant 0 : i32
    return %c0_i32, %c0_i32_0 : i32, i32
  }
  func.func @transform_3(%arg0: i32) -> (i32, i32) {
    %c0_i32 = arith.constant 0 : i32
    %c0_i32_0 = arith.constant 0 : i32
    %c0_i32_1 = arith.constant 0 : i32
    return %c0_i32, %c0_i32_0 : i32, i32
  }
  func.func @transform_4(%arg0: i32) -> (i32, i32, i32) {
    %c0_i32 = arith.constant 0 : i32
    %c0_i32_0 = arith.constant 0 : i32
    %c0_i32_1 = arith.constant 0 : i32
    %c0_i32_2 = arith.constant 0 : i32
    return %c0_i32, %c0_i32_0, %c0_i32_1 : i32, i32, i32
  }
  func.func @transform_5(%arg0: i32) -> (i32, i32, i32) {
    %c0_i32 = arith.constant 0 : i32
    %c0_i32_0 = arith.constant 0 : i32
    %c0_i32_1 = arith.constant 0 : i32
    %c0_i32_2 = arith.constant 0 : i32
    return %c0_i32, %c0_i32_0, %c0_i32_1 : i32, i32, i32
  }
  func.func @transform_6(%arg0: i32) -> (i32, i32, i32) {
    %c0_i32 = arith.constant 0 : i32
    %c0_i32_0 = arith.constant 0 : i32
    %c0_i32_1 = arith.constant 0 : i32
    %c0_i32_2 = arith.constant 0 : i32
    return %c0_i32, %c0_i32_0, %c0_i32_1 : i32, i32, i32
  }
  func.func @transform_7(%arg0: i32) -> (i32, i32, i32) {
    %c0_i32 = arith.constant 0 : i32
    %c0_i32_0 = arith.constant 0 : i32
    %c0_i32_1 = arith.constant 0 : i32
    %c0_i32_2 = arith.constant 0 : i32
    return %c0_i32, %c0_i32_0, %c0_i32_1 : i32, i32, i32
  }
  func.func @transform_8(%arg0: i32) -> (i32, i32, i32) {
    %c0_i32 = arith.constant 0 : i32
    %c0_i32_0 = arith.constant 0 : i32
    %c0_i32_1 = arith.constant 0 : i32
    %c0_i32_2 = arith.constant 0 : i32
    return %c0_i32, %c0_i32_0, %c0_i32_1 : i32, i32, i32
  }
  func.func @transform_9(%arg0: i32) -> (i32, i32, i32) {
    %c0_i32 = arith.constant 0 : i32
    %c0_i32_0 = arith.constant 0 : i32
    %c0_i32_1 = arith.constant 0 : i32
    %c0_i32_2 = arith.constant 0 : i32
    return %c0_i32, %c0_i32_0, %c0_i32_1 : i32, i32, i32
  }
  func.func @transform_10(%arg0: i32) -> (i32, i32, i32) {
    %c0_i32 = arith.constant 0 : i32
    %c0_i32_0 = arith.constant 0 : i32
    %c0_i32_1 = arith.constant 0 : i32
    %c0_i32_2 = arith.constant 0 : i32
    return %c0_i32, %c0_i32_0, %c0_i32_1 : i32, i32, i32
  }
  func.func @transform_11(%arg0: i32) -> (i32, i32, i32) {
    %c0_i32 = arith.constant 0 : i32
    %c0_i32_0 = arith.constant 0 : i32
    %c0_i32_1 = arith.constant 0 : i32
    %c0_i32_2 = arith.constant 0 : i32
    return %c0_i32, %c0_i32_0, %c0_i32_1 : i32, i32, i32
  }
  func.func @transform_12(%arg0: i32) -> (i32, i32, i32) {
    %c0_i32 = arith.constant 0 : i32
    %c0_i32_0 = arith.constant 0 : i32
    %c0_i32_1 = arith.constant 0 : i32
    %c0_i32_2 = arith.constant 0 : i32
    return %c0_i32, %c0_i32_0, %c0_i32_1 : i32, i32, i32
  }
  func.func @transform_13(%arg0: i32) -> (i32, i32, i32) {
    %c0_i32 = arith.constant 0 : i32
    %c0_i32_0 = arith.constant 0 : i32
    %c0_i32_1 = arith.constant 0 : i32
    %c0_i32_2 = arith.constant 0 : i32
    return %c0_i32, %c0_i32_0, %c0_i32_1 : i32, i32, i32
  }
  func.func @transform_14(%arg0: i32) -> (i32, i32, i32) {
    %c0_i32 = arith.constant 0 : i32
    %c0_i32_0 = arith.constant 0 : i32
    %c0_i32_1 = arith.constant 0 : i32
    %c0_i32_2 = arith.constant 0 : i32
    return %c0_i32, %c0_i32_0, %c0_i32_1 : i32, i32, i32
  }
  func.func @transform_15(%arg0: i32) -> (i32, i32, i32) {
    %c0_i32 = arith.constant 0 : i32
    %c0_i32_0 = arith.constant 0 : i32
    %c0_i32_1 = arith.constant 0 : i32
    %c0_i32_2 = arith.constant 0 : i32
    return %c0_i32, %c0_i32_0, %c0_i32_1 : i32, i32, i32
  }
  func.func @transform_16(%arg0: i32) -> (i32, i32) {
    %c0_i32 = arith.constant 0 : i32
    %c0_i32_0 = arith.constant 0 : i32
    %c0_i32_1 = arith.constant 0 : i32
    return %c0_i32, %c0_i32_0 : i32, i32
  }
  func.func @transform_17(%arg0: i32) -> (i32, i32) {
    %c0_i32 = arith.constant 0 : i32
    %c0_i32_0 = arith.constant 0 : i32
    %c0_i32_1 = arith.constant 0 : i32
    return %c0_i32, %c0_i32_0 : i32, i32
  }
  func.func @transform_18(%arg0: i32) -> (i32, i32) {
    %c0_i32 = arith.constant 0 : i32
    %c0_i32_0 = arith.constant 0 : i32
    %c0_i32_1 = arith.constant 0 : i32
    return %c0_i32, %c0_i32_0 : i32, i32
  }
  func.func @transform_19(%arg0: i32) -> (i32, i32) {
    %c0_i32 = arith.constant 0 : i32
    %c0_i32_0 = arith.constant 0 : i32
    %c0_i32_1 = arith.constant 0 : i32
    return %c0_i32, %c0_i32_0 : i32, i32
  }
  func.func @transform_20(%arg0: i32) -> (i32, i32) {
    %c0_i32 = arith.constant 0 : i32
    %c0_i32_0 = arith.constant 0 : i32
    %c0_i32_1 = arith.constant 0 : i32
    return %c0_i32, %c0_i32_0 : i32, i32
  }
}

</mosaic_0001>

<llo_original>
// kernel: _lambda_.1
$region0: #{_lambda_.1}
  #allocation0 [shape = 'u32[]', space=smem, size = 0x4, offset = 0x4, fixed_abs, tag = 'smem constant byte address 0x4 - core index']
  #allocation1 [shape = 'u32[144,128]{1,0:T(1,128)}', space=vmem, size = 0x12000, scoped, tag = 'internal scratch']
  #allocation2 [shape = 'f32[16,64]{1,0:T(8,128)}', space=vmem, size = 0x2000, scoped, tag = 'scratch operand']
  %s0 = inlined_call_operand.vmem [shape: f32[16,64], index: 0, kind: input, shape index: {}]
  %s1 = inlined_call_operand.vmem [shape: f32[16,16], index: 1, kind: input, shape index: {}]
  %s2 = inlined_call_operand.vmem [shape: f32[1,64], index: 2, kind: input, shape index: {}]
  %s3 = inlined_call_operand.vmem [shape: f32[1,64], index: 3, kind: input, shape index: {}]
  %s4 = inlined_call_operand.vmem [shape: f32[2,64,192], index: 4, kind: input, shape index: {}]
  %s5 = inlined_call_operand.vmem [shape: f32[2,1,192], index: 5, kind: input, shape index: {}]
  %s6 = inlined_call_operand.vmem [shape: f32[2,64,64], index: 6, kind: input, shape index: {}]
  %s7 = inlined_call_operand.vmem [shape: f32[2,1,64], index: 7, kind: input, shape index: {}]
  %s8 = inlined_call_operand.vmem [shape: f32[2,1,64], index: 8, kind: input, shape index: {}]
  %s9 = inlined_call_operand.vmem [shape: f32[2,1,64], index: 9, kind: input, shape index: {}]
  %s10 = inlined_call_operand.vmem [shape: f32[2,64,128], index: 10, kind: input, shape index: {}]
  %s11 = inlined_call_operand.vmem [shape: f32[2,1,128], index: 11, kind: input, shape index: {}]
  %s12 = inlined_call_operand.vmem [shape: f32[2,128,64], index: 12, kind: input, shape index: {}]
  %s13 = inlined_call_operand.vmem [shape: f32[2,1,64], index: 13, kind: input, shape index: {}]
  %s14 = inlined_call_operand.vmem [shape: f32[2,1,64], index: 14, kind: input, shape index: {}]
  %s15 = inlined_call_operand.vmem [shape: f32[2,1,64], index: 15, kind: input, shape index: {}]
  %s16 = inlined_call_operand.vmem [shape: f32[64,64], index: 16, kind: input, shape index: {}]
  %s17 = inlined_call_operand.vmem [shape: f32[1,64], index: 17, kind: input, shape index: {}]
  %s18 = inlined_call_operand.vmem [shape: f32[64,3], index: 18, kind: input, shape index: {}]
  %s19 = inlined_call_operand.vmem [shape: f32[1,3], index: 19, kind: input, shape index: {}]
  %s20 = inlined_call_operand.hbm [shape: f32[2,3], index: 20, kind: output, shape index: {}]
  %s21 = sld [smem:[#allocation0]]
  $region90: #{_lambda_.1} parent=0
    _
  %s23 = ssub.s32 1, %s21
  %s24 = scalar_select 0, %s23, %s21
  $region1: #{_lambda_.1} parent=0
    #allocation3 [shape = 'u8[1024]{0}', space=vmem, size = 0x400, scoped, tag = 'output window, operand 0, single buffered']
    #allocation4 [shape = 's32[1]{0}', space=sflag, size = 0x4, scoped, tag = 'scoped memory for _lambda_.1']
    %25 = vsyncpa [#allocation4], 0
    // Predicated region
    $region2: #{_lambda_.1} parent=1 // pred_check
      _
    $region3: #{_lambda_.1} parent=1 // pred_check_branch
      %27 = sbr.rel (0) target = $region5
    $region4: #{_lambda_.1} parent=1 // pred_region
      _
    $region5: #{_lambda_.1} parent=1 // pred_fallthru
      _
    // Predicated region
    $region6: #{_lambda_.1} parent=1 // pred_check
      _
    $region7: #{_lambda_.1} parent=1 // pred_check_branch
      %29 = sbr.rel (0) target = $region9
    $region8: #{_lambda_.1} parent=1 // pred_region
      _
    $region9: #{_lambda_.1} parent=1 // pred_fallthru
      _
    // Predicated region
    $region10: #{_lambda_.1} parent=1 // pred_check
      _
    $region11: #{_lambda_.1} parent=1 // pred_check_branch
      %31 = sbr.rel (0) target = $region13
    $region12: #{_lambda_.1} parent=1 // pred_region
      _
    $region13: #{_lambda_.1} parent=1 // pred_fallthru
      _
    // Predicated region
    $region14: #{_lambda_.1} parent=1 // pred_check
      _
    $region15: #{_lambda_.1} parent=1 // pred_check_branch
      %33 = sbr.rel (0) target = $region17
    $region16: #{_lambda_.1} parent=1 // pred_region
      _
    $region17: #{_lambda_.1} parent=1 // pred_fallthru
      _
    // Predicated region
    $region18: #{_lambda_.1} parent=1 // pred_check
      _
    $region19: #{_lambda_.1} parent=1 // pred_check_branch
      %35 = sbr.rel (0) target = $region21
    $region20: #{_lambda_.1} parent=1 // pred_region
      _
    $region21: #{_lambda_.1} parent=1 // pred_fallthru
      _
    // Predicated region
    $region22: #{_lambda_.1} parent=1 // pred_check
      _
    $region23: #{_lambda_.1} parent=1 // pred_check_branch
      %37 = sbr.rel (0) target = $region25
    $region24: #{_lambda_.1} parent=1 // pred_region
      _
    $region25: #{_lambda_.1} parent=1 // pred_fallthru
      _
    // Predicated region
    $region26: #{_lambda_.1} parent=1 // pred_check
      _
    $region27: #{_lambda_.1} parent=1 // pred_check_branch
      %39 = sbr.rel (0) target = $region29
    $region28: #{_lambda_.1} parent=1 // pred_region
      _
    $region29: #{_lambda_.1} parent=1 // pred_fallthru
      _
    // Predicated region
    $region30: #{_lambda_.1} parent=1 // pred_check
      _
    $region31: #{_lambda_.1} parent=1 // pred_check_branch
      %41 = sbr.rel (0) target = $region33
    $region32: #{_lambda_.1} parent=1 // pred_region
      _
    $region33: #{_lambda_.1} parent=1 // pred_fallthru
      _
    // Predicated region
    $region34: #{_lambda_.1} parent=1 // pred_check
      _
    $region35: #{_lambda_.1} parent=1 // pred_check_branch
      %43 = sbr.rel (0) target = $region37
    $region36: #{_lambda_.1} parent=1 // pred_region
      _
    $region37: #{_lambda_.1} parent=1 // pred_fallthru
      _
    // Predicated region
    $region38: #{_lambda_.1} parent=1 // pred_check
      _
    $region39: #{_lambda_.1} parent=1 // pred_check_branch
      %45 = sbr.rel (0) target = $region41
    $region40: #{_lambda_.1} parent=1 // pred_region
      _
    $region41: #{_lambda_.1} parent=1 // pred_fallthru
      _
    // Predicated region
    $region42: #{_lambda_.1} parent=1 // pred_check
      _
    $region43: #{_lambda_.1} parent=1 // pred_check_branch
      %47 = sbr.rel (0) target = $region45
    $region44: #{_lambda_.1} parent=1 // pred_region
      _
    $region45: #{_lambda_.1} parent=1 // pred_fallthru
      _
    // Predicated region
    $region46: #{_lambda_.1} parent=1 // pred_check
      _
    $region47: #{_lambda_.1} parent=1 // pred_check_branch
      %49 = sbr.rel (0) target = $region49
    $region48: #{_lambda_.1} parent=1 // pred_region
      _
    $region49: #{_lambda_.1} parent=1 // pred_fallthru
      _
    // Predicated region
    $region50: #{_lambda_.1} parent=1 // pred_check
      _
    $region51: #{_lambda_.1} parent=1 // pred_check_branch
      %51 = sbr.rel (0) target = $region53
    $region52: #{_lambda_.1} parent=1 // pred_region
      _
    $region53: #{_lambda_.1} parent=1 // pred_fallthru
      _
    // Predicated region
    $region54: #{_lambda_.1} parent=1 // pred_check
      _
    $region55: #{_lambda_.1} parent=1 // pred_check_branch
      %53 = sbr.rel (0) target = $region57
    $region56: #{_lambda_.1} parent=1 // pred_region
      _
    $region57: #{_lambda_.1} parent=1 // pred_fallthru
      _
    // Predicated region
    $region58: #{_lambda_.1} parent=1 // pred_check
      _
    $region59: #{_lambda_.1} parent=1 // pred_check_branch
      %55 = sbr.rel (0) target = $region61
    $region60: #{_lambda_.1} parent=1 // pred_region
      _
    $region61: #{_lambda_.1} parent=1 // pred_fallthru
      _
    // Predicated region
    $region62: #{_lambda_.1} parent=1 // pred_check
      _
    $region63: #{_lambda_.1} parent=1 // pred_check_branch
      %57 = sbr.rel (0) target = $region65
    $region64: #{_lambda_.1} parent=1 // pred_region
      _
    $region65: #{_lambda_.1} parent=1 // pred_fallthru
      _
    // Predicated region
    $region66: #{_lambda_.1} parent=1 // pred_check
      _
    $region67: #{_lambda_.1} parent=1 // pred_check_branch
      %59 = sbr.rel (0) target = $region69
    $region68: #{_lambda_.1} parent=1 // pred_region
      _
    $region69: #{_lambda_.1} parent=1 // pred_fallthru
      _
    // Predicated region
    $region70: #{_lambda_.1} parent=1 // pred_check
      _
    $region71: #{_lambda_.1} parent=1 // pred_check_branch
      %61 = sbr.rel (0) target = $region73
    $region72: #{_lambda_.1} parent=1 // pred_region
      _
    $region73: #{_lambda_.1} parent=1 // pred_fallthru
      _
    // Predicated region
    $region74: #{_lambda_.1} parent=1 // pred_check
      _
    $region75: #{_lambda_.1} parent=1 // pred_check_branch
      %63 = sbr.rel (0) target = $region77
    $region76: #{_lambda_.1} parent=1 // pred_region
      _
    $region77: #{_lambda_.1} parent=1 // pred_fallthru
      _
    // Predicated region
    $region78: #{_lambda_.1} parent=1 // pred_check
      _
    $region79: #{_lambda_.1} parent=1 // pred_check_branch
      %65 = sbr.rel (0) target = $region81
    $region80: #{_lambda_.1} parent=1 // pred_region
      _
    $region81: #{_lambda_.1} parent=1 // pred_fallthru
      _
    %v66 = vld [vmem:[%s0] sm:$0xff]
    %v67 = vld [vmem:[%s0 + $0x8] sm:$0xff]
    %v68 = vld [vmem:[%s2] sm:$0x1]
    %v69 = vld [vmem:[%s3] sm:$0x1]
    %vm70 = vcmask 523264
    %v71 = vsel %vm70, %v66, 0.0
    %72 = vadd.xlane.f32.xlu0 %v71
    %v73 = vpop.xlane.xlu0 %72
    %v74 = vsel %vm70, %v67, 0.0
    %75 = vadd.xlane.f32.xlu0 %v74
    %v76 = vpop.xlane.xlu0 %75
    %v77 = vrcp.pop 64.0
    %v78 = vmul.f32 %v73, %v77
    %v79 = vmul.f32 %v76, %v77
    %v80 = vsub.f32 %v66, %v78
    %v81 = vsub.f32 %v67, %v79
    %v82 = vmul.f32 %v80, %v80
    %v83 = vmul.f32 %v81, %v81
    %v84 = vsel %vm70, %v82, 0.0
    %85 = vadd.xlane.f32.xlu0 %v84
    %v86 = vpop.xlane.xlu0 %85
    %v87 = vsel %vm70, %v83, 0.0
    %88 = vadd.xlane.f32.xlu0 %v87
    %v89 = vpop.xlane.xlu0 %88
    %v90 = vmul.f32 %v86, %v77
    %v91 = vmul.f32 %v89, %v77
    %v92 = vadd.f32 %v90, 1e-05
    %v93 = vadd.f32 %v91, 1e-05
    %v94 = vrsqrt.pop %v92
    %v95 = vrsqrt.pop %v93
    %v96 = vmul.f32 %v80, %v94
    %v97 = vmul.f32 %v81, %v95
    %v99 = vlaneseq
    %v100 = vshrl.u32 %v99, 7
    %v101 = vsub.s32 0, %v100
    %v102 = vrot.slane %v68, %v101
    %v104 = vmul.f32 %v96, %v102
    %v105 = vmul.f32 %v97, %v102
    %v107 = vlaneseq
    %v108 = vshrl.u32 %v107, 7
    %v109 = vsub.s32 0, %v108
    %v110 = vrot.slane %v69, %v109
    %v112 = vadd.f32 %v104, %v110
    %v113 = vadd.f32 %v105, %v110
    %v114 = vld [vmem:[%s1] sm:$0xff]
    %v115 = vld [vmem:[%s1 + $0x8] sm:$0xff]
    %v116 = vld [vmem:[%s4] sm:$0xff]
    %v117 = vld [vmem:[%s4 + $0x8] sm:$0xff]
    %v118 = vld [vmem:[%s4 + $0x10] sm:$0xff]
    %v119 = vld [vmem:[%s4 + $0x18] sm:$0xff]
    %v120 = vld [vmem:[%s4 + $0x20] sm:$0xff]
    %v121 = vld [vmem:[%s4 + $0x28] sm:$0xff]
    %v122 = vld [vmem:[%s4 + $0x30] sm:$0xff]
    %v123 = vld [vmem:[%s4 + $0x38] sm:$0xff]
    %v124 = vld [vmem:[%s4 + $0x40] sm:$0xff]
    %v125 = vld [vmem:[%s4 + $0x48] sm:$0xff]
    %v126 = vld [vmem:[%s4 + $0x50] sm:$0xff]
    %v127 = vld [vmem:[%s4 + $0x58] sm:$0xff]
    %v128 = vld [vmem:[%s4 + $0x60] sm:$0xff]
    %v129 = vld [vmem:[%s4 + $0x68] sm:$0xff]
    %v130 = vld [vmem:[%s4 + $0x70] sm:$0xff]
    %v131 = vld [vmem:[%s4 + $0x78] sm:$0xff]
    %v132 = vld [vmem:[%s5] sm:$0x3]
    %v134 = vlaneseq
    %v135 = vshrl.u32 %v134, 7
    %v136 = vsub.s32 0, %v135
    %v137 = vrot.slane %v132, %v136
    %v138 = vlaneseq
    %v139 = vshrl.u32 %v138, 7
    %v140 = vsub.s32 1, %v139
    %v141 = vrot.slane %v132, %v140
    %v145 = vsel %vm70, %v112, 0
    %v148 = vsel %vm70, %v113, 0
    %150 = vmatprep.subr.mxu0 %v117
    %151 = vmatpush1.msra.mxu0 %v116
    %152 = vmatprep.subr.mxu0 %v119
    %153 = vmatpush1.msra.mxu0 %v118
    %154 = vmatprep.subr.mxu0 %v121
    %155 = vmatpush1.msra.mxu0 %v120
    %156 = vmatprep.subr.mxu0 %v123
    %157 = vmatpush1.msra.mxu0 %v122
    %158 = vmatprep.subr.mxu0 %v125
    %159 = vmatpush1.msra.mxu0 %v124
    %160 = vmatprep.subr.mxu0 %v127
    %161 = vmatpush1.msra.mxu0 %v126
    %162 = vmatprep.subr.mxu0 %v129
    %163 = vmatpush1.msra.mxu0 %v128
    %164 = vmatprep.subr.mxu0 %v131
    %165 = vmatpush1.msra.mxu0 %v130
    %166 = vmatprep.subr.mxu0 0.0
    %167 = vmatpush1.msra.mxu0 0.0
    %168 = vmatprep.subr.mxu0 0.0
    %169 = vmatpush1.msra.mxu0 0.0
    %170 = vmatprep.subr.mxu0 0.0
    %171 = vmatpush1.msra.mxu0 0.0
    %172 = vmatprep.subr.mxu0 0.0
    %173 = vmatpush1.msra.mxu0 0.0
    %174 = vmatprep.subr.mxu0 0.0
    %175 = vmatpush1.msra.mxu0 0.0
    %176 = vmatprep.subr.mxu0 0.0
    %177 = vmatpush1.msra.mxu0 0.0
    %178 = vmatprep.subr.mxu0 0.0
    %179 = vmatpush1.msra.mxu0 0.0
    %180 = vmatprep.subr.mxu0 0.0
    %181 = vmatpush1.msra.mxu0 0.0
    %182 = vmatprep.subr.mxu0 0.0
    %183 = vmatpush1.msra.mxu0 0.0
    %184 = vmatprep.subr.mxu0 0.0
    %185 = vmatpush1.msra.mxu0 0.0
    %186 = vmatprep.subr.mxu0 0.0
    %187 = vmatpush1.msra.mxu0 0.0
    %188 = vmatprep.subr.mxu0 0.0
    %189 = vmatpush1.msra.mxu0 0.0
    %190 = vmatprep.subr.mxu0 0.0
    %191 = vmatpush1.msra.mxu0 0.0
    %192 = vmatprep.subr.mxu0 0.0
    %193 = vmatpush1.msra.mxu0 0.0
    %194 = vmatprep.subr.mxu0 0.0
    %195 = vmatpush1.msra.mxu0 0.0
    %196 = vmatprep.subr.mxu0 0.0
    %197 = vmatpush1.msra.mxu0 0.0
    %198 = vmatprep.subr.mxu0 0.0
    %199 = vmatpush1.msra.mxu0 0.0
    %200 = vmatprep.subr.mxu0 0.0
    %201 = vmatpush1.msra.mxu0 0.0
    %202 = vmatprep.subr.mxu0 0.0
    %203 = vmatpush1.msra.mxu0 0.0
    %204 = vmatprep.subr.mxu0 0.0
    %205 = vmatpush1.msra.mxu0 0.0
    %206 = vmatprep.subr.mxu0 0.0
    %207 = vmatpush1.msra.mxu0 0.0
    %208 = vmatprep.subr.mxu0 0.0
    %209 = vmatpush1.msra.mxu0 0.0
    %210 = vmatprep.subr.mxu0 0.0
    %211 = vmatpush1.msra.mxu0 0.0
    %212 = vmatprep.subr.mxu0 0.0
    %213 = vmatpush1.msra.mxu0 0.0
    %214 = vmatprep.mubr.f32.mxu0 0.0
    %215 = vmatmul.mubr.f32.gmra.mrb[0].mxu0 %v145
    %v216 = vpop.f32.mrb[0].mxu0
    %v217 = vadd.f32 %v137, %v216
    %v218 = vpop.f32.mrb[0].mxu0
    %v219 = vadd.f32 %v141, %v218
    %220 = vmatprep.mubr.f32.mxu0 0.0
    %221 = vmatmul.mubr.f32.gmra.mrb[0].mxu0 %v148
    %v222 = vpop.f32.mrb[0].mxu0
    %v223 = vadd.f32 %v137, %v222
    %v224 = vpop.f32.mrb[0].mxu0
    %v225 = vadd.f32 %v141, %v224
    %226 = vdwg.mxu0
    %229 = vrot.lane.b32.xlu0 %v217, 64
    %v230 = vpop.permute.xlu0 %229
    %231 = vrot.lane.b32.xlu0 %v223, 64
    %v232 = vpop.permute.xlu0 %231
    %vm233 = vcmask 130048
    %v234 = vsel %vm233, %v217, 0
    %v236 = vsel %vm233, %v223, 0
    %v238 = vsel %vm233, %v230, 0
    %v240 = vsel %vm233, %v232, 0
    %242 = vmatprep.subr.mxu0 0.0
    %243 = vmatpush1.xpose.msra.mxu0 %v238
    %244 = vmatprep.subr.mxu0 0.0
    %245 = vmatpush1.xpose.msra.mxu0 %v240
    %246 = vmatprep.subr.mxu0 0.0
    %247 = vmatpush1.xpose.msra.mxu0 0.0
    %248 = vmatprep.subr.mxu0 0.0
    %249 = vmatpush1.xpose.msra.mxu0 0.0
    %250 = vmatprep.subr.mxu0 0.0
    %251 = vmatpush1.xpose.msra.mxu0 0.0
    %252 = vmatprep.subr.mxu0 0.0
    %253 = vmatpush1.xpose.msra.mxu0 0.0
    %254 = vmatprep.subr.mxu0 0.0
    %255 = vmatpush1.xpose.msra.mxu0 0.0
    %256 = vmatprep.subr.mxu0 0.0
    %257 = vmatpush1.xpose.msra.mxu0 0.0
    %258 = vmatprep.subr.mxu0 0.0
    %259 = vmatpush1.xpose.msra.mxu0 0.0
    %260 = vmatprep.subr.mxu0 0.0
    %261 = vmatpush1.xpose.msra.mxu0 0.0
    %262 = vmatprep.subr.mxu0 0.0
    %263 = vmatpush1.xpose.msra.mxu0 0.0
    %264 = vmatprep.subr.mxu0 0.0
    %265 = vmatpush1.xpose.msra.mxu0 0.0
    %266 = vmatprep.subr.mxu0 0.0
    %267 = vmatpush1.xpose.msra.mxu0 0.0
    %268 = vmatprep.subr.mxu0 0.0
    %269 = vmatpush1.xpose.msra.mxu0 0.0
    %270 = vmatprep.subr.mxu0 0.0
    %271 = vmatpush1.xpose.msra.mxu0 0.0
    %272 = vmatprep.subr.mxu0 0.0
    %273 = vmatpush1.xpose.msra.mxu0 0.0
    %274 = vmatprep.subr.mxu0 0.0
    %275 = vmatpush1.xpose.msra.mxu0 0.0
    %276 = vmatprep.subr.mxu0 0.0
    %277 = vmatpush1.xpose.msra.mxu0 0.0
    %278 = vmatprep.subr.mxu0 0.0
    %279 = vmatpush1.xpose.msra.mxu0 0.0
    %280 = vmatprep.subr.mxu0 0.0
    %281 = vmatpush1.xpose.msra.mxu0 0.0
    %282 = vmatprep.subr.mxu0 0.0
    %283 = vmatpush1.xpose.msra.mxu0 0.0
    %284 = vmatprep.subr.mxu0 0.0
    %285 = vmatpush1.xpose.msra.mxu0 0.0
    %286 = vmatprep.subr.mxu0 0.0
    %287 = vmatpush1.xpose.msra.mxu0 0.0
    %288 = vmatprep.subr.mxu0 0.0
    %289 = vmatpush1.xpose.msra.mxu0 0.0
    %290 = vmatprep.subr.mxu0 0.0
    %291 = vmatpush1.xpose.msra.mxu0 0.0
    %292 = vmatprep.subr.mxu0 0.0
    %293 = vmatpush1.xpose.msra.mxu0 0.0
    %294 = vmatprep.subr.mxu0 0.0
    %295 = vmatpush1.xpose.msra.mxu0 0.0
    %296 = vmatprep.subr.mxu0 0.0
    %297 = vmatpush1.xpose.msra.mxu0 0.0
    %298 = vmatprep.subr.mxu0 0.0
    %299 = vmatpush1.xpose.msra.mxu0 0.0
    %300 = vmatprep.subr.mxu0 0.0
    %301 = vmatpush1.xpose.msra.mxu0 0.0
    %302 = vmatprep.subr.mxu0 0.0
    %303 = vmatpush1.xpose.msra.mxu0 0.0
    %304 = vmatprep.subr.mxu0 0.0
    %305 = vmatpush1.xpose.msra.mxu0 0.0
    %306 = vmatprep.mubr.f32.mxu0 0.0
    %307 = vmatmul.mubr.f32.gmra.mrb[0].mxu0 %v234
    %v308 = vpop.f32.mrb[0].mxu0
    %v309 = vadd.f32 0.0, %v308
    %v310 = vpop.f32.mrb[0].mxu0
    %311 = vmatprep.mubr.f32.mxu0 0.0
    %312 = vmatmul.mubr.f32.gmra.mrb[0].mxu0 %v236
    %v313 = vpop.f32.mrb[0].mxu0
    %v314 = vadd.f32 0.0, %v313
    %v315 = vpop.f32.mrb[0].mxu0
    %316 = vdwg.mxu0
    %v317 = vmul.f32 %v309, 0.25
    %v318 = vmul.f32 %v314, 0.25
    %v319 = vadd.f32 %v317, %v114
    %v320 = vadd.f32 %v318, %v115
    %v321 = vsel %vm233, %v319, -inf
    %322 = vmax.xlane.f32.xlu0 %v321
    %v323 = vpop.xlane.xlu0 %322
    %v324 = vsel %vm233, %v320, -inf
    %325 = vmax.xlane.f32.xlu0 %v324
    %v326 = vpop.xlane.xlu0 %325
    %v327 = vsub.f32 %v319, %v323
    %v328 = vsub.f32 %v320, %v326
    %v329 = vmul.f32 %v327, 1.442695
    %v330 = vpow.pop %v329
    %v331 = vmul.f32 %v328, 1.442695
    %v332 = vpow.pop %v331
    %v333 = vsel %vm233, %v330, 0.0
    %334 = vadd.xlane.f32.xlu0 %v333
    %v335 = vpop.xlane.xlu0 %334
    %v336 = vsel %vm233, %v332, 0.0
    %337 = vadd.xlane.f32.xlu0 %v336
    %v338 = vpop.xlane.xlu0 %337
    %v339 = vrcp.pop %v335
    %v340 = vrcp.pop %v338
    %v341 = vmul.f32 %v330, %v339
    %v342 = vmul.f32 %v332, %v340
    %v344 = vsel %vm233, %v341, 0
    %v347 = vsel %vm233, %v342, 0
    %349 = vmatprep.subr.mxu0 0.0
    %350 = vmatpush1.msra.mxu0 %v219
    %351 = vmatprep.subr.mxu0 0.0
    %352 = vmatpush1.msra.mxu0 %v225
    %353 = vmatprep.subr.mxu0 0.0
    %354 = vmatpush1.msra.mxu0 0.0
    %355 = vmatprep.subr.mxu0 0.0
    %356 = vmatpush1.msra.mxu0 0.0
    %357 = vmatprep.subr.mxu0 0.0
    %358 = vmatpush1.msra.mxu0 0.0
    %359 = vmatprep.subr.mxu0 0.0
    %360 = vmatpush1.msra.mxu0 0.0
    %361 = vmatprep.subr.mxu0 0.0
    %362 = vmatpush1.msra.mxu0 0.0
    %363 = vmatprep.subr.mxu0 0.0
    %364 = vmatpush1.msra.mxu0 0.0
    %365 = vmatprep.subr.mxu0 0.0
    %366 = vmatpush1.msra.mxu0 0.0
    %367 = vmatprep.subr.mxu0 0.0
    %368 = vmatpush1.msra.mxu0 0.0
    %369 = vmatprep.subr.mxu0 0.0
    %370 = vmatpush1.msra.mxu0 0.0
    %371 = vmatprep.subr.mxu0 0.0
    %372 = vmatpush1.msra.mxu0 0.0
    %373 = vmatprep.subr.mxu0 0.0
    %374 = vmatpush1.msra.mxu0 0.0
    %375 = vmatprep.subr.mxu0 0.0
    %376 = vmatpush1.msra.mxu0 0.0
    %377 = vmatprep.subr.mxu0 0.0
    %378 = vmatpush1.msra.mxu0 0.0
    %379 = vmatprep.subr.mxu0 0.0
    %380 = vmatpush1.msra.mxu0 0.0
    %381 = vmatprep.subr.mxu0 0.0
    %382 = vmatpush1.msra.mxu0 0.0
    %383 = vmatprep.subr.mxu0 0.0
    %384 = vmatpush1.msra.mxu0 0.0
    %385 = vmatprep.subr.mxu0 0.0
    %386 = vmatpush1.msra.mxu0 0.0
    %387 = vmatprep.subr.mxu0 0.0
    %388 = vmatpush1.msra.mxu0 0.0
    %389 = vmatprep.subr.mxu0 0.0
    %390 = vmatpush1.msra.mxu0 0.0
    %391 = vmatprep.subr.mxu0 0.0
    %392 = vmatpush1.msra.mxu0 0.0
    %393 = vmatprep.subr.mxu0 0.0
    %394 = vmatpush1.msra.mxu0 0.0
    %395 = vmatprep.subr.mxu0 0.0
    %396 = vmatpush1.msra.mxu0 0.0
    %397 = vmatprep.subr.mxu0 0.0
    %398 = vmatpush1.msra.mxu0 0.0
    %399 = vmatprep.subr.mxu0 0.0
    %400 = vmatpush1.msra.mxu0 0.0
    %401 = vmatprep.subr.mxu0 0.0
    %402 = vmatpush1.msra.mxu0 0.0
    %403 = vmatprep.subr.mxu0 0.0
    %404 = vmatpush1.msra.mxu0 0.0
    %405 = vmatprep.subr.mxu0 0.0
    %406 = vmatpush1.msra.mxu0 0.0
    %407 = vmatprep.subr.mxu0 0.0
    %408 = vmatpush1.msra.mxu0 0.0
    %409 = vmatprep.subr.mxu0 0.0
    %410 = vmatpush1.msra.mxu0 0.0
    %411 = vmatprep.subr.mxu0 0.0
    %412 = vmatpush1.msra.mxu0 0.0
    %413 = vmatprep.mubr.f32.mxu0 0.0
    %414 = vmatmul.mubr.f32.gmra.mrb[0].mxu0 %v344
    %v415 = vpop.f32.mrb[0].mxu0
    %v416 = vadd.f32 0.0, %v415
    %v417 = vpop.f32.mrb[0].mxu0
    %418 = vmatprep.mubr.f32.mxu0 0.0
    %419 = vmatmul.mubr.f32.gmra.mrb[0].mxu0 %v347
    %v420 = vpop.f32.mrb[0].mxu0
    %v421 = vadd.f32 0.0, %v420
    %v422 = vpop.f32.mrb[0].mxu0
    %423 = vdwg.mxu0
    %424 = vst.msk [vmem:[#allocation2] sm:$0xff] %vm233, %v416
    %425 = vst.msk [vmem:[#allocation2 + $0x8] sm:$0xff] %vm233, %v421
    %426 = vrot.lane.b32.xlu0 %v217, 112
    %v427 = vpop.permute.xlu0 %426
    %428 = vrot.lane.b32.xlu0 %v223, 112
    %v429 = vpop.permute.xlu0 %428
    %430 = vrot.lane.b32.xlu0 %v217, 48
    %v431 = vpop.permute.xlu0 %430
    %432 = vrot.lane.b32.xlu0 %v223, 48
    %v433 = vpop.permute.xlu0 %432
    %v434 = vsel %vm233, %v427, 0
    %v436 = vsel %vm233, %v429, 0
    %v438 = vsel %vm233, %v431, 0
    %v440 = vsel %vm233, %v433, 0
    %442 = vmatprep.subr.mxu0 0.0
    %443 = vmatpush1.xpose.msra.mxu0 %v438
    %444 = vmatprep.subr.mxu0 0.0
    %445 = vmatpush1.xpose.msra.mxu0 %v440
    %446 = vmatprep.subr.mxu0 0.0
    %447 = vmatpush1.xpose.msra.mxu0 0.0
    %448 = vmatprep.subr.mxu0 0.0
    %449 = vmatpush1.xpose.msra.mxu0 0.0
    %450 = vmatprep.subr.mxu0 0.0
    %451 = vmatpush1.xpose.msra.mxu0 0.0
    %452 = vmatprep.subr.mxu0 0.0
    %453 = vmatpush1.xpose.msra.mxu0 0.0
    %454 = vmatprep.subr.mxu0 0.0
    %455 = vmatpush1.xpose.msra.mxu0 0.0
    %456 = vmatprep.subr.mxu0 0.0
    %457 = vmatpush1.xpose.msra.mxu0 0.0
    %458 = vmatprep.subr.mxu0 0.0
    %459 = vmatpush1.xpose.msra.mxu0 0.0
    %460 = vmatprep.subr.mxu0 0.0
    %461 = vmatpush1.xpose.msra.mxu0 0.0
    %462 = vmatprep.subr.mxu0 0.0
    %463 = vmatpush1.xpose.msra.mxu0 0.0
    %464 = vmatprep.subr.mxu0 0.0
    %465 = vmatpush1.xpose.msra.mxu0 0.0
    %466 = vmatprep.subr.mxu0 0.0
    %467 = vmatpush1.xpose.msra.mxu0 0.0
    %468 = vmatprep.subr.mxu0 0.0
    %469 = vmatpush1.xpose.msra.mxu0 0.0
    %470 = vmatprep.subr.mxu0 0.0
    %471 = vmatpush1.xpose.msra.mxu0 0.0
    %472 = vmatprep.subr.mxu0 0.0
    %473 = vmatpush1.xpose.msra.mxu0 0.0
    %474 = vmatprep.subr.mxu0 0.0
    %475 = vmatpush1.xpose.msra.mxu0 0.0
    %476 = vmatprep.subr.mxu0 0.0
    %477 = vmatpush1.xpose.msra.mxu0 0.0
    %478 = vmatprep.subr.mxu0 0.0
    %479 = vmatpush1.xpose.msra.mxu0 0.0
    %480 = vmatprep.subr.mxu0 0.0
    %481 = vmatpush1.xpose.msra.mxu0 0.0
    %482 = vmatprep.subr.mxu0 0.0
    %483 = vmatpush1.xpose.msra.mxu0 0.0
    %484 = vmatprep.subr.mxu0 0.0
    %485 = vmatpush1.xpose.msra.mxu0 0.0
    %486 = vmatprep.subr.mxu0 0.0
    %487 = vmatpush1.xpose.msra.mxu0 0.0
    %488 = vmatprep.subr.mxu0 0.0
    %489 = vmatpush1.xpose.msra.mxu0 0.0
    %490 = vmatprep.subr.mxu0 0.0
    %491 = vmatpush1.xpose.msra.mxu0 0.0
    %492 = vmatprep.subr.mxu0 0.0
    %493 = vmatpush1.xpose.msra.mxu0 0.0
    %494 = vmatprep.subr.mxu0 0.0
    %495 = vmatpush1.xpose.msra.mxu0 0.0
    %496 = vmatprep.subr.mxu0 0.0
    %497 = vmatpush1.xpose.msra.mxu0 0.0
    %498 = vmatprep.subr.mxu0 0.0
    %499 = vmatpush1.xpose.msra.mxu0 0.0
    %500 = vmatprep.subr.mxu0 0.0
    %501 = vmatpush1.xpose.msra.mxu0 0.0
    %502 = vmatprep.subr.mxu0 0.0
    %503 = vmatpush1.xpose.msra.mxu0 0.0
    %504 = vmatprep.subr.mxu0 0.0
    %505 = vmatpush1.xpose.msra.mxu0 0.0
    %506 = vmatprep.mubr.f32.mxu0 0.0
    %507 = vmatmul.mubr.f32.gmra.mrb[0].mxu0 %v434
    %v508 = vpop.f32.mrb[0].mxu0
    %v509 = vadd.f32 0.0, %v508
    %v510 = vpop.f32.mrb[0].mxu0
    %511 = vmatprep.mubr.f32.mxu0 0.0
    %512 = vmatmul.mubr.f32.gmra.mrb[0].mxu0 %v436
    %v513 = vpop.f32.mrb[0].mxu0
    %v514 = vadd.f32 0.0, %v513
    %v515 = vpop.f32.mrb[0].mxu0
    %516 = vdwg.mxu0
    %v517 = vmul.f32 %v509, 0.25
    %v518 = vmul.f32 %v514, 0.25
    %v519 = vadd.f32 %v517, %v114
    %v520 = vadd.f32 %v518, %v115
    %v521 = vsel %vm233, %v519, -inf
    %522 = vmax.xlane.f32.xlu0 %v521
    %v523 = vpop.xlane.xlu0 %522
    %v524 = vsel %vm233, %v520, -inf
    %525 = vmax.xlane.f32.xlu0 %v524
    %v526 = vpop.xlane.xlu0 %525
    %v527 = vsub.f32 %v519, %v523
    %v528 = vsub.f32 %v520, %v526
    %v529 = vmul.f32 %v527, 1.442695
    %v530 = vpow.pop %v529
    %v531 = vmul.f32 %v528, 1.442695
    %v532 = vpow.pop %v531
    %v533 = vsel %vm233, %v530, 0.0
    %534 = vadd.xlane.f32.xlu0 %v533
    %v535 = vpop.xlane.xlu0 %534
    %v536 = vsel %vm233, %v532, 0.0
    %537 = vadd.xlane.f32.xlu0 %v536
    %v538 = vpop.xlane.xlu0 %537
    %v539 = vrcp.pop %v535
    %v540 = vrcp.pop %v538
    %v541 = vmul.f32 %v530, %v539
    %v542 = vmul.f32 %v532, %v540
    %545 = vrot.lane.b32.xlu0 %v219, 112
    %v546 = vpop.permute.xlu0 %545
    %547 = vrot.lane.b32.xlu0 %v225, 112
    %v548 = vpop.permute.xlu0 %547
    %v552 = vsel %vm233, %v541, 0
    %v555 = vsel %vm233, %v542, 0
    %557 = vmatprep.subr.mxu0 0.0
    %558 = vmatpush1.msra.mxu0 %v546
    %559 = vmatprep.subr.mxu0 0.0
    %560 = vmatpush1.msra.mxu0 %v548
    %561 = vmatprep.subr.mxu0 0.0
    %562 = vmatpush1.msra.mxu0 0.0
    %563 = vmatprep.subr.mxu0 0.0
    %564 = vmatpush1.msra.mxu0 0.0
    %565 = vmatprep.subr.mxu0 0.0
    %566 = vmatpush1.msra.mxu0 0.0
    %567 = vmatprep.subr.mxu0 0.0
    %568 = vmatpush1.msra.mxu0 0.0
    %569 = vmatprep.subr.mxu0 0.0
    %570 = vmatpush1.msra.mxu0 0.0
    %571 = vmatprep.subr.mxu0 0.0
    %572 = vmatpush1.msra.mxu0 0.0
    %573 = vmatprep.subr.mxu0 0.0
    %574 = vmatpush1.msra.mxu0 0.0
    %575 = vmatprep.subr.mxu0 0.0
    %576 = vmatpush1.msra.mxu0 0.0
    %577 = vmatprep.subr.mxu0 0.0
    %578 = vmatpush1.msra.mxu0 0.0
    %579 = vmatprep.subr.mxu0 0.0
    %580 = vmatpush1.msra.mxu0 0.0
    %581 = vmatprep.subr.mxu0 0.0
    %582 = vmatpush1.msra.mxu0 0.0
    %583 = vmatprep.subr.mxu0 0.0
    %584 = vmatpush1.msra.mxu0 0.0
    %585 = vmatprep.subr.mxu0 0.0
    %586 = vmatpush1.msra.mxu0 0.0
    %587 = vmatprep.subr.mxu0 0.0
    %588 = vmatpush1.msra.mxu0 0.0
    %589 = vmatprep.subr.mxu0 0.0
    %590 = vmatpush1.msra.mxu0 0.0
    %591 = vmatprep.subr.mxu0 0.0
    %592 = vmatpush1.msra.mxu0 0.0
    %593 = vmatprep.subr.mxu0 0.0
    %594 = vmatpush1.msra.mxu0 0.0
    %595 = vmatprep.subr.mxu0 0.0
    %596 = vmatpush1.msra.mxu0 0.0
    %597 = vmatprep.subr.mxu0 0.0
    %598 = vmatpush1.msra.mxu0 0.0
    %599 = vmatprep.subr.mxu0 0.0
    %600 = vmatpush1.msra.mxu0 0.0
    %601 = vmatprep.subr.mxu0 0.0
    %602 = vmatpush1.msra.mxu0 0.0
    %603 = vmatprep.subr.mxu0 0.0
    %604 = vmatpush1.msra.mxu0 0.0
    %605 = vmatprep.subr.mxu0 0.0
    %606 = vmatpush1.msra.mxu0 0.0
    %607 = vmatprep.subr.mxu0 0.0
    %608 = vmatpush1.msra.mxu0 0.0
    %609 = vmatprep.subr.mxu0 0.0
    %610 = vmatpush1.msra.mxu0 0.0
    %611 = vmatprep.subr.mxu0 0.0
    %612 = vmatpush1.msra.mxu0 0.0
    %613 = vmatprep.subr.mxu0 0.0
    %614 = vmatpush1.msra.mxu0 0.0
    %615 = vmatprep.subr.mxu0 0.0
    %616 = vmatpush1.msra.mxu0 0.0
    %617 = vmatprep.subr.mxu0 0.0
    %618 = vmatpush1.msra.mxu0 0.0
    %619 = vmatprep.subr.mxu0 0.0
    %620 = vmatpush1.msra.mxu0 0.0
    %621 = vmatprep.mubr.f32.mxu0 0.0
    %622 = vmatmul.mubr.f32.gmra.mrb[0].mxu0 %v552
    %v623 = vpop.f32.mrb[0].mxu0
    %v624 = vadd.f32 0.0, %v623
    %v625 = vpop.f32.mrb[0].mxu0
    %626 = vmatprep.mubr.f32.mxu0 0.0
    %627 = vmatmul.mubr.f32.gmra.mrb[0].mxu0 %v555
    %v628 = vpop.f32.mrb[0].mxu0
    %v629 = vadd.f32 0.0, %v628
    %v630 = vpop.f32.mrb[0].mxu0
    %631 = vdwg.mxu0
    %634 = vrot.lane.b32.xlu0 %v624, 16
    %v635 = vpop.permute.xlu0 %634
    %636 = vrot.lane.b32.xlu0 %v629, 16
    %v637 = vpop.permute.xlu0 %636
    %vm640 = vcmask 261248
    %641 = vst.msk [vmem:[#allocation2] sm:$0xff] %vm640, %v635
    %642 = vst.msk [vmem:[#allocation2 + $0x8] sm:$0xff] %vm640, %v637
    %643 = vrot.lane.b32.xlu0 %v217, 96
    %v644 = vpop.permute.xlu0 %643
    %645 = vrot.lane.b32.xlu0 %v223, 96
    %v646 = vpop.permute.xlu0 %645
    %647 = vrot.lane.b32.xlu0 %v217, 32
    %v648 = vpop.permute.xlu0 %647
    %649 = vrot.lane.b32.xlu0 %v223, 32
    %v650 = vpop.permute.xlu0 %649
    %v651 = vsel %vm233, %v644, 0
    %v653 = vsel %vm233, %v646, 0
    %v655 = vsel %vm233, %v648, 0
    %v657 = vsel %vm233, %v650, 0
    %659 = vmatprep.subr.mxu0 0.0
    %660 = vmatpush1.xpose.msra.mxu0 %v655
    %661 = vmatprep.subr.mxu0 0.0
    %662 = vmatpush1.xpose.msra.mxu0 %v657
    %663 = vmatprep.subr.mxu0 0.0
    %664 = vmatpush1.xpose.msra.mxu0 0.0
    %665 = vmatprep.subr.mxu0 0.0
    %666 = vmatpush1.xpose.msra.mxu0 0.0
    %667 = vmatprep.subr.mxu0 0.0
    %668 = vmatpush1.xpose.msra.mxu0 0.0
    %669 = vmatprep.subr.mxu0 0.0
    %670 = vmatpush1.xpose.msra.mxu0 0.0
    %671 = vmatprep.subr.mxu0 0.0
    %672 = vmatpush1.xpose.msra.mxu0 0.0
    %673 = vmatprep.subr.mxu0 0.0
    %674 = vmatpush1.xpose.msra.mxu0 0.0
    %675 = vmatprep.subr.mxu0 0.0
    %676 = vmatpush1.xpose.msra.mxu0 0.0
    %677 = vmatprep.subr.mxu0 0.0
    %678 = vmatpush1.xpose.msra.mxu0 0.0
    %679 = vmatprep.subr.mxu0 0.0
    %680 = vmatpush1.xpose.msra.mxu0 0.0
    %681 = vmatprep.subr.mxu0 0.0
    %682 = vmatpush1.xpose.msra.mxu0 0.0
    %683 = vmatprep.subr.mxu0 0.0
    %684 = vmatpush1.xpose.msra.mxu0 0.0
    %685 = vmatprep.subr.mxu0 0.0
    %686 = vmatpush1.xpose.msra.mxu0 0.0
    %687 = vmatprep.subr.mxu0 0.0
    %688 = vmatpush1.xpose.msra.mxu0 0.0
    %689 = vmatprep.subr.mxu0 0.0
    %690 = vmatpush1.xpose.msra.mxu0 0.0
    %691 = vmatprep.subr.mxu0 0.0
    %692 = vmatpush1.xpose.msra.mxu0 0.0
    %693 = vmatprep.subr.mxu0 0.0
    %694 = vmatpush1.xpose.msra.mxu0 0.0
    %695 = vmatprep.subr.mxu0 0.0
    %696 = vmatpush1.xpose.msra.mxu0 0.0
    %697 = vmatprep.subr.mxu0 0.0
    %698 = vmatpush1.xpose.msra.mxu0 0.0
    %699 = vmatprep.subr.mxu0 0.0
    %700 = vmatpush1.xpose.msra.mxu0 0.0
    %701 = vmatprep.subr.mxu0 0.0
    %702 = vmatpush1.xpose.msra.mxu0 0.0
    %703 = vmatprep.subr.mxu0 0.0
    %704 = vmatpush1.xpose.msra.mxu0 0.0
    %705 = vmatprep.subr.mxu0 0.0
    %706 = vmatpush1.xpose.msra.mxu0 0.0
    %707 = vmatprep.subr.mxu0 0.0
    %708 = vmatpush1.xpose.msra.mxu0 0.0
    %709 = vmatprep.subr.mxu0 0.0
    %710 = vmatpush1.xpose.msra.mxu0 0.0
    %711 = vmatprep.subr.mxu0 0.0
    %712 = vmatpush1.xpose.msra.mxu0 0.0
    %713 = vmatprep.subr.mxu0 0.0
    %714 = vmatpush1.xpose.msra.mxu0 0.0
    %715 = vmatprep.subr.mxu0 0.0
    %716 = vmatpush1.xpose.msra.mxu0 0.0
    %717 = vmatprep.subr.mxu0 0.0
    %718 = vmatpush1.xpose.msra.mxu0 0.0
    %719 = vmatprep.subr.mxu0 0.0
    %720 = vmatpush1.xpose.msra.mxu0 0.0
    %721 = vmatprep.subr.mxu0 0.0
    %722 = vmatpush1.xpose.msra.mxu0 0.0
    %723 = vmatprep.mubr.f32.mxu0 0.0
    %724 = vmatmul.mubr.f32.gmra.mrb[0].mxu0 %v651
    %v725 = vpop.f32.mrb[0].mxu0
    %v726 = vadd.f32 0.0, %v725
    %v727 = vpop.f32.mrb[0].mxu0
    %728 = vmatprep.mubr.f32.mxu0 0.0
    %729 = vmatmul.mubr.f32.gmra.mrb[0].mxu0 %v653
    %v730 = vpop.f32.mrb[0].mxu0
    %v731 = vadd.f32 0.0, %v730
    %v732 = vpop.f32.mrb[0].mxu0
    %733 = vdwg.mxu0
    %v734 = vmul.f32 %v726, 0.25
    %v735 = vmul.f32 %v731, 0.25
    %v736 = vadd.f32 %v734, %v114
    %v737 = vadd.f32 %v735, %v115
    %v738 = vsel %vm233, %v736, -inf
    %739 = vmax.xlane.f32.xlu0 %v738
    %v740 = vpop.xlane.xlu0 %739
    %v741 = vsel %vm233, %v737, -inf
    %742 = vmax.xlane.f32.xlu0 %v741
    %v743 = vpop.xlane.xlu0 %742
    %v744 = vsub.f32 %v736, %v740
    %v745 = vsub.f32 %v737, %v743
    %v746 = vmul.f32 %v744, 1.442695
    %v747 = vpow.pop %v746
    %v748 = vmul.f32 %v745, 1.442695
    %v749 = vpow.pop %v748
    %v750 = vsel %vm233, %v747, 0.0
    %751 = vadd.xlane.f32.xlu0 %v750
    %v752 = vpop.xlane.xlu0 %751
    %v753 = vsel %vm233, %v749, 0.0
    %754 = vadd.xlane.f32.xlu0 %v753
    %v755 = vpop.xlane.xlu0 %754
    %v756 = vrcp.pop %v752
    %v757 = vrcp.pop %v755
    %v758 = vmul.f32 %v747, %v756
    %v759 = vmul.f32 %v749, %v757
    %760 = vrot.lane.b32.xlu0 %v219, 96
    %v761 = vpop.permute.xlu0 %760
    %762 = vrot.lane.b32.xlu0 %v225, 96
    %v763 = vpop.permute.xlu0 %762
    %v767 = vsel %vm233, %v758, 0
    %v770 = vsel %vm233, %v759, 0
    %772 = vmatprep.subr.mxu0 0.0
    %773 = vmatpush1.msra.mxu0 %v761
    %774 = vmatprep.subr.mxu0 0.0
    %775 = vmatpush1.msra.mxu0 %v763
    %776 = vmatprep.subr.mxu0 0.0
    %777 = vmatpush1.msra.mxu0 0.0
    %778 = vmatprep.subr.mxu0 0.0
    %779 = vmatpush1.msra.mxu0 0.0
    %780 = vmatprep.subr.mxu0 0.0
    %781 = vmatpush1.msra.mxu0 0.0
    %782 = vmatprep.subr.mxu0 0.0
    %783 = vmatpush1.msra.mxu0 0.0
    %784 = vmatprep.subr.mxu0 0.0
    %785 = vmatpush1.msra.mxu0 0.0
    %786 = vmatprep.subr.mxu0 0.0
    %787 = vmatpush1.msra.mxu0 0.0
    %788 = vmatprep.subr.mxu0 0.0
    %789 = vmatpush1.msra.mxu0 0.0
    %790 = vmatprep.subr.mxu0 0.0
    %791 = vmatpush1.msra.mxu0 0.0
    %792 = vmatprep.subr.mxu0 0.0
    %793 = vmatpush1.msra.mxu0 0.0
    %794 = vmatprep.subr.mxu0 0.0
    %795 = vmatpush1.msra.mxu0 0.0
    %796 = vmatprep.subr.mxu0 0.0
    %797 = vmatpush1.msra.mxu0 0.0
    %798 = vmatprep.subr.mxu0 0.0
    %799 = vmatpush1.msra.mxu0 0.0
    %800 = vmatprep.subr.mxu0 0.0
    %801 = vmatpush1.msra.mxu0 0.0
    %802 = vmatprep.subr.mxu0 0.0
    %803 = vmatpush1.msra.mxu0 0.0
    %804 = vmatprep.subr.mxu0 0.0
    %805 = vmatpush1.msra.mxu0 0.0
    %806 = vmatprep.subr.mxu0 0.0
    %807 = vmatpush1.msra.mxu0 0.0
    %808 = vmatprep.subr.mxu0 0.0
    %809 = vmatpush1.msra.mxu0 0.0
    %810 = vmatprep.subr.mxu0 0.0
    %811 = vmatpush1.msra.mxu0 0.0
    %812 = vmatprep.subr.mxu0 0.0
    %813 = vmatpush1.msra.mxu0 0.0
    %814 = vmatprep.subr.mxu0 0.0
    %815 = vmatpush1.msra.mxu0 0.0
    %816 = vmatprep.subr.mxu0 0.0
    %817 = vmatpush1.msra.mxu0 0.0
    %818 = vmatprep.subr.mxu0 0.0
    %819 = vmatpush1.msra.mxu0 0.0
    %820 = vmatprep.subr.mxu0 0.0
    %821 = vmatpush1.msra.mxu0 0.0
    %822 = vmatprep.subr.mxu0 0.0
    %823 = vmatpush1.msra.mxu0 0.0
    %824 = vmatprep.subr.mxu0 0.0
    %825 = vmatpush1.msra.mxu0 0.0
    %826 = vmatprep.subr.mxu0 0.0
    %827 = vmatpush1.msra.mxu0 0.0
    %828 = vmatprep.subr.mxu0 0.0
    %829 = vmatpush1.msra.mxu0 0.0
    %830 = vmatprep.subr.mxu0 0.0
    %831 = vmatpush1.msra.mxu0 0.0
    %832 = vmatprep.subr.mxu0 0.0
    %833 = vmatpush1.msra.mxu0 0.0
    %834 = vmatprep.subr.mxu0 0.0
    %835 = vmatpush1.msra.mxu0 0.0
    %836 = vmatprep.mubr.f32.mxu0 0.0
    %837 = vmatmul.mubr.f32.gmra.mrb[0].mxu0 %v767
    %v838 = vpop.f32.mrb[0].mxu0
    %v839 = vadd.f32 0.0, %v838
    %v840 = vpop.f32.mrb[0].mxu0
    %841 = vmatprep.mubr.f32.mxu0 0.0
    %842 = vmatmul.mubr.f32.gmra.mrb[0].mxu0 %v770
    %v843 = vpop.f32.mrb[0].mxu0
    %v844 = vadd.f32 0.0, %v843
    %v845 = vpop.f32.mrb[0].mxu0
    %846 = vdwg.mxu0
    %849 = vrot.lane.b32.xlu0 %v839, 32
    %v850 = vpop.permute.xlu0 %849
    %851 = vrot.lane.b32.xlu0 %v844, 32
    %v852 = vpop.permute.xlu0 %851
    %vm855 = vcmask 392448
    %856 = vst.msk [vmem:[#allocation2] sm:$0xff] %vm855, %v850
    %857 = vst.msk [vmem:[#allocation2 + $0x8] sm:$0xff] %vm855, %v852
    %858 = vrot.lane.b32.xlu0 %v217, 80
    %v859 = vpop.permute.xlu0 %858
    %860 = vrot.lane.b32.xlu0 %v223, 80
    %v861 = vpop.permute.xlu0 %860
    %862 = vrot.lane.b32.xlu0 %v217, 16
    %v863 = vpop.permute.xlu0 %862
    %864 = vrot.lane.b32.xlu0 %v223, 16
    %v865 = vpop.permute.xlu0 %864
    %v866 = vsel %vm233, %v859, 0
    %v868 = vsel %vm233, %v861, 0
    %v870 = vsel %vm233, %v863, 0
    %v872 = vsel %vm233, %v865, 0
    %874 = vmatprep.subr.mxu0 0.0
    %875 = vmatpush1.xpose.msra.mxu0 %v870
    %876 = vmatprep.subr.mxu0 0.0
    %877 = vmatpush1.xpose.msra.mxu0 %v872
    %878 = vmatprep.subr.mxu0 0.0
    %879 = vmatpush1.xpose.msra.mxu0 0.0
    %880 = vmatprep.subr.mxu0 0.0
    %881 = vmatpush1.xpose.msra.mxu0 0.0
    %882 = vmatprep.subr.mxu0 0.0
    %883 = vmatpush1.xpose.msra.mxu0 0.0
    %884 = vmatprep.subr.mxu0 0.0
    %885 = vmatpush1.xpose.msra.mxu0 0.0
    %886 = vmatprep.subr.mxu0 0.0
    %887 = vmatpush1.xpose.msra.mxu0 0.0
    %888 = vmatprep.subr.mxu0 0.0
    %889 = vmatpush1.xpose.msra.mxu0 0.0
    %890 = vmatprep.subr.mxu0 0.0
    %891 = vmatpush1.xpose.msra.mxu0 0.0
    %892 = vmatprep.subr.mxu0 0.0
    %893 = vmatpush1.xpose.msra.mxu0 0.0
    %894 = vmatprep.subr.mxu0 0.0
    %895 = vmatpush1.xpose.msra.mxu0 0.0
    %896 = vmatprep.subr.mxu0 0.0
    %897 = vmatpush1.xpose.msra.mxu0 0.0
    %898 = vmatprep.subr.mxu0 0.0
    %899 = vmatpush1.xpose.msra.mxu0 0.0
    %900 = vmatprep.subr.mxu0 0.0
    %901 = vmatpush1.xpose.msra.mxu0 0.0
    %902 = vmatprep.subr.mxu0 0.0
    %903 = vmatpush1.xpose.msra.mxu0 0.0
    %904 = vmatprep.subr.mxu0 0.0
    %905 = vmatpush1.xpose.msra.mxu0 0.0
    %906 = vmatprep.subr.mxu0 0.0
    %907 = vmatpush1.xpose.msra.mxu0 0.0
    %908 = vmatprep.subr.mxu0 0.0
    %909 = vmatpush1.xpose.msra.mxu0 0.0
    %910 = vmatprep.subr.mxu0 0.0
    %911 = vmatpush1.xpose.msra.mxu0 0.0
    %912 = vmatprep.subr.mxu0 0.0
    %913 = vmatpush1.xpose.msra.mxu0 0.0
    %914 = vmatprep.subr.mxu0 0.0
    %915 = vmatpush1.xpose.msra.mxu0 0.0
    %916 = vmatprep.subr.mxu0 0.0
    %917 = vmatpush1.xpose.msra.mxu0 0.0
    %918 = vmatprep.subr.mxu0 0.0
    %919 = vmatpush1.xpose.msra.mxu0 0.0
    %920 = vmatprep.subr.mxu0 0.0
    %921 = vmatpush1.xpose.msra.mxu0 0.0
    %922 = vmatprep.subr.mxu0 0.0
    %923 = vmatpush1.xpose.msra.mxu0 0.0
    %924 = vmatprep.subr.mxu0 0.0
    %925 = vmatpush1.xpose.msra.mxu0 0.0
    %926 = vmatprep.subr.mxu0 0.0
    %927 = vmatpush1.xpose.msra.mxu0 0.0
    %928 = vmatprep.subr.mxu0 0.0
    %929 = vmatpush1.xpose.msra.mxu0 0.0
    %930 = vmatprep.subr.mxu0 0.0
    %931 = vmatpush1.xpose.msra.mxu0 0.0
    %932 = vmatprep.subr.mxu0 0.0
    %933 = vmatpush1.xpose.msra.mxu0 0.0
    %934 = vmatprep.subr.mxu0 0.0
    %935 = vmatpush1.xpose.msra.mxu0 0.0
    %936 = vmatprep.subr.mxu0 0.0
    %937 = vmatpush1.xpose.msra.mxu0 0.0
    %938 = vmatprep.mubr.f32.mxu0 0.0
    %939 = vmatmul.mubr.f32.gmra.mrb[0].mxu0 %v866
    %v940 = vpop.f32.mrb[0].mxu0
    %v941 = vadd.f32 0.0, %v940
    %v942 = vpop.f32.mrb[0].mxu0
    %943 = vmatprep.mubr.f32.mxu0 0.0
    %944 = vmatmul.mubr.f32.gmra.mrb[0].mxu0 %v868
    %v945 = vpop.f32.mrb[0].mxu0
    %v946 = vadd.f32 0.0, %v945
    %v947 = vpop.f32.mrb[0].mxu0
    %948 = vdwg.mxu0
    %v949 = vmul.f32 %v941, 0.25
    %v950 = vmul.f32 %v946, 0.25
    %v951 = vadd.f32 %v949, %v114
    %v952 = vadd.f32 %v950, %v115
    %v953 = vsel %vm233, %v951, -inf
    %954 = vmax.xlane.f32.xlu0 %v953
    %v955 = vpop.xlane.xlu0 %954
    %v956 = vsel %vm233, %v952, -inf
    %957 = vmax.xlane.f32.xlu0 %v956
    %v958 = vpop.xlane.xlu0 %957
    %v959 = vsub.f32 %v951, %v955
    %v960 = vsub.f32 %v952, %v958
    %v961 = vmul.f32 %v959, 1.442695
    %v962 = vpow.pop %v961
    %v963 = vmul.f32 %v960, 1.442695
    %v964 = vpow.pop %v963
    %v965 = vsel %vm233, %v962, 0.0
    %966 = vadd.xlane.f32.xlu0 %v965
    %v967 = vpop.xlane.xlu0 %966
    %v968 = vsel %vm233, %v964, 0.0
    %969 = vadd.xlane.f32.xlu0 %v968
    %v970 = vpop.xlane.xlu0 %969
    %v971 = vrcp.pop %v967
    %v972 = vrcp.pop %v970
    %v973 = vmul.f32 %v962, %v971
    %v974 = vmul.f32 %v964, %v972
    %975 = vrot.lane.b32.xlu0 %v219, 80
    %v976 = vpop.permute.xlu0 %975
    %977 = vrot.lane.b32.xlu0 %v225, 80
    %v978 = vpop.permute.xlu0 %977
    %v982 = vsel %vm233, %v973, 0
    %v985 = vsel %vm233, %v974, 0
    %987 = vmatprep.subr.mxu0 0.0
    %988 = vmatpush1.msra.mxu0 %v976
    %989 = vmatprep.subr.mxu0 0.0
    %990 = vmatpush1.msra.mxu0 %v978
    %991 = vmatprep.subr.mxu0 0.0
    %992 = vmatpush1.msra.mxu0 0.0
    %993 = vmatprep.subr.mxu0 0.0
    %994 = vmatpush1.msra.mxu0 0.0
    %995 = vmatprep.subr.mxu0 0.0
    %996 = vmatpush1.msra.mxu0 0.0
    %997 = vmatprep.subr.mxu0 0.0
    %998 = vmatpush1.msra.mxu0 0.0
    %999 = vmatprep.subr.mxu0 0.0
    %1000 = vmatpush1.msra.mxu0 0.0
    %1001 = vmatprep.subr.mxu0 0.0
    %1002 = vmatpush1.msra.mxu0 0.0
    %1003 = vmatprep.subr.mxu0 0.0
    %1004 = vmatpush1.msra.mxu0 0.0
    %1005 = vmatprep.subr.mxu0 0.0
    %1006 = vmatpush1.msra.mxu0 0.0
    %1007 = vmatprep.subr.mxu0 0.0
    %1008 = vmatpush1.msra.mxu0 0.0
    %1009 = vmatprep.subr.mxu0 0.0
    %1010 = vmatpush1.msra.mxu0 0.0
    %1011 = vmatprep.subr.mxu0 0.0
    %1012 = vmatpush1.msra.mxu0 0.0
    %1013 = vmatprep.subr.mxu0 0.0
    %1014 = vmatpush1.msra.mxu0 0.0
    %1015 = vmatprep.subr.mxu0 0.0
    %1016 = vmatpush1.msra.mxu0 0.0
    %1017 = vmatprep.subr.mxu0 0.0
    %1018 = vmatpush1.msra.mxu0 0.0
    %1019 = vmatprep.subr.mxu0 0.0
    %1020 = vmatpush1.msra.mxu0 0.0
    %1021 = vmatprep.subr.mxu0 0.0
    %1022 = vmatpush1.msra.mxu0 0.0
    %1023 = vmatprep.subr.mxu0 0.0
    %1024 = vmatpush1.msra.mxu0 0.0
    %1025 = vmatprep.subr.mxu0 0.0
    %1026 = vmatpush1.msra.mxu0 0.0
    %1027 = vmatprep.subr.mxu0 0.0
    %1028 = vmatpush1.msra.mxu0 0.0
    %1029 = vmatprep.subr.mxu0 0.0
    %1030 = vmatpush1.msra.mxu0 0.0
    %1031 = vmatprep.subr.mxu0 0.0
    %1032 = vmatpush1.msra.mxu0 0.0
    %1033 = vmatprep.subr.mxu0 0.0
    %1034 = vmatpush1.msra.mxu0 0.0
    %1035 = vmatprep.subr.mxu0 0.0
    %1036 = vmatpush1.msra.mxu0 0.0
    %1037 = vmatprep.subr.mxu0 0.0
    %1038 = vmatpush1.msra.mxu0 0.0
    %1039 = vmatprep.subr.mxu0 0.0
    %1040 = vmatpush1.msra.mxu0 0.0
    %1041 = vmatprep.subr.mxu0 0.0
    %1042 = vmatpush1.msra.mxu0 0.0
    %1043 = vmatprep.subr.mxu0 0.0
    %1044 = vmatpush1.msra.mxu0 0.0
    %1045 = vmatprep.subr.mxu0 0.0
    %1046 = vmatpush1.msra.mxu0 0.0
    %1047 = vmatprep.subr.mxu0 0.0
    %1048 = vmatpush1.msra.mxu0 0.0
    %1049 = vmatprep.subr.mxu0 0.0
    %1050 = vmatpush1.msra.mxu0 0.0
    %1051 = vmatprep.mubr.f32.mxu0 0.0
    %1052 = vmatmul.mubr.f32.gmra.mrb[0].mxu0 %v982
    %v1053 = vpop.f32.mrb[0].mxu0
    %v1054 = vadd.f32 0.0, %v1053
    %v1055 = vpop.f32.mrb[0].mxu0
    %1056 = vmatprep.mubr.f32.mxu0 0.0
    %1057 = vmatmul.mubr.f32.gmra.mrb[0].mxu0 %v985
    %v1058 = vpop.f32.mrb[0].mxu0
    %v1059 = vadd.f32 0.0, %v1058
    %v1060 = vpop.f32.mrb[0].mxu0
    %1061 = vdwg.mxu0
    %1064 = vrot.lane.b32.xlu0 %v1054, 48
    %v1065 = vpop.permute.xlu0 %1064
    %1066 = vrot.lane.b32.xlu0 %v1059, 48
    %v1067 = vpop.permute.xlu0 %1066
    %vm1070 = vcmask 523648
    %1071 = vst.msk [vmem:[#allocation2] sm:$0xff] %vm1070, %v1065
    %1072 = vst.msk [vmem:[#allocation2 + $0x8] sm:$0xff] %vm1070, %v1067
    %v1073 = vld [vmem:[#allocation2] sm:$0xff]
    %v1074 = vld [vmem:[#allocation2 + $0x8] sm:$0xff]
    %v1075 = vld [vmem:[%s6] sm:$0xff]
    %v1076 = vld [vmem:[%s6 + $0x8] sm:$0xff]
    %v1077 = vld [vmem:[%s6 + $0x10] sm:$0xff]
    %v1078 = vld [vmem:[%s6 + $0x18] sm:$0xff]
    %v1079 = vld [vmem:[%s6 + $0x20] sm:$0xff]
    %v1080 = vld [vmem:[%s6 + $0x28] sm:$0xff]
    %v1081 = vld [vmem:[%s6 + $0x30] sm:$0xff]
    %v1082 = vld [vmem:[%s6 + $0x38] sm:$0xff]
    %v1083 = vld [vmem:[%s7] sm:$0x1]
    %v1085 = vlaneseq
    %v1086 = vshrl.u32 %v1085, 7
    %v1087 = vsub.s32 0, %v1086
    %v1088 = vrot.slane %v1083, %v1087
    %v1091 = vsel %vm70, %v1073, 0
    %v1094 = vsel %vm70, %v1074, 0
    %1096 = vmatprep.subr.mxu0 0.0
    %1097 = vmatpush1.msra.mxu0 %v1075
    %1098 = vmatprep.subr.mxu0 0.0
    %1099 = vmatpush1.msra.mxu0 %v1076
    %1100 = vmatprep.subr.mxu0 0.0
    %1101 = vmatpush1.msra.mxu0 %v1077
    %1102 = vmatprep.subr.mxu0 0.0
    %1103 = vmatpush1.msra.mxu0 %v1078
    %1104 = vmatprep.subr.mxu0 0.0
    %1105 = vmatpush1.msra.mxu0 %v1079
    %1106 = vmatprep.subr.mxu0 0.0
    %1107 = vmatpush1.msra.mxu0 %v1080
    %1108 = vmatprep.subr.mxu0 0.0
    %1109 = vmatpush1.msra.mxu0 %v1081
    %1110 = vmatprep.subr.mxu0 0.0
    %1111 = vmatpush1.msra.mxu0 %v1082
    %1112 = vmatprep.subr.mxu0 0.0
    %1113 = vmatpush1.msra.mxu0 0.0
    %1114 = vmatprep.subr.mxu0 0.0
    %1115 = vmatpush1.msra.mxu0 0.0
    %1116 = vmatprep.subr.mxu0 0.0
    %1117 = vmatpush1.msra.mxu0 0.0
    %1118 = vmatprep.subr.mxu0 0.0
    %1119 = vmatpush1.msra.mxu0 0.0
    %1120 = vmatprep.subr.mxu0 0.0
    %1121 = vmatpush1.msra.mxu0 0.0
    %1122 = vmatprep.subr.mxu0 0.0
    %1123 = vmatpush1.msra.mxu0 0.0
    %1124 = vmatprep.subr.mxu0 0.0
    %1125 = vmatpush1.msra.mxu0 0.0
    %1126 = vmatprep.subr.mxu0 0.0
    %1127 = vmatpush1.msra.mxu0 0.0
    %1128 = vmatprep.subr.mxu0 0.0
    %1129 = vmatpush1.msra.mxu0 0.0
    %1130 = vmatprep.subr.mxu0 0.0
    %1131 = vmatpush1.msra.mxu0 0.0
    %1132 = vmatprep.subr.mxu0 0.0
    %1133 = vmatpush1.msra.mxu0 0.0
    %1134 = vmatprep.subr.mxu0 0.0
    %1135 = vmatpush1.msra.mxu0 0.0
    %1136 = vmatprep.subr.mxu0 0.0
    %1137 = vmatpush1.msra.mxu0 0.0
    %1138 = vmatprep.subr.mxu0 0.0
    %1139 = vmatpush1.msra.mxu0 0.0
    %1140 = vmatprep.subr.mxu0 0.0
    %1141 = vmatpush1.msra.mxu0 0.0
    %1142 = vmatprep.subr.mxu0 0.0
    %1143 = vmatpush1.msra.mxu0 0.0
    %1144 = vmatprep.subr.mxu0 0.0
    %1145 = vmatpush1.msra.mxu0 0.0
    %1146 = vmatprep.subr.mxu0 0.0
    %1147 = vmatpush1.msra.mxu0 0.0
    %1148 = vmatprep.subr.mxu0 0.0
    %1149 = vmatpush1.msra.mxu0 0.0
    %1150 = vmatprep.subr.mxu0 0.0
    %1151 = vmatpush1.msra.mxu0 0.0
    %1152 = vmatprep.subr.mxu0 0.0
    %1153 = vmatpush1.msra.mxu0 0.0
    %1154 = vmatprep.subr.mxu0 0.0
    %1155 = vmatpush1.msra.mxu0 0.0
    %1156 = vmatprep.subr.mxu0 0.0
    %1157 = vmatpush1.msra.mxu0 0.0
    %1158 = vmatprep.subr.mxu0 0.0
    %1159 = vmatpush1.msra.mxu0 0.0
    %1160 = vmatprep.mubr.f32.mxu0 0.0
    %1161 = vmatmul.mubr.f32.gmra.mrb[0].mxu0 %v1091
    %v1162 = vpop.f32.mrb[0].mxu0
    %v1163 = vadd.f32 %v1088, %v1162
    %v1164 = vpop.f32.mrb[0].mxu0
    %1165 = vmatprep.mubr.f32.mxu0 0.0
    %1166 = vmatmul.mubr.f32.gmra.mrb[0].mxu0 %v1094
    %v1167 = vpop.f32.mrb[0].mxu0
    %v1168 = vadd.f32 %v1088, %v1167
    %v1169 = vpop.f32.mrb[0].mxu0
    %1170 = vdwg.mxu0
    %v1171 = vadd.f32 %v1163, %v112
    %v1172 = vadd.f32 %v1168, %v113
    %v1173 = vld [vmem:[%s8] sm:$0x1]
    %v1174 = vld [vmem:[%s9] sm:$0x1]
    %v1175 = vsel %vm70, %v1171, 0.0
    %1176 = vadd.xlane.f32.xlu0 %v1175
    %v1177 = vpop.xlane.xlu0 %1176
    %v1178 = vsel %vm70, %v1172, 0.0
    %1179 = vadd.xlane.f32.xlu0 %v1178
    %v1180 = vpop.xlane.xlu0 %1179
    %v1181 = vmul.f32 %v1177, %v77
    %v1182 = vmul.f32 %v1180, %v77
    %v1183 = vsub.f32 %v1171, %v1181
    %v1184 = vsub.f32 %v1172, %v1182
    %v1185 = vmul.f32 %v1183, %v1183
    %v1186 = vmul.f32 %v1184, %v1184
    %v1187 = vsel %vm70, %v1185, 0.0
    %1188 = vadd.xlane.f32.xlu0 %v1187
    %v1189 = vpop.xlane.xlu0 %1188
    %v1190 = vsel %vm70, %v1186, 0.0
    %1191 = vadd.xlane.f32.xlu0 %v1190
    %v1192 = vpop.xlane.xlu0 %1191
    %v1193 = vmul.f32 %v1189, %v77
    %v1194 = vmul.f32 %v1192, %v77
    %v1195 = vadd.f32 %v1193, 1e-05
    %v1196 = vadd.f32 %v1194, 1e-05
    %v1197 = vrsqrt.pop %v1195
    %v1198 = vrsqrt.pop %v1196
    %v1199 = vmul.f32 %v1183, %v1197
    %v1200 = vmul.f32 %v1184, %v1198
    %v1202 = vlaneseq
    %v1203 = vshrl.u32 %v1202, 7
    %v1204 = vsub.s32 0, %v1203
    %v1205 = vrot.slane %v1173, %v1204
    %v1207 = vmul.f32 %v1199, %v1205
    %v1208 = vmul.f32 %v1200, %v1205
    %v1210 = vlaneseq
    %v1211 = vshrl.u32 %v1210, 7
    %v1212 = vsub.s32 0, %v1211
    %v1213 = vrot.slane %v1174, %v1212
    %v1215 = vadd.f32 %v1207, %v1213
    %v1216 = vadd.f32 %v1208, %v1213
    %v1217 = vld [vmem:[%s10] sm:$0xff]
    %v1218 = vld [vmem:[%s10 + $0x8] sm:$0xff]
    %v1219 = vld [vmem:[%s10 + $0x10] sm:$0xff]
    %v1220 = vld [vmem:[%s10 + $0x18] sm:$0xff]
    %v1221 = vld [vmem:[%s10 + $0x20] sm:$0xff]
    %v1222 = vld [vmem:[%s10 + $0x28] sm:$0xff]
    %v1223 = vld [vmem:[%s10 + $0x30] sm:$0xff]
    %v1224 = vld [vmem:[%s10 + $0x38] sm:$0xff]
    %v1225 = vld [vmem:[%s11] sm:$0x1]
    %v1227 = vlaneseq
    %v1228 = vshrl.u32 %v1227, 7
    %v1229 = vsub.s32 0, %v1228
    %v1230 = vrot.slane %v1225, %v1229
    %v1233 = vsel %vm70, %v1215, 0
    %v1236 = vsel %vm70, %v1216, 0
    %1238 = vmatprep.subr.mxu0 0.0
    %1239 = vmatpush1.msra.mxu0 %v1217
    %1240 = vmatprep.subr.mxu0 0.0
    %1241 = vmatpush1.msra.mxu0 %v1218
    %1242 = vmatprep.subr.mxu0 0.0
    %1243 = vmatpush1.msra.mxu0 %v1219
    %1244 = vmatprep.subr.mxu0 0.0
    %1245 = vmatpush1.msra.mxu0 %v1220
    %1246 = vmatprep.subr.mxu0 0.0
    %1247 = vmatpush1.msra.mxu0 %v1221
    %1248 = vmatprep.subr.mxu0 0.0
    %1249 = vmatpush1.msra.mxu0 %v1222
    %1250 = vmatprep.subr.mxu0 0.0
    %1251 = vmatpush1.msra.mxu0 %v1223
    %1252 = vmatprep.subr.mxu0 0.0
    %1253 = vmatpush1.msra.mxu0 %v1224
    %1254 = vmatprep.subr.mxu0 0.0
    %1255 = vmatpush1.msra.mxu0 0.0
    %1256 = vmatprep.subr.mxu0 0.0
    %1257 = vmatpush1.msra.mxu0 0.0
    %1258 = vmatprep.subr.mxu0 0.0
    %1259 = vmatpush1.msra.mxu0 0.0
    %1260 = vmatprep.subr.mxu0 0.0
    %1261 = vmatpush1.msra.mxu0 0.0
    %1262 = vmatprep.subr.mxu0 0.0
    %1263 = vmatpush1.msra.mxu0 0.0
    %1264 = vmatprep.subr.mxu0 0.0
    %1265 = vmatpush1.msra.mxu0 0.0
    %1266 = vmatprep.subr.mxu0 0.0
    %1267 = vmatpush1.msra.mxu0 0.0
    %1268 = vmatprep.subr.mxu0 0.0
    %1269 = vmatpush1.msra.mxu0 0.0
    %1270 = vmatprep.subr.mxu0 0.0
    %1271 = vmatpush1.msra.mxu0 0.0
    %1272 = vmatprep.subr.mxu0 0.0
    %1273 = vmatpush1.msra.mxu0 0.0
    %1274 = vmatprep.subr.mxu0 0.0
    %1275 = vmatpush1.msra.mxu0 0.0
    %1276 = vmatprep.subr.mxu0 0.0
    %1277 = vmatpush1.msra.mxu0 0.0
    %1278 = vmatprep.subr.mxu0 0.0
    %1279 = vmatpush1.msra.mxu0 0.0
    %1280 = vmatprep.subr.mxu0 0.0
    %1281 = vmatpush1.msra.mxu0 0.0
    %1282 = vmatprep.subr.mxu0 0.0
    %1283 = vmatpush1.msra.mxu0 0.0
    %1284 = vmatprep.subr.mxu0 0.0
    %1285 = vmatpush1.msra.mxu0 0.0
    %1286 = vmatprep.subr.mxu0 0.0
    %1287 = vmatpush1.msra.mxu0 0.0
    %1288 = vmatprep.subr.mxu0 0.0
    %1289 = vmatpush1.msra.mxu0 0.0
    %1290 = vmatprep.subr.mxu0 0.0
    %1291 = vmatpush1.msra.mxu0 0.0
    %1292 = vmatprep.subr.mxu0 0.0
    %1293 = vmatpush1.msra.mxu0 0.0
    %1294 = vmatprep.subr.mxu0 0.0
    %1295 = vmatpush1.msra.mxu0 0.0
    %1296 = vmatprep.subr.mxu0 0.0
    %1297 = vmatpush1.msra.mxu0 0.0
    %1298 = vmatprep.subr.mxu0 0.0
    %1299 = vmatpush1.msra.mxu0 0.0
    %1300 = vmatprep.subr.mxu0 0.0
    %1301 = vmatpush1.msra.mxu0 0.0
    %1302 = vmatprep.mubr.f32.mxu0 0.0
    %1303 = vmatmul.mubr.f32.gmra.mrb[0].mxu0 %v1233
    %v1304 = vpop.f32.mrb[0].mxu0
    %v1305 = vadd.f32 %v1230, %v1304
    %v1306 = vpop.f32.mrb[0].mxu0
    %1307 = vmatprep.mubr.f32.mxu0 0.0
    %1308 = vmatmul.mubr.f32.gmra.mrb[0].mxu0 %v1236
    %v1309 = vpop.f32.mrb[0].mxu0
    %v1310 = vadd.f32 %v1230, %v1309
    %v1311 = vpop.f32.mrb[0].mxu0
    %1312 = vdwg.mxu0
    %v1313 = vmul.f32 %v1305, 0.5
    %v1314 = vmul.f32 %v1310, 0.5
    %v1315 = vmul.f32 %v1305, 0.70710677
    %v1316 = vmul.f32 %v1310, 0.70710677
    %vm1317 = vcmp.ge.f32.partialorder %v1315, 0.0
    %vm1318 = vcmp.ge.f32.partialorder %v1316, 0.0
    %v1319 = vsel %vm1317, 1.0, -1.0
    %v1320 = vsel %vm1318, 1.0, -1.0
    %v1321 = vand.u32 2147483647, %v1315
    %v1322 = vand.u32 2147483647, %v1316
    %v1323 = vmul.f32 %v1321, 0.3275911
    %v1324 = vmul.f32 %v1322, 0.3275911
    %v1325 = vadd.f32 %v1323, 1.0
    %v1326 = vadd.f32 %v1324, 1.0
    %v1327 = vrcp.pop %v1325
    %v1328 = vmul.f32 1.0, %v1327
    %v1329 = vrcp.pop %v1326
    %v1330 = vmul.f32 1.0, %v1329
    %v1331 = vmul.f32 %v1328, 1.0614054
    %v1332 = vmul.f32 %v1330, 1.0614054
    %v1333 = vadd.f32 %v1331, -1.4531521
    %v1334 = vadd.f32 %v1332, -1.4531521
    %v1335 = vmul.f32 %v1328, %v1333
    %v1336 = vmul.f32 %v1330, %v1334
    %v1337 = vadd.f32 %v1335, 1.4214138
    %v1338 = vadd.f32 %v1336, 1.4214138
    %v1339 = vmul.f32 %v1328, %v1337
    %v1340 = vmul.f32 %v1330, %v1338
    %v1341 = vadd.f32 %v1339, -0.28449672
    %v1342 = vadd.f32 %v1340, -0.28449672
    %v1343 = vmul.f32 %v1328, %v1341
    %v1344 = vmul.f32 %v1330, %v1342
    %v1345 = vadd.f32 %v1343, 0.2548296
    %v1346 = vadd.f32 %v1344, 0.2548296
    %v1347 = vmul.f32 %v1328, %v1345
    %v1348 = vmul.f32 %v1330, %v1346
    %v1349 = vsub.f32 0.0, %v1321
    %v1350 = vsub.f32 0.0, %v1322
    %v1351 = vmul.f32 %v1349, %v1321
    %v1352 = vmul.f32 %v1350, %v1322
    %v1353 = vmul.f32 %v1351, 1.442695
    %v1354 = vpow.pop %v1353
    %v1355 = vmul.f32 %v1352, 1.442695
    %v1356 = vpow.pop %v1355
    %v1357 = vmul.f32 %v1347, %v1354
    %v1358 = vmul.f32 %v1348, %v1356
    %v1359 = vsub.f32 1.0, %v1357
    %v1360 = vsub.f32 1.0, %v1358
    %v1361 = vmul.f32 %v1319, %v1359
    %v1362 = vmul.f32 %v1320, %v1360
    %v1363 = vadd.f32 %v1361, 1.0
    %v1364 = vadd.f32 %v1362, 1.0
    %v1365 = vmul.f32 %v1313, %v1363
    %v1366 = vmul.f32 %v1314, %v1364
    %v1367 = vld [vmem:[%s12] sm:$0xff]
    %v1368 = vld [vmem:[%s12 + $0x8] sm:$0xff]
    %v1369 = vld [vmem:[%s12 + $0x10] sm:$0xff]
    %v1370 = vld [vmem:[%s12 + $0x18] sm:$0xff]
    %v1371 = vld [vmem:[%s12 + $0x20] sm:$0xff]
    %v1372 = vld [vmem:[%s12 + $0x28] sm:$0xff]
    %v1373 = vld [vmem:[%s12 + $0x30] sm:$0xff]
    %v1374 = vld [vmem:[%s12 + $0x38] sm:$0xff]
    %v1375 = vld [vmem:[%s12 + $0x40] sm:$0xff]
    %v1376 = vld [vmem:[%s12 + $0x48] sm:$0xff]
    %v1377 = vld [vmem:[%s12 + $0x50] sm:$0xff]
    %v1378 = vld [vmem:[%s12 + $0x58] sm:$0xff]
    %v1379 = vld [vmem:[%s12 + $0x60] sm:$0xff]
    %v1380 = vld [vmem:[%s12 + $0x68] sm:$0xff]
    %v1381 = vld [vmem:[%s12 + $0x70] sm:$0xff]
    %v1382 = vld [vmem:[%s12 + $0x78] sm:$0xff]
    %v1383 = vld [vmem:[%s13] sm:$0x1]
    %v1385 = vlaneseq
    %v1386 = vshrl.u32 %v1385, 7
    %v1387 = vsub.s32 0, %v1386
    %v1388 = vrot.slane %v1383, %v1387
    %1390 = vmatprep.subr.mxu0 0.0
    %1391 = vmatpush1.msra.mxu0 %v1367
    %1392 = vmatprep.subr.mxu0 0.0
    %1393 = vmatpush1.msra.mxu0 %v1368
    %1394 = vmatprep.subr.mxu0 0.0
    %1395 = vmatpush1.msra.mxu0 %v1369
    %1396 = vmatprep.subr.mxu0 0.0
    %1397 = vmatpush1.msra.mxu0 %v1370
    %1398 = vmatprep.subr.mxu0 0.0
    %1399 = vmatpush1.msra.mxu0 %v1371
    %1400 = vmatprep.subr.mxu0 0.0
    %1401 = vmatpush1.msra.mxu0 %v1372
    %1402 = vmatprep.subr.mxu0 0.0
    %1403 = vmatpush1.msra.mxu0 %v1373
    %1404 = vmatprep.subr.mxu0 0.0
    %1405 = vmatpush1.msra.mxu0 %v1374
    %1406 = vmatprep.subr.mxu0 0.0
    %1407 = vmatpush1.msra.mxu0 %v1375
    %1408 = vmatprep.subr.mxu0 0.0
    %1409 = vmatpush1.msra.mxu0 %v1376
    %1410 = vmatprep.subr.mxu0 0.0
    %1411 = vmatpush1.msra.mxu0 %v1377
    %1412 = vmatprep.subr.mxu0 0.0
    %1413 = vmatpush1.msra.mxu0 %v1378
    %1414 = vmatprep.subr.mxu0 0.0
    %1415 = vmatpush1.msra.mxu0 %v1379
    %1416 = vmatprep.subr.mxu0 0.0
    %1417 = vmatpush1.msra.mxu0 %v1380
    %1418 = vmatprep.subr.mxu0 0.0
    %1419 = vmatpush1.msra.mxu0 %v1381
    %1420 = vmatprep.subr.mxu0 0.0
    %1421 = vmatpush1.msra.mxu0 %v1382
    %1422 = vmatprep.subr.mxu0 0.0
    %1423 = vmatpush1.msra.mxu0 0.0
    %1424 = vmatprep.subr.mxu0 0.0
    %1425 = vmatpush1.msra.mxu0 0.0
    %1426 = vmatprep.subr.mxu0 0.0
    %1427 = vmatpush1.msra.mxu0 0.0
    %1428 = vmatprep.subr.mxu0 0.0
    %1429 = vmatpush1.msra.mxu0 0.0
    %1430 = vmatprep.subr.mxu0 0.0
    %1431 = vmatpush1.msra.mxu0 0.0
    %1432 = vmatprep.subr.mxu0 0.0
    %1433 = vmatpush1.msra.mxu0 0.0
    %1434 = vmatprep.subr.mxu0 0.0
    %1435 = vmatpush1.msra.mxu0 0.0
    %1436 = vmatprep.subr.mxu0 0.0
    %1437 = vmatpush1.msra.mxu0 0.0
    %1438 = vmatprep.subr.mxu0 0.0
    %1439 = vmatpush1.msra.mxu0 0.0
    %1440 = vmatprep.subr.mxu0 0.0
    %1441 = vmatpush1.msra.mxu0 0.0
    %1442 = vmatprep.subr.mxu0 0.0
    %1443 = vmatpush1.msra.mxu0 0.0
    %1444 = vmatprep.subr.mxu0 0.0
    %1445 = vmatpush1.msra.mxu0 0.0
    %1446 = vmatprep.subr.mxu0 0.0
    %1447 = vmatpush1.msra.mxu0 0.0
    %1448 = vmatprep.subr.mxu0 0.0
    %1449 = vmatpush1.msra.mxu0 0.0
    %1450 = vmatprep.subr.mxu0 0.0
    %1451 = vmatpush1.msra.mxu0 0.0
    %1452 = vmatprep.subr.mxu0 0.0
    %1453 = vmatpush1.msra.mxu0 0.0
    %1454 = vmatprep.mubr.f32.mxu0 0.0
    %1455 = vmatmul.mubr.f32.gmra.mrb[0].mxu0 %v1365
    %v1456 = vpop.f32.mrb[0].mxu0
    %v1457 = vadd.f32 %v1388, %v1456
    %v1458 = vpop.f32.mrb[0].mxu0
    %1459 = vmatprep.mubr.f32.mxu0 0.0
    %1460 = vmatmul.mubr.f32.gmra.mrb[0].mxu0 %v1366
    %v1461 = vpop.f32.mrb[0].mxu0
    %v1462 = vadd.f32 %v1388, %v1461
    %v1463 = vpop.f32.mrb[0].mxu0
    %1464 = vdwg.mxu0
    %v1465 = vadd.f32 %v1457, %v1215
    %v1466 = vadd.f32 %v1462, %v1216
    %v1467 = vld [vmem:[%s14] sm:$0x1]
    %v1468 = vld [vmem:[%s15] sm:$0x1]
    %v1469 = vsel %vm70, %v1465, 0.0
    %1470 = vadd.xlane.f32.xlu0 %v1469
    %v1471 = vpop.xlane.xlu0 %1470
    %v1472 = vsel %vm70, %v1466, 0.0
    %1473 = vadd.xlane.f32.xlu0 %v1472
    %v1474 = vpop.xlane.xlu0 %1473
    %v1475 = vmul.f32 %v1471, %v77
    %v1476 = vmul.f32 %v1474, %v77
    %v1477 = vsub.f32 %v1465, %v1475
    %v1478 = vsub.f32 %v1466, %v1476
    %v1479 = vmul.f32 %v1477, %v1477
    %v1480 = vmul.f32 %v1478, %v1478
    %v1481 = vsel %vm70, %v1479, 0.0
    %1482 = vadd.xlane.f32.xlu0 %v1481
    %v1483 = vpop.xlane.xlu0 %1482
    %v1484 = vsel %vm70, %v1480, 0.0
    %1485 = vadd.xlane.f32.xlu0 %v1484
    %v1486 = vpop.xlane.xlu0 %1485
    %v1487 = vmul.f32 %v1483, %v77
    %v1488 = vmul.f32 %v1486, %v77
    %v1489 = vadd.f32 %v1487, 1e-05
    %v1490 = vadd.f32 %v1488, 1e-05
    %v1491 = vrsqrt.pop %v1489
    %v1492 = vrsqrt.pop %v1490
    %v1493 = vmul.f32 %v1477, %v1491
    %v1494 = vmul.f32 %v1478, %v1492
    %v1496 = vlaneseq
    %v1497 = vshrl.u32 %v1496, 7
    %v1498 = vsub.s32 0, %v1497
    %v1499 = vrot.slane %v1467, %v1498
    %v1501 = vmul.f32 %v1493, %v1499
    %v1502 = vmul.f32 %v1494, %v1499
    %v1504 = vlaneseq
    %v1505 = vshrl.u32 %v1504, 7
    %v1506 = vsub.s32 0, %v1505
    %v1507 = vrot.slane %v1468, %v1506
    %v1509 = vadd.f32 %v1501, %v1507
    %v1510 = vadd.f32 %v1502, %v1507
    %s1511 = scalar_lea.vmem %s4, 128
    %v1512 = vld [vmem:[%s1511] sm:$0xff]
    %v1513 = vld [vmem:[%s1511 + $0x8] sm:$0xff]
    %v1514 = vld [vmem:[%s1511 + $0x10] sm:$0xff]
    %v1515 = vld [vmem:[%s1511 + $0x18] sm:$0xff]
    %v1516 = vld [vmem:[%s1511 + $0x20] sm:$0xff]
    %v1517 = vld [vmem:[%s1511 + $0x28] sm:$0xff]
    %v1518 = vld [vmem:[%s1511 + $0x30] sm:$0xff]
    %v1519 = vld [vmem:[%s1511 + $0x38] sm:$0xff]
    %v1520 = vld [vmem:[%s1511 + $0x40] sm:$0xff]
    %v1521 = vld [vmem:[%s1511 + $0x48] sm:$0xff]
    %v1522 = vld [vmem:[%s1511 + $0x50] sm:$0xff]
    %v1523 = vld [vmem:[%s1511 + $0x58] sm:$0xff]
    %v1524 = vld [vmem:[%s1511 + $0x60] sm:$0xff]
    %v1525 = vld [vmem:[%s1511 + $0x68] sm:$0xff]
    %v1526 = vld [vmem:[%s1511 + $0x70] sm:$0xff]
    %v1527 = vld [vmem:[%s1511 + $0x78] sm:$0xff]
    %s1528 = scalar_lea.vmem %s5, 2
    %v1529 = vld [vmem:[%s1528] sm:$0x3]
    %v1531 = vlaneseq
    %v1532 = vshrl.u32 %v1531, 7
    %v1533 = vsub.s32 0, %v1532
    %v1534 = vrot.slane %v1529, %v1533
    %v1535 = vlaneseq
    %v1536 = vshrl.u32 %v1535, 7
    %v1537 = vsub.s32 1, %v1536
    %v1538 = vrot.slane %v1529, %v1537
    %v1542 = vsel %vm70, %v1509, 0
    %v1545 = vsel %vm70, %v1510, 0
    %1547 = vmatprep.subr.mxu0 %v1513
    %1548 = vmatpush1.msra.mxu0 %v1512
    %1549 = vmatprep.subr.mxu0 %v1515
    %1550 = vmatpush1.msra.mxu0 %v1514
    %1551 = vmatprep.subr.mxu0 %v1517
    %1552 = vmatpush1.msra.mxu0 %v1516
    %1553 = vmatprep.subr.mxu0 %v1519
    %1554 = vmatpush1.msra.mxu0 %v1518
    %1555 = vmatprep.subr.mxu0 %v1521
    %1556 = vmatpush1.msra.mxu0 %v1520
    %1557 = vmatprep.subr.mxu0 %v1523
    %1558 = vmatpush1.msra.mxu0 %v1522
    %1559 = vmatprep.subr.mxu0 %v1525
    %1560 = vmatpush1.msra.mxu0 %v1524
    %1561 = vmatprep.subr.mxu0 %v1527
    %1562 = vmatpush1.msra.mxu0 %v1526
    %1563 = vmatprep.subr.mxu0 0.0
    %1564 = vmatpush1.msra.mxu0 0.0
    %1565 = vmatprep.subr.mxu0 0.0
    %1566 = vmatpush1.msra.mxu0 0.0
    %1567 = vmatprep.subr.mxu0 0.0
    %1568 = vmatpush1.msra.mxu0 0.0
    %1569 = vmatprep.subr.mxu0 0.0
    %1570 = vmatpush1.msra.mxu0 0.0
    %1571 = vmatprep.subr.mxu0 0.0
    %1572 = vmatpush1.msra.mxu0 0.0
    %1573 = vmatprep.subr.mxu0 0.0
    %1574 = vmatpush1.msra.mxu0 0.0
    %1575 = vmatprep.subr.mxu0 0.0
    %1576 = vmatpush1.msra.mxu0 0.0
    %1577 = vmatprep.subr.mxu0 0.0
    %1578 = vmatpush1.msra.mxu0 0.0
    %1579 = vmatprep.subr.mxu0 0.0
    %1580 = vmatpush1.msra.mxu0 0.0
    %1581 = vmatprep.subr.mxu0 0.0
    %1582 = vmatpush1.msra.mxu0 0.0
    %1583 = vmatprep.subr.mxu0 0.0
    %1584 = vmatpush1.msra.mxu0 0.0
    %1585 = vmatprep.subr.mxu0 0.0
    %1586 = vmatpush1.msra.mxu0 0.0
    %1587 = vmatprep.subr.mxu0 0.0
    %1588 = vmatpush1.msra.mxu0 0.0
    %1589 = vmatprep.subr.mxu0 0.0
    %1590 = vmatpush1.msra.mxu0 0.0
    %1591 = vmatprep.subr.mxu0 0.0
    %1592 = vmatpush1.msra.mxu0 0.0
    %1593 = vmatprep.subr.mxu0 0.0
    %1594 = vmatpush1.msra.mxu0 0.0
    %1595 = vmatprep.subr.mxu0 0.0
    %1596 = vmatpush1.msra.mxu0 0.0
    %1597 = vmatprep.subr.mxu0 0.0
    %1598 = vmatpush1.msra.mxu0 0.0
    %1599 = vmatprep.subr.mxu0 0.0
    %1600 = vmatpush1.msra.mxu0 0.0
    %1601 = vmatprep.subr.mxu0 0.0
    %1602 = vmatpush1.msra.mxu0 0.0
    %1603 = vmatprep.subr.mxu0 0.0
    %1604 = vmatpush1.msra.mxu0 0.0
    %1605 = vmatprep.subr.mxu0 0.0
    %1606 = vmatpush1.msra.mxu0 0.0
    %1607 = vmatprep.subr.mxu0 0.0
    %1608 = vmatpush1.msra.mxu0 0.0
    %1609 = vmatprep.subr.mxu0 0.0
    %1610 = vmatpush1.msra.mxu0 0.0
    %1611 = vmatprep.mubr.f32.mxu0 0.0
    %1612 = vmatmul.mubr.f32.gmra.mrb[0].mxu0 %v1542
    %v1613 = vpop.f32.mrb[0].mxu0
    %v1614 = vadd.f32 %v1534, %v1613
    %v1615 = vpop.f32.mrb[0].mxu0
    %v1616 = vadd.f32 %v1538, %v1615
    %1617 = vmatprep.mubr.f32.mxu0 0.0
    %1618 = vmatmul.mubr.f32.gmra.mrb[0].mxu0 %v1545
    %v1619 = vpop.f32.mrb[0].mxu0
    %v1620 = vadd.f32 %v1534, %v1619
    %v1621 = vpop.f32.mrb[0].mxu0
    %v1622 = vadd.f32 %v1538, %v1621
    %1623 = vdwg.mxu0
    %1626 = vrot.lane.b32.xlu0 %v1614, 64
    %v1627 = vpop.permute.xlu0 %1626
    %1628 = vrot.lane.b32.xlu0 %v1620, 64
    %v1629 = vpop.permute.xlu0 %1628
    %v1630 = vsel %vm233, %v1614, 0
    %v1632 = vsel %vm233, %v1620, 0
    %v1634 = vsel %vm233, %v1627, 0
    %v1636 = vsel %vm233, %v1629, 0
    %1638 = vmatprep.subr.mxu0 0.0
    %1639 = vmatpush1.xpose.msra.mxu0 %v1634
    %1640 = vmatprep.subr.mxu0 0.0
    %1641 = vmatpush1.xpose.msra.mxu0 %v1636
    %1642 = vmatprep.subr.mxu0 0.0
    %1643 = vmatpush1.xpose.msra.mxu0 0.0
    %1644 = vmatprep.subr.mxu0 0.0
    %1645 = vmatpush1.xpose.msra.mxu0 0.0
    %1646 = vmatprep.subr.mxu0 0.0
    %1647 = vmatpush1.xpose.msra.mxu0 0.0
    %1648 = vmatprep.subr.mxu0 0.0
    %1649 = vmatpush1.xpose.msra.mxu0 0.0
    %1650 = vmatprep.subr.mxu0 0.0
    %1651 = vmatpush1.xpose.msra.mxu0 0.0
    %1652 = vmatprep.subr.mxu0 0.0
    %1653 = vmatpush1.xpose.msra.mxu0 0.0
    %1654 = vmatprep.subr.mxu0 0.0
    %1655 = vmatpush1.xpose.msra.mxu0 0.0
    %1656 = vmatprep.subr.mxu0 0.0
    %1657 = vmatpush1.xpose.msra.mxu0 0.0
    %1658 = vmatprep.subr.mxu0 0.0
    %1659 = vmatpush1.xpose.msra.mxu0 0.0
    %1660 = vmatprep.subr.mxu0 0.0
    %1661 = vmatpush1.xpose.msra.mxu0 0.0
    %1662 = vmatprep.subr.mxu0 0.0
    %1663 = vmatpush1.xpose.msra.mxu0 0.0
    %1664 = vmatprep.subr.mxu0 0.0
    %1665 = vmatpush1.xpose.msra.mxu0 0.0
    %1666 = vmatprep.subr.mxu0 0.0
    %1667 = vmatpush1.xpose.msra.mxu0 0.0
    %1668 = vmatprep.subr.mxu0 0.0
    %1669 = vmatpush1.xpose.msra.mxu0 0.0
    %1670 = vmatprep.subr.mxu0 0.0
    %1671 = vmatpush1.xpose.msra.mxu0 0.0
    %1672 = vmatprep.subr.mxu0 0.0
    %1673 = vmatpush1.xpose.msra.mxu0 0.0
    %1674 = vmatprep.subr.mxu0 0.0
    %1675 = vmatpush1.xpose.msra.mxu0 0.0
    %1676 = vmatprep.subr.mxu0 0.0
    %1677 = vmatpush1.xpose.msra.mxu0 0.0
    %1678 = vmatprep.subr.mxu0 0.0
    %1679 = vmatpush1.xpose.msra.mxu0 0.0
    %1680 = vmatprep.subr.mxu0 0.0
    %1681 = vmatpush1.xpose.msra.mxu0 0.0
    %1682 = vmatprep.subr.mxu0 0.0
    %1683 = vmatpush1.xpose.msra.mxu0 0.0
    %1684 = vmatprep.subr.mxu0 0.0
    %1685 = vmatpush1.xpose.msra.mxu0 0.0
    %1686 = vmatprep.subr.mxu0 0.0
    %1687 = vmatpush1.xpose.msra.mxu0 0.0
    %1688 = vmatprep.subr.mxu0 0.0
    %1689 = vmatpush1.xpose.msra.mxu0 0.0
    %1690 = vmatprep.subr.mxu0 0.0
    %1691 = vmatpush1.xpose.msra.mxu0 0.0
    %1692 = vmatprep.subr.mxu0 0.0
    %1693 = vmatpush1.xpose.msra.mxu0 0.0
    %1694 = vmatprep.subr.mxu0 0.0
    %1695 = vmatpush1.xpose.msra.mxu0 0.0
    %1696 = vmatprep.subr.mxu0 0.0
    %1697 = vmatpush1.xpose.msra.mxu0 0.0
    %1698 = vmatprep.subr.mxu0 0.0
    %1699 = vmatpush1.xpose.msra.mxu0 0.0
    %1700 = vmatprep.subr.mxu0 0.0
    %1701 = vmatpush1.xpose.msra.mxu0 0.0
    %1702 = vmatprep.mubr.f32.mxu0 0.0
    %1703 = vmatmul.mubr.f32.gmra.mrb[0].mxu0 %v1630
    %v1704 = vpop.f32.mrb[0].mxu0
    %v1705 = vadd.f32 0.0, %v1704
    %v1706 = vpop.f32.mrb[0].mxu0
    %1707 = vmatprep.mubr.f32.mxu0 0.0
    %1708 = vmatmul.mubr.f32.gmra.mrb[0].mxu0 %v1632
    %v1709 = vpop.f32.mrb[0].mxu0
    %v1710 = vadd.f32 0.0, %v1709
    %v1711 = vpop.f32.mrb[0].mxu0
    %1712 = vdwg.mxu0
    %v1713 = vmul.f32 %v1705, 0.25
    %v1714 = vmul.f32 %v1710, 0.25
    %v1715 = vadd.f32 %v1713, %v114
    %v1716 = vadd.f32 %v1714, %v115
    %v1717 = vsel %vm233, %v1715, -inf
    %1718 = vmax.xlane.f32.xlu0 %v1717
    %v1719 = vpop.xlane.xlu0 %1718
    %v1720 = vsel %vm233, %v1716, -inf
    %1721 = vmax.xlane.f32.xlu0 %v1720
    %v1722 = vpop.xlane.xlu0 %1721
    %v1723 = vsub.f32 %v1715, %v1719
    %v1724 = vsub.f32 %v1716, %v1722
    %v1725 = vmul.f32 %v1723, 1.442695
    %v1726 = vpow.pop %v1725
    %v1727 = vmul.f32 %v1724, 1.442695
    %v1728 = vpow.pop %v1727
    %v1729 = vsel %vm233, %v1726, 0.0
    %1730 = vadd.xlane.f32.xlu0 %v1729
    %v1731 = vpop.xlane.xlu0 %1730
    %v1732 = vsel %vm233, %v1728, 0.0
    %1733 = vadd.xlane.f32.xlu0 %v1732
    %v1734 = vpop.xlane.xlu0 %1733
    %v1735 = vrcp.pop %v1731
    %v1736 = vrcp.pop %v1734
    %v1737 = vmul.f32 %v1726, %v1735
    %v1738 = vmul.f32 %v1728, %v1736
    %v1740 = vsel %vm233, %v1737, 0
    %v1743 = vsel %vm233, %v1738, 0
    %1745 = vmatprep.subr.mxu0 0.0
    %1746 = vmatpush1.msra.mxu0 %v1616
    %1747 = vmatprep.subr.mxu0 0.0
    %1748 = vmatpush1.msra.mxu0 %v1622
    %1749 = vmatprep.subr.mxu0 0.0
    %1750 = vmatpush1.msra.mxu0 0.0
    %1751 = vmatprep.subr.mxu0 0.0
    %1752 = vmatpush1.msra.mxu0 0.0
    %1753 = vmatprep.subr.mxu0 0.0
    %1754 = vmatpush1.msra.mxu0 0.0
    %1755 = vmatprep.subr.mxu0 0.0
    %1756 = vmatpush1.msra.mxu0 0.0
    %1757 = vmatprep.subr.mxu0 0.0
    %1758 = vmatpush1.msra.mxu0 0.0
    %1759 = vmatprep.subr.mxu0 0.0
    %1760 = vmatpush1.msra.mxu0 0.0
    %1761 = vmatprep.subr.mxu0 0.0
    %1762 = vmatpush1.msra.mxu0 0.0
    %1763 = vmatprep.subr.mxu0 0.0
    %1764 = vmatpush1.msra.mxu0 0.0
    %1765 = vmatprep.subr.mxu0 0.0
    %1766 = vmatpush1.msra.mxu0 0.0
    %1767 = vmatprep.subr.mxu0 0.0
    %1768 = vmatpush1.msra.mxu0 0.0
    %1769 = vmatprep.subr.mxu0 0.0
    %1770 = vmatpush1.msra.mxu0 0.0
    %1771 = vmatprep.subr.mxu0 0.0
    %1772 = vmatpush1.msra.mxu0 0.0
    %1773 = vmatprep.subr.mxu0 0.0
    %1774 = vmatpush1.msra.mxu0 0.0
    %1775 = vmatprep.subr.mxu0 0.0
    %1776 = vmatpush1.msra.mxu0 0.0
    %1777 = vmatprep.subr.mxu0 0.0
    %1778 = vmatpush1.msra.mxu0 0.0
    %1779 = vmatprep.subr.mxu0 0.0
    %1780 = vmatpush1.msra.mxu0 0.0
    %1781 = vmatprep.subr.mxu0 0.0
    %1782 = vmatpush1.msra.mxu0 0.0
    %1783 = vmatprep.subr.mxu0 0.0
    %1784 = vmatpush1.msra.mxu0 0.0
    %1785 = vmatprep.subr.mxu0 0.0
    %1786 = vmatpush1.msra.mxu0 0.0
    %1787 = vmatprep.subr.mxu0 0.0
    %1788 = vmatpush1.msra.mxu0 0.0
    %1789 = vmatprep.subr.mxu0 0.0
    %1790 = vmatpush1.msra.mxu0 0.0
    %1791 = vmatprep.subr.mxu0 0.0
    %1792 = vmatpush1.msra.mxu0 0.0
    %1793 = vmatprep.subr.mxu0 0.0
    %1794 = vmatpush1.msra.mxu0 0.0
    %1795 = vmatprep.subr.mxu0 0.0
    %1796 = vmatpush1.msra.mxu0 0.0
    %1797 = vmatprep.subr.mxu0 0.0
    %1798 = vmatpush1.msra.mxu0 0.0
    %1799 = vmatprep.subr.mxu0 0.0
    %1800 = vmatpush1.msra.mxu0 0.0
    %1801 = vmatprep.subr.mxu0 0.0
    %1802 = vmatpush1.msra.mxu0 0.0
    %1803 = vmatprep.subr.mxu0 0.0
    %1804 = vmatpush1.msra.mxu0 0.0
    %1805 = vmatprep.subr.mxu0 0.0
    %1806 = vmatpush1.msra.mxu0 0.0
    %1807 = vmatprep.subr.mxu0 0.0
    %1808 = vmatpush1.msra.mxu0 0.0
    %1809 = vmatprep.mubr.f32.mxu0 0.0
    %1810 = vmatmul.mubr.f32.gmra.mrb[0].mxu0 %v1740
    %v1811 = vpop.f32.mrb[0].mxu0
    %v1812 = vadd.f32 0.0, %v1811
    %v1813 = vpop.f32.mrb[0].mxu0
    %1814 = vmatprep.mubr.f32.mxu0 0.0
    %1815 = vmatmul.mubr.f32.gmra.mrb[0].mxu0 %v1743
    %v1816 = vpop.f32.mrb[0].mxu0
    %v1817 = vadd.f32 0.0, %v1816
    %v1818 = vpop.f32.mrb[0].mxu0
    %1819 = vdwg.mxu0
    %1820 = vst.msk [vmem:[#allocation2] sm:$0xff] %vm233, %v1812
    %1821 = vst.msk [vmem:[#allocation2 + $0x8] sm:$0xff] %vm233, %v1817
    %1822 = vrot.lane.b32.xlu0 %v1614, 112
    %v1823 = vpop.permute.xlu0 %1822
    %1824 = vrot.lane.b32.xlu0 %v1620, 112
    %v1825 = vpop.permute.xlu0 %1824
    %1826 = vrot.lane.b32.xlu0 %v1614, 48
    %v1827 = vpop.permute.xlu0 %1826
    %1828 = vrot.lane.b32.xlu0 %v1620, 48
    %v1829 = vpop.permute.xlu0 %1828
    %v1830 = vsel %vm233, %v1823, 0
    %v1832 = vsel %vm233, %v1825, 0
    %v1834 = vsel %vm233, %v1827, 0
    %v1836 = vsel %vm233, %v1829, 0
    %1838 = vmatprep.subr.mxu0 0.0
    %1839 = vmatpush1.xpose.msra.mxu0 %v1834
    %1840 = vmatprep.subr.mxu0 0.0
    %1841 = vmatpush1.xpose.msra.mxu0 %v1836
    %1842 = vmatprep.subr.mxu0 0.0
    %1843 = vmatpush1.xpose.msra.mxu0 0.0
    %1844 = vmatprep.subr.mxu0 0.0
    %1845 = vmatpush1.xpose.msra.mxu0 0.0
    %1846 = vmatprep.subr.mxu0 0.0
    %1847 = vmatpush1.xpose.msra.mxu0 0.0
    %1848 = vmatprep.subr.mxu0 0.0
    %1849 = vmatpush1.xpose.msra.mxu0 0.0
    %1850 = vmatprep.subr.mxu0 0.0
    %1851 = vmatpush1.xpose.msra.mxu0 0.0
    %1852 = vmatprep.subr.mxu0 0.0
    %1853 = vmatpush1.xpose.msra.mxu0 0.0
    %1854 = vmatprep.subr.mxu0 0.0
    %1855 = vmatpush1.xpose.msra.mxu0 0.0
    %1856 = vmatprep.subr.mxu0 0.0
    %1857 = vmatpush1.xpose.msra.mxu0 0.0
    %1858 = vmatprep.subr.mxu0 0.0
    %1859 = vmatpush1.xpose.msra.mxu0 0.0
    %1860 = vmatprep.subr.mxu0 0.0
    %1861 = vmatpush1.xpose.msra.mxu0 0.0
    %1862 = vmatprep.subr.mxu0 0.0
    %1863 = vmatpush1.xpose.msra.mxu0 0.0
    %1864 = vmatprep.subr.mxu0 0.0
    %1865 = vmatpush1.xpose.msra.mxu0 0.0
    %1866 = vmatprep.subr.mxu0 0.0
    %1867 = vmatpush1.xpose.msra.mxu0 0.0
    %1868 = vmatprep.subr.mxu0 0.0
    %1869 = vmatpush1.xpose.msra.mxu0 0.0
    %1870 = vmatprep.subr.mxu0 0.0
    %1871 = vmatpush1.xpose.msra.mxu0 0.0
    %1872 = vmatprep.subr.mxu0 0.0
    %1873 = vmatpush1.xpose.msra.mxu0 0.0
    %1874 = vmatprep.subr.mxu0 0.0
    %1875 = vmatpush1.xpose.msra.mxu0 0.0
    %1876 = vmatprep.subr.mxu0 0.0
    %1877 = vmatpush1.xpose.msra.mxu0 0.0
    %1878 = vmatprep.subr.mxu0 0.0
    %1879 = vmatpush1.xpose.msra.mxu0 0.0
    %1880 = vmatprep.subr.mxu0 0.0
    %1881 = vmatpush1.xpose.msra.mxu0 0.0
    %1882 = vmatprep.subr.mxu0 0.0
    %1883 = vmatpush1.xpose.msra.mxu0 0.0
    %1884 = vmatprep.subr.mxu0 0.0
    %1885 = vmatpush1.xpose.msra.mxu0 0.0
    %1886 = vmatprep.subr.mxu0 0.0
    %1887 = vmatpush1.xpose.msra.mxu0 0.0
    %1888 = vmatprep.subr.mxu0 0.0
    %1889 = vmatpush1.xpose.msra.mxu0 0.0
    %1890 = vmatprep.subr.mxu0 0.0
    %1891 = vmatpush1.xpose.msra.mxu0 0.0
    %1892 = vmatprep.subr.mxu0 0.0
    %1893 = vmatpush1.xpose.msra.mxu0 0.0
    %1894 = vmatprep.subr.mxu0 0.0
    %1895 = vmatpush1.xpose.msra.mxu0 0.0
    %1896 = vmatprep.subr.mxu0 0.0
    %1897 = vmatpush1.xpose.msra.mxu0 0.0
    %1898 = vmatprep.subr.mxu0 0.0
    %1899 = vmatpush1.xpose.msra.mxu0 0.0
    %1900 = vmatprep.subr.mxu0 0.0
    %1901 = vmatpush1.xpose.msra.mxu0 0.0
    %1902 = vmatprep.mubr.f32.mxu0 0.0
    %1903 = vmatmul.mubr.f32.gmra.mrb[0].mxu0 %v1830
    %v1904 = vpop.f32.mrb[0].mxu0
    %v1905 = vadd.f32 0.0, %v1904
    %v1906 = vpop.f32.mrb[0].mxu0
    %1907 = vmatprep.mubr.f32.mxu0 0.0
    %1908 = vmatmul.mubr.f32.gmra.mrb[0].mxu0 %v1832
    %v1909 = vpop.f32.mrb[0].mxu0
    %v1910 = vadd.f32 0.0, %v1909
    %v1911 = vpop.f32.mrb[0].mxu0
    %1912 = vdwg.mxu0
    %v1913 = vmul.f32 %v1905, 0.25
    %v1914 = vmul.f32 %v1910, 0.25
    %v1915 = vadd.f32 %v1913, %v114
    %v1916 = vadd.f32 %v1914, %v115
    %v1917 = vsel %vm233, %v1915, -inf
    %1918 = vmax.xlane.f32.xlu0 %v1917
    %v1919 = vpop.xlane.xlu0 %1918
    %v1920 = vsel %vm233, %v1916, -inf
    %1921 = vmax.xlane.f32.xlu0 %v1920
    %v1922 = vpop.xlane.xlu0 %1921
    %v1923 = vsub.f32 %v1915, %v1919
    %v1924 = vsub.f32 %v1916, %v1922
    %v1925 = vmul.f32 %v1923, 1.442695
    %v1926 = vpow.pop %v1925
    %v1927 = vmul.f32 %v1924, 1.442695
    %v1928 = vpow.pop %v1927
    %v1929 = vsel %vm233, %v1926, 0.0
    %1930 = vadd.xlane.f32.xlu0 %v1929
    %v1931 = vpop.xlane.xlu0 %1930
    %v1932 = vsel %vm233, %v1928, 0.0
    %1933 = vadd.xlane.f32.xlu0 %v1932
    %v1934 = vpop.xlane.xlu0 %1933
    %v1935 = vrcp.pop %v1931
    %v1936 = vrcp.pop %v1934
    %v1937 = vmul.f32 %v1926, %v1935
    %v1938 = vmul.f32 %v1928, %v1936
    %1941 = vrot.lane.b32.xlu0 %v1616, 112
    %v1942 = vpop.permute.xlu0 %1941
    %1943 = vrot.lane.b32.xlu0 %v1622, 112
    %v1944 = vpop.permute.xlu0 %1943
    %v1948 = vsel %vm233, %v1937, 0
    %v1951 = vsel %vm233, %v1938, 0
    %1953 = vmatprep.subr.mxu0 0.0
    %1954 = vmatpush1.msra.mxu0 %v1942
    %1955 = vmatprep.subr.mxu0 0.0
    %1956 = vmatpush1.msra.mxu0 %v1944
    %1957 = vmatprep.subr.mxu0 0.0
    %1958 = vmatpush1.msra.mxu0 0.0
    %1959 = vmatprep.subr.mxu0 0.0
    %1960 = vmatpush1.msra.mxu0 0.0
    %1961 = vmatprep.subr.mxu0 0.0
    %1962 = vmatpush1.msra.mxu0 0.0
    %1963 = vmatprep.subr.mxu0 0.0
    %1964 = vmatpush1.msra.mxu0 0.0
    %1965 = vmatprep.subr.mxu0 0.0
    %1966 = vmatpush1.msra.mxu0 0.0
    %1967 = vmatprep.subr.mxu0 0.0
    %1968 = vmatpush1.msra.mxu0 0.0
    %1969 = vmatprep.subr.mxu0 0.0
    %1970 = vmatpush1.msra.mxu0 0.0
    %1971 = vmatprep.subr.mxu0 0.0
    %1972 = vmatpush1.msra.mxu0 0.0
    %1973 = vmatprep.subr.mxu0 0.0
    %1974 = vmatpush1.msra.mxu0 0.0
    %1975 = vmatprep.subr.mxu0 0.0
    %1976 = vmatpush1.msra.mxu0 0.0
    %1977 = vmatprep.subr.mxu0 0.0
    %1978 = vmatpush1.msra.mxu0 0.0
    %1979 = vmatprep.subr.mxu0 0.0
    %1980 = vmatpush1.msra.mxu0 0.0
    %1981 = vmatprep.subr.mxu0 0.0
    %1982 = vmatpush1.msra.mxu0 0.0
    %1983 = vmatprep.subr.mxu0 0.0
    %1984 = vmatpush1.msra.mxu0 0.0
    %1985 = vmatprep.subr.mxu0 0.0
    %1986 = vmatpush1.msra.mxu0 0.0
    %1987 = vmatprep.subr.mxu0 0.0
    %1988 = vmatpush1.msra.mxu0 0.0
    %1989 = vmatprep.subr.mxu0 0.0
    %1990 = vmatpush1.msra.mxu0 0.0
    %1991 = vmatprep.subr.mxu0 0.0
    %1992 = vmatpush1.msra.mxu0 0.0
    %1993 = vmatprep.subr.mxu0 0.0
    %1994 = vmatpush1.msra.mxu0 0.0
    %1995 = vmatprep.subr.mxu0 0.0
    %1996 = vmatpush1.msra.mxu0 0.0
    %1997 = vmatprep.subr.mxu0 0.0
    %1998 = vmatpush1.msra.mxu0 0.0
    %1999 = vmatprep.subr.mxu0 0.0
    %2000 = vmatpush1.msra.mxu0 0.0
    %2001 = vmatprep.subr.mxu0 0.0
    %2002 = vmatpush1.msra.mxu0 0.0
    %2003 = vmatprep.subr.mxu0 0.0
    %2004 = vmatpush1.msra.mxu0 0.0
    %2005 = vmatprep.subr.mxu0 0.0
    %2006 = vmatpush1.msra.mxu0 0.0
    %2007 = vmatprep.subr.mxu0 0.0
    %2008 = vmatpush1.msra.mxu0 0.0
    %2009 = vmatprep.subr.mxu0 0.0
    %2010 = vmatpush1.msra.mxu0 0.0
    %2011 = vmatprep.subr.mxu0 0.0
    %2012 = vmatpush1.msra.mxu0 0.0
    %2013 = vmatprep.subr.mxu0 0.0
    %2014 = vmatpush1.msra.mxu0 0.0
    %2015 = vmatprep.subr.mxu0 0.0
    %2016 = vmatpush1.msra.mxu0 0.0
    %2017 = vmatprep.mubr.f32.mxu0 0.0
    %2018 = vmatmul.mubr.f32.gmra.mrb[0].mxu0 %v1948
    %v2019 = vpop.f32.mrb[0].mxu0
    %v2020 = vadd.f32 0.0, %v2019
    %v2021 = vpop.f32.mrb[0].mxu0
    %2022 = vmatprep.mubr.f32.mxu0 0.0
    %2023 = vmatmul.mubr.f32.gmra.mrb[0].mxu0 %v1951
    %v2024 = vpop.f32.mrb[0].mxu0
    %v2025 = vadd.f32 0.0, %v2024
    %v2026 = vpop.f32.mrb[0].mxu0
    %2027 = vdwg.mxu0
    %2030 = vrot.lane.b32.xlu0 %v2020, 16
    %v2031 = vpop.permute.xlu0 %2030
    %2032 = vrot.lane.b32.xlu0 %v2025, 16
    %v2033 = vpop.permute.xlu0 %2032
    %2036 = vst.msk [vmem:[#allocation2] sm:$0xff] %vm640, %v2031
    %2037 = vst.msk [vmem:[#allocation2 + $0x8] sm:$0xff] %vm640, %v2033
    %2038 = vrot.lane.b32.xlu0 %v1614, 96
    %v2039 = vpop.permute.xlu0 %2038
    %2040 = vrot.lane.b32.xlu0 %v1620, 96
    %v2041 = vpop.permute.xlu0 %2040
    %2042 = vrot.lane.b32.xlu0 %v1614, 32
    %v2043 = vpop.permute.xlu0 %2042
    %2044 = vrot.lane.b32.xlu0 %v1620, 32
    %v2045 = vpop.permute.xlu0 %2044
    %v2046 = vsel %vm233, %v2039, 0
    %v2048 = vsel %vm233, %v2041, 0
    %v2050 = vsel %vm233, %v2043, 0
    %v2052 = vsel %vm233, %v2045, 0
    %2054 = vmatprep.subr.mxu0 0.0
    %2055 = vmatpush1.xpose.msra.mxu0 %v2050
    %2056 = vmatprep.subr.mxu0 0.0
    %2057 = vmatpush1.xpose.msra.mxu0 %v2052
    %2058 = vmatprep.subr.mxu0 0.0
    %2059 = vmatpush1.xpose.msra.mxu0 0.0
    %2060 = vmatprep.subr.mxu0 0.0
    %2061 = vmatpush1.xpose.msra.mxu0 0.0
    %2062 = vmatprep.subr.mxu0 0.0
    %2063 = vmatpush1.xpose.msra.mxu0 0.0
    %2064 = vmatprep.subr.mxu0 0.0
    %2065 = vmatpush1.xpose.msra.mxu0 0.0
    %2066 = vmatprep.subr.mxu0 0.0
    %2067 = vmatpush1.xpose.msra.mxu0 0.0
    %2068 = vmatprep.subr.mxu0 0.0
    %2069 = vmatpush1.xpose.msra.mxu0 0.0
    %2070 = vmatprep.subr.mxu0 0.0
    %2071 = vmatpush1.xpose.msra.mxu0 0.0
    %2072 = vmatprep.subr.mxu0 0.0
    %2073 = vmatpush1.xpose.msra.mxu0 0.0
    %2074 = vmatprep.subr.mxu0 0.0
    %2075 = vmatpush1.xpose.msra.mxu0 0.0
    %2076 = vmatprep.subr.mxu0 0.0
    %2077 = vmatpush1.xpose.msra.mxu0 0.0
    %2078 = vmatprep.subr.mxu0 0.0
    %2079 = vmatpush1.xpose.msra.mxu0 0.0
    %2080 = vmatprep.subr.mxu0 0.0
    %2081 = vmatpush1.xpose.msra.mxu0 0.0
    %2082 = vmatprep.subr.mxu0 0.0
    %2083 = vmatpush1.xpose.msra.mxu0 0.0
    %2084 = vmatprep.subr.mxu0 0.0
    %2085 = vmatpush1.xpose.msra.mxu0 0.0
    %2086 = vmatprep.subr.mxu0 0.0
    %2087 = vmatpush1.xpose.msra.mxu0 0.0
    %2088 = vmatprep.subr.mxu0 0.0
    %2089 = vmatpush1.xpose.msra.mxu0 0.0
    %2090 = vmatprep.subr.mxu0 0.0
    %2091 = vmatpush1.xpose.msra.mxu0 0.0
    %2092 = vmatprep.subr.mxu0 0.0
    %2093 = vmatpush1.xpose.msra.mxu0 0.0
    %2094 = vmatprep.subr.mxu0 0.0
    %2095 = vmatpush1.xpose.msra.mxu0 0.0
    %2096 = vmatprep.subr.mxu0 0.0
    %2097 = vmatpush1.xpose.msra.mxu0 0.0
    %2098 = vmatprep.subr.mxu0 0.0
    %2099 = vmatpush1.xpose.msra.mxu0 0.0
    %2100 = vmatprep.subr.mxu0 0.0
    %2101 = vmatpush1.xpose.msra.mxu0 0.0
    %2102 = vmatprep.subr.mxu0 0.0
    %2103 = vmatpush1.xpose.msra.mxu0 0.0
    %2104 = vmatprep.subr.mxu0 0.0
    %2105 = vmatpush1.xpose.msra.mxu0 0.0
    %2106 = vmatprep.subr.mxu0 0.0
    %2107 = vmatpush1.xpose.msra.mxu0 0.0
    %2108 = vmatprep.subr.mxu0 0.0
    %2109 = vmatpush1.xpose.msra.mxu0 0.0
    %2110 = vmatprep.subr.mxu0 0.0
    %2111 = vmatpush1.xpose.msra.mxu0 0.0
    %2112 = vmatprep.subr.mxu0 0.0
    %2113 = vmatpush1.xpose.msra.mxu0 0.0
    %2114 = vmatprep.subr.mxu0 0.0
    %2115 = vmatpush1.xpose.msra.mxu0 0.0
    %2116 = vmatprep.subr.mxu0 0.0
    %2117 = vmatpush1.xpose.msra.mxu0 0.0
    %2118 = vmatprep.mubr.f32.mxu0 0.0
    %2119 = vmatmul.mubr.f32.gmra.mrb[0].mxu0 %v2046
    %v2120 = vpop.f32.mrb[0].mxu0
    %v2121 = vadd.f32 0.0, %v2120
    %v2122 = vpop.f32.mrb[0].mxu0
    %2123 = vmatprep.mubr.f32.mxu0 0.0
    %2124 = vmatmul.mubr.f32.gmra.mrb[0].mxu0 %v2048
    %v2125 = vpop.f32.mrb[0].mxu0
    %v2126 = vadd.f32 0.0, %v2125
    %v2127 = vpop.f32.mrb[0].mxu0
    %2128 = vdwg.mxu0
    %v2129 = vmul.f32 %v2121, 0.25
    %v2130 = vmul.f32 %v2126, 0.25
    %v2131 = vadd.f32 %v2129, %v114
    %v2132 = vadd.f32 %v2130, %v115
    %v2133 = vsel %vm233, %v2131, -inf
    %2134 = vmax.xlane.f32.xlu0 %v2133
    %v2135 = vpop.xlane.xlu0 %2134
    %v2136 = vsel %vm233, %v2132, -inf
    %2137 = vmax.xlane.f32.xlu0 %v2136
    %v2138 = vpop.xlane.xlu0 %2137
    %v2139 = vsub.f32 %v2131, %v2135
    %v2140 = vsub.f32 %v2132, %v2138
    %v2141 = vmul.f32 %v2139, 1.442695
    %v2142 = vpow.pop %v2141
    %v2143 = vmul.f32 %v2140, 1.442695
    %v2144 = vpow.pop %v2143
    %v2145 = vsel %vm233, %v2142, 0.0
    %2146 = vadd.xlane.f32.xlu0 %v2145
    %v2147 = vpop.xlane.xlu0 %2146
    %v2148 = vsel %vm233, %v2144, 0.0
    %2149 = vadd.xlane.f32.xlu0 %v2148
    %v2150 = vpop.xlane.xlu0 %2149
    %v2151 = vrcp.pop %v2147
    %v2152 = vrcp.pop %v2150
    %v2153 = vmul.f32 %v2142, %v2151
    %v2154 = vmul.f32 %v2144, %v2152
    %2155 = vrot.lane.b32.xlu0 %v1616, 96
    %v2156 = vpop.permute.xlu0 %2155
    %2157 = vrot.lane.b32.xlu0 %v1622, 96
    %v2158 = vpop.permute.xlu0 %2157
    %v2162 = vsel %vm233, %v2153, 0
    %v2165 = vsel %vm233, %v2154, 0
    %2167 = vmatprep.subr.mxu0 0.0
    %2168 = vmatpush1.msra.mxu0 %v2156
    %2169 = vmatprep.subr.mxu0 0.0
    %2170 = vmatpush1.msra.mxu0 %v2158
    %2171 = vmatprep.subr.mxu0 0.0
    %2172 = vmatpush1.msra.mxu0 0.0
    %2173 = vmatprep.subr.mxu0 0.0
    %2174 = vmatpush1.msra.mxu0 0.0
    %2175 = vmatprep.subr.mxu0 0.0
    %2176 = vmatpush1.msra.mxu0 0.0
    %2177 = vmatprep.subr.mxu0 0.0
    %2178 = vmatpush1.msra.mxu0 0.0
    %2179 = vmatprep.subr.mxu0 0.0
    %2180 = vmatpush1.msra.mxu0 0.0
    %2181 = vmatprep.subr.mxu0 0.0
    %2182 = vmatpush1.msra.mxu0 0.0
    %2183 = vmatprep.subr.mxu0 0.0
    %2184 = vmatpush1.msra.mxu0 0.0
    %2185 = vmatprep.subr.mxu0 0.0
    %2186 = vmatpush1.msra.mxu0 0.0
    %2187 = vmatprep.subr.mxu0 0.0
    %2188 = vmatpush1.msra.mxu0 0.0
    %2189 = vmatprep.subr.mxu0 0.0
    %2190 = vmatpush1.msra.mxu0 0.0
    %2191 = vmatprep.subr.mxu0 0.0
    %2192 = vmatpush1.msra.mxu0 0.0
    %2193 = vmatprep.subr.mxu0 0.0
    %2194 = vmatpush1.msra.mxu0 0.0
    %2195 = vmatprep.subr.mxu0 0.0
    %2196 = vmatpush1.msra.mxu0 0.0
    %2197 = vmatprep.subr.mxu0 0.0
    %2198 = vmatpush1.msra.mxu0 0.0
    %2199 = vmatprep.subr.mxu0 0.0
    %2200 = vmatpush1.msra.mxu0 0.0
    %2201 = vmatprep.subr.mxu0 0.0
    %2202 = vmatpush1.msra.mxu0 0.0
    %2203 = vmatprep.subr.mxu0 0.0
    %2204 = vmatpush1.msra.mxu0 0.0
    %2205 = vmatprep.subr.mxu0 0.0
    %2206 = vmatpush1.msra.mxu0 0.0
    %2207 = vmatprep.subr.mxu0 0.0
    %2208 = vmatpush1.msra.mxu0 0.0
    %2209 = vmatprep.subr.mxu0 0.0
    %2210 = vmatpush1.msra.mxu0 0.0
    %2211 = vmatprep.subr.mxu0 0.0
    %2212 = vmatpush1.msra.mxu0 0.0
    %2213 = vmatprep.subr.mxu0 0.0
    %2214 = vmatpush1.msra.mxu0 0.0
    %2215 = vmatprep.subr.mxu0 0.0
    %2216 = vmatpush1.msra.mxu0 0.0
    %2217 = vmatprep.subr.mxu0 0.0
    %2218 = vmatpush1.msra.mxu0 0.0
    %2219 = vmatprep.subr.mxu0 0.0
    %2220 = vmatpush1.msra.mxu0 0.0
    %2221 = vmatprep.subr.mxu0 0.0
    %2222 = vmatpush1.msra.mxu0 0.0
    %2223 = vmatprep.subr.mxu0 0.0
    %2224 = vmatpush1.msra.mxu0 0.0
    %2225 = vmatprep.subr.mxu0 0.0
    %2226 = vmatpush1.msra.mxu0 0.0
    %2227 = vmatprep.subr.mxu0 0.0
    %2228 = vmatpush1.msra.mxu0 0.0
    %2229 = vmatprep.subr.mxu0 0.0
    %2230 = vmatpush1.msra.mxu0 0.0
    %2231 = vmatprep.mubr.f32.mxu0 0.0
    %2232 = vmatmul.mubr.f32.gmra.mrb[0].mxu0 %v2162
    %v2233 = vpop.f32.mrb[0].mxu0
    %v2234 = vadd.f32 0.0, %v2233
    %v2235 = vpop.f32.mrb[0].mxu0
    %2236 = vmatprep.mubr.f32.mxu0 0.0
    %2237 = vmatmul.mubr.f32.gmra.mrb[0].mxu0 %v2165
    %v2238 = vpop.f32.mrb[0].mxu0
    %v2239 = vadd.f32 0.0, %v2238
    %v2240 = vpop.f32.mrb[0].mxu0
    %2241 = vdwg.mxu0
    %2244 = vrot.lane.b32.xlu0 %v2234, 32
    %v2245 = vpop.permute.xlu0 %2244
    %2246 = vrot.lane.b32.xlu0 %v2239, 32
    %v2247 = vpop.permute.xlu0 %2246
    %2250 = vst.msk [vmem:[#allocation2] sm:$0xff] %vm855, %v2245
    %2251 = vst.msk [vmem:[#allocation2 + $0x8] sm:$0xff] %vm855, %v2247
    %2252 = vrot.lane.b32.xlu0 %v1614, 80
    %v2253 = vpop.permute.xlu0 %2252
    %2254 = vrot.lane.b32.xlu0 %v1620, 80
    %v2255 = vpop.permute.xlu0 %2254
    %2256 = vrot.lane.b32.xlu0 %v1614, 16
    %v2257 = vpop.permute.xlu0 %2256
    %2258 = vrot.lane.b32.xlu0 %v1620, 16
    %v2259 = vpop.permute.xlu0 %2258
    %v2260 = vsel %vm233, %v2253, 0
    %v2262 = vsel %vm233, %v2255, 0
    %v2264 = vsel %vm233, %v2257, 0
    %v2266 = vsel %vm233, %v2259, 0
    %2268 = vmatprep.subr.mxu0 0.0
    %2269 = vmatpush1.xpose.msra.mxu0 %v2264
    %2270 = vmatprep.subr.mxu0 0.0
    %2271 = vmatpush1.xpose.msra.mxu0 %v2266
    %2272 = vmatprep.subr.mxu0 0.0
    %2273 = vmatpush1.xpose.msra.mxu0 0.0
    %2274 = vmatprep.subr.mxu0 0.0
    %2275 = vmatpush1.xpose.msra.mxu0 0.0
    %2276 = vmatprep.subr.mxu0 0.0
    %2277 = vmatpush1.xpose.msra.mxu0 0.0
    %2278 = vmatprep.subr.mxu0 0.0
    %2279 = vmatpush1.xpose.msra.mxu0 0.0
    %2280 = vmatprep.subr.mxu0 0.0
    %2281 = vmatpush1.xpose.msra.mxu0 0.0
    %2282 = vmatprep.subr.mxu0 0.0
    %2283 = vmatpush1.xpose.msra.mxu0 0.0
    %2284 = vmatprep.subr.mxu0 0.0
    %2285 = vmatpush1.xpose.msra.mxu0 0.0
    %2286 = vmatprep.subr.mxu0 0.0
    %2287 = vmatpush1.xpose.msra.mxu0 0.0
    %2288 = vmatprep.subr.mxu0 0.0
    %2289 = vmatpush1.xpose.msra.mxu0 0.0
    %2290 = vmatprep.subr.mxu0 0.0
    %2291 = vmatpush1.xpose.msra.mxu0 0.0
    %2292 = vmatprep.subr.mxu0 0.0
    %2293 = vmatpush1.xpose.msra.mxu0 0.0
    %2294 = vmatprep.subr.mxu0 0.0
    %2295 = vmatpush1.xpose.msra.mxu0 0.0
    %2296 = vmatprep.subr.mxu0 0.0
    %2297 = vmatpush1.xpose.msra.mxu0 0.0
    %2298 = vmatprep.subr.mxu0 0.0
    %2299 = vmatpush1.xpose.msra.mxu0 0.0
    %2300 = vmatprep.subr.mxu0 0.0
    %2301 = vmatpush1.xpose.msra.mxu0 0.0
    %2302 = vmatprep.subr.mxu0 0.0
    %2303 = vmatpush1.xpose.msra.mxu0 0.0
    %2304 = vmatprep.subr.mxu0 0.0
    %2305 = vmatpush1.xpose.msra.mxu0 0.0
    %2306 = vmatprep.subr.mxu0 0.0
    %2307 = vmatpush1.xpose.msra.mxu0 0.0
    %2308 = vmatprep.subr.mxu0 0.0
    %2309 = vmatpush1.xpose.msra.mxu0 0.0
    %2310 = vmatprep.subr.mxu0 0.0
    %2311 = vmatpush1.xpose.msra.mxu0 0.0
    %2312 = vmatprep.subr.mxu0 0.0
    %2313 = vmatpush1.xpose.msra.mxu0 0.0
    %2314 = vmatprep.subr.mxu0 0.0
    %2315 = vmatpush1.xpose.msra.mxu0 0.0
    %2316 = vmatprep.subr.mxu0 0.0
    %2317 = vmatpush1.xpose.msra.mxu0 0.0
    %2318 = vmatprep.subr.mxu0 0.0
    %2319 = vmatpush1.xpose.msra.mxu0 0.0
    %2320 = vmatprep.subr.mxu0 0.0
    %2321 = vmatpush1.xpose.msra.mxu0 0.0
    %2322 = vmatprep.subr.mxu0 0.0
    %2323 = vmatpush1.xpose.msra.mxu0 0.0
    %2324 = vmatprep.subr.mxu0 0.0
    %2325 = vmatpush1.xpose.msra.mxu0 0.0
    %2326 = vmatprep.subr.mxu0 0.0
    %2327 = vmatpush1.xpose.msra.mxu0 0.0
    %2328 = vmatprep.subr.mxu0 0.0
    %2329 = vmatpush1.xpose.msra.mxu0 0.0
    %2330 = vmatprep.subr.mxu0 0.0
    %2331 = vmatpush1.xpose.msra.mxu0 0.0
    %2332 = vmatprep.mubr.f32.mxu0 0.0
    %2333 = vmatmul.mubr.f32.gmra.mrb[0].mxu0 %v2260
    %v2334 = vpop.f32.mrb[0].mxu0
    %v2335 = vadd.f32 0.0, %v2334
    %v2336 = vpop.f32.mrb[0].mxu0
    %2337 = vmatprep.mubr.f32.mxu0 0.0
    %2338 = vmatmul.mubr.f32.gmra.mrb[0].mxu0 %v2262
    %v2339 = vpop.f32.mrb[0].mxu0
    %v2340 = vadd.f32 0.0, %v2339
    %v2341 = vpop.f32.mrb[0].mxu0
    %2342 = vdwg.mxu0
    %v2343 = vmul.f32 %v2335, 0.25
    %v2344 = vmul.f32 %v2340, 0.25
    %v2345 = vadd.f32 %v2343, %v114
    %v2346 = vadd.f32 %v2344, %v115
    %v2347 = vsel %vm233, %v2345, -inf
    %2348 = vmax.xlane.f32.xlu0 %v2347
    %v2349 = vpop.xlane.xlu0 %2348
    %v2350 = vsel %vm233, %v2346, -inf
    %2351 = vmax.xlane.f32.xlu0 %v2350
    %v2352 = vpop.xlane.xlu0 %2351
    %v2353 = vsub.f32 %v2345, %v2349
    %v2354 = vsub.f32 %v2346, %v2352
    %v2355 = vmul.f32 %v2353, 1.442695
    %v2356 = vpow.pop %v2355
    %v2357 = vmul.f32 %v2354, 1.442695
    %v2358 = vpow.pop %v2357
    %v2359 = vsel %vm233, %v2356, 0.0
    %2360 = vadd.xlane.f32.xlu0 %v2359
    %v2361 = vpop.xlane.xlu0 %2360
    %v2362 = vsel %vm233, %v2358, 0.0
    %2363 = vadd.xlane.f32.xlu0 %v2362
    %v2364 = vpop.xlane.xlu0 %2363
    %v2365 = vrcp.pop %v2361
    %v2366 = vrcp.pop %v2364
    %v2367 = vmul.f32 %v2356, %v2365
    %v2368 = vmul.f32 %v2358, %v2366
    %2369 = vrot.lane.b32.xlu0 %v1616, 80
    %v2370 = vpop.permute.xlu0 %2369
    %2371 = vrot.lane.b32.xlu0 %v1622, 80
    %v2372 = vpop.permute.xlu0 %2371
    %v2376 = vsel %vm233, %v2367, 0
    %v2379 = vsel %vm233, %v2368, 0
    %2381 = vmatprep.subr.mxu0 0.0
    %2382 = vmatpush1.msra.mxu0 %v2370
    %2383 = vmatprep.subr.mxu0 0.0
    %2384 = vmatpush1.msra.mxu0 %v2372
    %2385 = vmatprep.subr.mxu0 0.0
    %2386 = vmatpush1.msra.mxu0 0.0
    %2387 = vmatprep.subr.mxu0 0.0
    %2388 = vmatpush1.msra.mxu0 0.0
    %2389 = vmatprep.subr.mxu0 0.0
    %2390 = vmatpush1.msra.mxu0 0.0
    %2391 = vmatprep.subr.mxu0 0.0
    %2392 = vmatpush1.msra.mxu0 0.0
    %2393 = vmatprep.subr.mxu0 0.0
    %2394 = vmatpush1.msra.mxu0 0.0
    %2395 = vmatprep.subr.mxu0 0.0
    %2396 = vmatpush1.msra.mxu0 0.0
    %2397 = vmatprep.subr.mxu0 0.0
    %2398 = vmatpush1.msra.mxu0 0.0
    %2399 = vmatprep.subr.mxu0 0.0
    %2400 = vmatpush1.msra.mxu0 0.0
    %2401 = vmatprep.subr.mxu0 0.0
    %2402 = vmatpush1.msra.mxu0 0.0
    %2403 = vmatprep.subr.mxu0 0.0
    %2404 = vmatpush1.msra.mxu0 0.0
    %2405 = vmatprep.subr.mxu0 0.0
    %2406 = vmatpush1.msra.mxu0 0.0
    %2407 = vmatprep.subr.mxu0 0.0
    %2408 = vmatpush1.msra.mxu0 0.0
    %2409 = vmatprep.subr.mxu0 0.0
    %2410 = vmatpush1.msra.mxu0 0.0
    %2411 = vmatprep.subr.mxu0 0.0
    %2412 = vmatpush1.msra.mxu0 0.0
    %2413 = vmatprep.subr.mxu0 0.0
    %2414 = vmatpush1.msra.mxu0 0.0
    %2415 = vmatprep.subr.mxu0 0.0
    %2416 = vmatpush1.msra.mxu0 0.0
    %2417 = vmatprep.subr.mxu0 0.0
    %2418 = vmatpush1.msra.mxu0 0.0
    %2419 = vmatprep.subr.mxu0 0.0
    %2420 = vmatpush1.msra.mxu0 0.0
    %2421 = vmatprep.subr.mxu0 0.0
    %2422 = vmatpush1.msra.mxu0 0.0
    %2423 = vmatprep.subr.mxu0 0.0
    %2424 = vmatpush1.msra.mxu0 0.0
    %2425 = vmatprep.subr.mxu0 0.0
    %2426 = vmatpush1.msra.mxu0 0.0
    %2427 = vmatprep.subr.mxu0 0.0
    %2428 = vmatpush1.msra.mxu0 0.0
    %2429 = vmatprep.subr.mxu0 0.0
    %2430 = vmatpush1.msra.mxu0 0.0
    %2431 = vmatprep.subr.mxu0 0.0
    %2432 = vmatpush1.msra.mxu0 0.0
    %2433 = vmatprep.subr.mxu0 0.0
    %2434 = vmatpush1.msra.mxu0 0.0
    %2435 = vmatprep.subr.mxu0 0.0
    %2436 = vmatpush1.msra.mxu0 0.0
    %2437 = vmatprep.subr.mxu0 0.0
    %2438 = vmatpush1.msra.mxu0 0.0
    %2439 = vmatprep.subr.mxu0 0.0
    %2440 = vmatpush1.msra.mxu0 0.0
    %2441 = vmatprep.subr.mxu0 0.0
    %2442 = vmatpush1.msra.mxu0 0.0
    %2443 = vmatprep.subr.mxu0 0.0
    %2444 = vmatpush1.msra.mxu0 0.0
    %2445 = vmatprep.mubr.f32.mxu0 0.0
    %2446 = vmatmul.mubr.f32.gmra.mrb[0].mxu0 %v2376
    %v2447 = vpop.f32.mrb[0].mxu0
    %v2448 = vadd.f32 0.0, %v2447
    %v2449 = vpop.f32.mrb[0].mxu0
    %2450 = vmatprep.mubr.f32.mxu0 0.0
    %2451 = vmatmul.mubr.f32.gmra.mrb[0].mxu0 %v2379
    %v2452 = vpop.f32.mrb[0].mxu0
    %v2453 = vadd.f32 0.0, %v2452
    %v2454 = vpop.f32.mrb[0].mxu0
    %2455 = vdwg.mxu0
    %2458 = vrot.lane.b32.xlu0 %v2448, 48
    %v2459 = vpop.permute.xlu0 %2458
    %2460 = vrot.lane.b32.xlu0 %v2453, 48
    %v2461 = vpop.permute.xlu0 %2460
    %2464 = vst.msk [vmem:[#allocation2] sm:$0xff] %vm1070, %v2459
    %2465 = vst.msk [vmem:[#allocation2 + $0x8] sm:$0xff] %vm1070, %v2461
    %v2466 = vld [vmem:[#allocation2] sm:$0xff]
    %v2467 = vld [vmem:[#allocation2 + $0x8] sm:$0xff]
    %s2468 = scalar_lea.vmem %s6, 64
    %v2469 = vld [vmem:[%s2468] sm:$0xff]
    %v2470 = vld [vmem:[%s2468 + $0x8] sm:$0xff]
    %v2471 = vld [vmem:[%s2468 + $0x10] sm:$0xff]
    %v2472 = vld [vmem:[%s2468 + $0x18] sm:$0xff]
    %v2473 = vld [vmem:[%s2468 + $0x20] sm:$0xff]
    %v2474 = vld [vmem:[%s2468 + $0x28] sm:$0xff]
    %v2475 = vld [vmem:[%s2468 + $0x30] sm:$0xff]
    %v2476 = vld [vmem:[%s2468 + $0x38] sm:$0xff]
    %s2477 = scalar_lea.vmem %s7, 1
    %v2478 = vld [vmem:[%s2477] sm:$0x1]
    %v2480 = vlaneseq
    %v2481 = vshrl.u32 %v2480, 7
    %v2482 = vsub.s32 0, %v2481
    %v2483 = vrot.slane %v2478, %v2482
    %v2486 = vsel %vm70, %v2466, 0
    %v2489 = vsel %vm70, %v2467, 0
    %2491 = vmatprep.subr.mxu0 0.0
    %2492 = vmatpush1.msra.mxu0 %v2469
    %2493 = vmatprep.subr.mxu0 0.0
    %2494 = vmatpush1.msra.mxu0 %v2470
    %2495 = vmatprep.subr.mxu0 0.0
    %2496 = vmatpush1.msra.mxu0 %v2471
    %2497 = vmatprep.subr.mxu0 0.0
    %2498 = vmatpush1.msra.mxu0 %v2472
    %2499 = vmatprep.subr.mxu0 0.0
    %2500 = vmatpush1.msra.mxu0 %v2473
    %2501 = vmatprep.subr.mxu0 0.0
    %2502 = vmatpush1.msra.mxu0 %v2474
    %2503 = vmatprep.subr.mxu0 0.0
    %2504 = vmatpush1.msra.mxu0 %v2475
    %2505 = vmatprep.subr.mxu0 0.0
    %2506 = vmatpush1.msra.mxu0 %v2476
    %2507 = vmatprep.subr.mxu0 0.0
    %2508 = vmatpush1.msra.mxu0 0.0
    %2509 = vmatprep.subr.mxu0 0.0
    %2510 = vmatpush1.msra.mxu0 0.0
    %2511 = vmatprep.subr.mxu0 0.0
    %2512 = vmatpush1.msra.mxu0 0.0
    %2513 = vmatprep.subr.mxu0 0.0
    %2514 = vmatpush1.msra.mxu0 0.0
    %2515 = vmatprep.subr.mxu0 0.0
    %2516 = vmatpush1.msra.mxu0 0.0
    %2517 = vmatprep.subr.mxu0 0.0
    %2518 = vmatpush1.msra.mxu0 0.0
    %2519 = vmatprep.subr.mxu0 0.0
    %2520 = vmatpush1.msra.mxu0 0.0
    %2521 = vmatprep.subr.mxu0 0.0
    %2522 = vmatpush1.msra.mxu0 0.0
    %2523 = vmatprep.subr.mxu0 0.0
    %2524 = vmatpush1.msra.mxu0 0.0
    %2525 = vmatprep.subr.mxu0 0.0
    %2526 = vmatpush1.msra.mxu0 0.0
    %2527 = vmatprep.subr.mxu0 0.0
    %2528 = vmatpush1.msra.mxu0 0.0
    %2529 = vmatprep.subr.mxu0 0.0
    %2530 = vmatpush1.msra.mxu0 0.0
    %2531 = vmatprep.subr.mxu0 0.0
    %2532 = vmatpush1.msra.mxu0 0.0
    %2533 = vmatprep.subr.mxu0 0.0
    %2534 = vmatpush1.msra.mxu0 0.0
    %2535 = vmatprep.subr.mxu0 0.0
    %2536 = vmatpush1.msra.mxu0 0.0
    %2537 = vmatprep.subr.mxu0 0.0
    %2538 = vmatpush1.msra.mxu0 0.0
    %2539 = vmatprep.subr.mxu0 0.0
    %2540 = vmatpush1.msra.mxu0 0.0
    %2541 = vmatprep.subr.mxu0 0.0
    %2542 = vmatpush1.msra.mxu0 0.0
    %2543 = vmatprep.subr.mxu0 0.0
    %2544 = vmatpush1.msra.mxu0 0.0
    %2545 = vmatprep.subr.mxu0 0.0
    %2546 = vmatpush1.msra.mxu0 0.0
    %2547 = vmatprep.subr.mxu0 0.0
    %2548 = vmatpush1.msra.mxu0 0.0
    %2549 = vmatprep.subr.mxu0 0.0
    %2550 = vmatpush1.msra.mxu0 0.0
    %2551 = vmatprep.subr.mxu0 0.0
    %2552 = vmatpush1.msra.mxu0 0.0
    %2553 = vmatprep.subr.mxu0 0.0
    %2554 = vmatpush1.msra.mxu0 0.0
    %2555 = vmatprep.mubr.f32.mxu0 0.0
    %2556 = vmatmul.mubr.f32.gmra.mrb[0].mxu0 %v2486
    %v2557 = vpop.f32.mrb[0].mxu0
    %v2558 = vadd.f32 %v2483, %v2557
    %v2559 = vpop.f32.mrb[0].mxu0
    %2560 = vmatprep.mubr.f32.mxu0 0.0
    %2561 = vmatmul.mubr.f32.gmra.mrb[0].mxu0 %v2489
    %v2562 = vpop.f32.mrb[0].mxu0
    %v2563 = vadd.f32 %v2483, %v2562
    %v2564 = vpop.f32.mrb[0].mxu0
    %2565 = vdwg.mxu0
    %v2566 = vadd.f32 %v2558, %v1509
    %v2567 = vadd.f32 %v2563, %v1510
    %s2568 = scalar_lea.vmem %s8, 1
    %v2569 = vld [vmem:[%s2568] sm:$0x1]
    %s2570 = scalar_lea.vmem %s9, 1
    %v2571 = vld [vmem:[%s2570] sm:$0x1]
    %v2572 = vsel %vm70, %v2566, 0.0
    %2573 = vadd.xlane.f32.xlu0 %v2572
    %v2574 = vpop.xlane.xlu0 %2573
    %v2575 = vsel %vm70, %v2567, 0.0
    %2576 = vadd.xlane.f32.xlu0 %v2575
    %v2577 = vpop.xlane.xlu0 %2576
    %v2578 = vmul.f32 %v2574, %v77
    %v2579 = vmul.f32 %v2577, %v77
    %v2580 = vsub.f32 %v2566, %v2578
    %v2581 = vsub.f32 %v2567, %v2579
    %v2582 = vmul.f32 %v2580, %v2580
    %v2583 = vmul.f32 %v2581, %v2581
    %v2584 = vsel %vm70, %v2582, 0.0
    %2585 = vadd.xlane.f32.xlu0 %v2584
    %v2586 = vpop.xlane.xlu0 %2585
    %v2587 = vsel %vm70, %v2583, 0.0
    %2588 = vadd.xlane.f32.xlu0 %v2587
    %v2589 = vpop.xlane.xlu0 %2588
    %v2590 = vmul.f32 %v2586, %v77
    %v2591 = vmul.f32 %v2589, %v77
    %v2592 = vadd.f32 %v2590, 1e-05
    %v2593 = vadd.f32 %v2591, 1e-05
    %v2594 = vrsqrt.pop %v2592
    %v2595 = vrsqrt.pop %v2593
    %v2596 = vmul.f32 %v2580, %v2594
    %v2597 = vmul.f32 %v2581, %v2595
    %v2599 = vlaneseq
    %v2600 = vshrl.u32 %v2599, 7
    %v2601 = vsub.s32 0, %v2600
    %v2602 = vrot.slane %v2569, %v2601
    %v2604 = vmul.f32 %v2596, %v2602
    %v2605 = vmul.f32 %v2597, %v2602
    %v2607 = vlaneseq
    %v2608 = vshrl.u32 %v2607, 7
    %v2609 = vsub.s32 0, %v2608
    %v2610 = vrot.slane %v2571, %v2609
    %v2612 = vadd.f32 %v2604, %v2610
    %v2613 = vadd.f32 %v2605, %v2610
    %s2614 = scalar_lea.vmem %s10, 64
    %v2615 = vld [vmem:[%s2614] sm:$0xff]
    %v2616 = vld [vmem:[%s2614 + $0x8] sm:$0xff]
    %v2617 = vld [vmem:[%s2614 + $0x10] sm:$0xff]
    %v2618 = vld [vmem:[%s2614 + $0x18] sm:$0xff]
    %v2619 = vld [vmem:[%s2614 + $0x20] sm:$0xff]
    %v2620 = vld [vmem:[%s2614 + $0x28] sm:$0xff]
    %v2621 = vld [vmem:[%s2614 + $0x30] sm:$0xff]
    %v2622 = vld [vmem:[%s2614 + $0x38] sm:$0xff]
    %s2623 = scalar_lea.vmem %s11, 1
    %v2624 = vld [vmem:[%s2623] sm:$0x1]
    %v2626 = vlaneseq
    %v2627 = vshrl.u32 %v2626, 7
    %v2628 = vsub.s32 0, %v2627
    %v2629 = vrot.slane %v2624, %v2628
    %v2632 = vsel %vm70, %v2612, 0
    %v2635 = vsel %vm70, %v2613, 0
    %2637 = vmatprep.subr.mxu0 0.0
    %2638 = vmatpush1.msra.mxu0 %v2615
    %2639 = vmatprep.subr.mxu0 0.0
    %2640 = vmatpush1.msra.mxu0 %v2616
    %2641 = vmatprep.subr.mxu0 0.0
    %2642 = vmatpush1.msra.mxu0 %v2617
    %2643 = vmatprep.subr.mxu0 0.0
    %2644 = vmatpush1.msra.mxu0 %v2618
    %2645 = vmatprep.subr.mxu0 0.0
    %2646 = vmatpush1.msra.mxu0 %v2619
    %2647 = vmatprep.subr.mxu0 0.0
    %2648 = vmatpush1.msra.mxu0 %v2620
    %2649 = vmatprep.subr.mxu0 0.0
    %2650 = vmatpush1.msra.mxu0 %v2621
    %2651 = vmatprep.subr.mxu0 0.0
    %2652 = vmatpush1.msra.mxu0 %v2622
    %2653 = vmatprep.subr.mxu0 0.0
    %2654 = vmatpush1.msra.mxu0 0.0
    %2655 = vmatprep.subr.mxu0 0.0
    %2656 = vmatpush1.msra.mxu0 0.0
    %2657 = vmatprep.subr.mxu0 0.0
    %2658 = vmatpush1.msra.mxu0 0.0
    %2659 = vmatprep.subr.mxu0 0.0
    %2660 = vmatpush1.msra.mxu0 0.0
    %2661 = vmatprep.subr.mxu0 0.0
    %2662 = vmatpush1.msra.mxu0 0.0
    %2663 = vmatprep.subr.mxu0 0.0
    %2664 = vmatpush1.msra.mxu0 0.0
    %2665 = vmatprep.subr.mxu0 0.0
    %2666 = vmatpush1.msra.mxu0 0.0
    %2667 = vmatprep.subr.mxu0 0.0
    %2668 = vmatpush1.msra.mxu0 0.0
    %2669 = vmatprep.subr.mxu0 0.0
    %2670 = vmatpush1.msra.mxu0 0.0
    %2671 = vmatprep.subr.mxu0 0.0
    %2672 = vmatpush1.msra.mxu0 0.0
    %2673 = vmatprep.subr.mxu0 0.0
    %2674 = vmatpush1.msra.mxu0 0.0
    %2675 = vmatprep.subr.mxu0 0.0
    %2676 = vmatpush1.msra.mxu0 0.0
    %2677 = vmatprep.subr.mxu0 0.0
    %2678 = vmatpush1.msra.mxu0 0.0
    %2679 = vmatprep.subr.mxu0 0.0
    %2680 = vmatpush1.msra.mxu0 0.0
    %2681 = vmatprep.subr.mxu0 0.0
    %2682 = vmatpush1.msra.mxu0 0.0
    %2683 = vmatprep.subr.mxu0 0.0
    %2684 = vmatpush1.msra.mxu0 0.0
    %2685 = vmatprep.subr.mxu0 0.0
    %2686 = vmatpush1.msra.mxu0 0.0
    %2687 = vmatprep.subr.mxu0 0.0
    %2688 = vmatpush1.msra.mxu0 0.0
    %2689 = vmatprep.subr.mxu0 0.0
    %2690 = vmatpush1.msra.mxu0 0.0
    %2691 = vmatprep.subr.mxu0 0.0
    %2692 = vmatpush1.msra.mxu0 0.0
    %2693 = vmatprep.subr.mxu0 0.0
    %2694 = vmatpush1.msra.mxu0 0.0
    %2695 = vmatprep.subr.mxu0 0.0
    %2696 = vmatpush1.msra.mxu0 0.0
    %2697 = vmatprep.subr.mxu0 0.0
    %2698 = vmatpush1.msra.mxu0 0.0
    %2699 = vmatprep.subr.mxu0 0.0
    %2700 = vmatpush1.msra.mxu0 0.0
    %2701 = vmatprep.mubr.f32.mxu0 0.0
    %2702 = vmatmul.mubr.f32.gmra.mrb[0].mxu0 %v2632
    %v2703 = vpop.f32.mrb[0].mxu0
    %v2704 = vadd.f32 %v2629, %v2703
    %v2705 = vpop.f32.mrb[0].mxu0
    %2706 = vmatprep.mubr.f32.mxu0 0.0
    %2707 = vmatmul.mubr.f32.gmra.mrb[0].mxu0 %v2635
    %v2708 = vpop.f32.mrb[0].mxu0
    %v2709 = vadd.f32 %v2629, %v2708
    %v2710 = vpop.f32.mrb[0].mxu0
    %2711 = vdwg.mxu0
    %v2712 = vmul.f32 %v2704, 0.5
    %v2713 = vmul.f32 %v2709, 0.5
    %v2714 = vmul.f32 %v2704, 0.70710677
    %v2715 = vmul.f32 %v2709, 0.70710677
    %vm2716 = vcmp.ge.f32.partialorder %v2714, 0.0
    %vm2717 = vcmp.ge.f32.partialorder %v2715, 0.0
    %v2718 = vsel %vm2716, 1.0, -1.0
    %v2719 = vsel %vm2717, 1.0, -1.0
    %v2720 = vand.u32 2147483647, %v2714
    %v2721 = vand.u32 2147483647, %v2715
    %v2722 = vmul.f32 %v2720, 0.3275911
    %v2723 = vmul.f32 %v2721, 0.3275911
    %v2724 = vadd.f32 %v2722, 1.0
    %v2725 = vadd.f32 %v2723, 1.0
    %v2726 = vrcp.pop %v2724
    %v2727 = vmul.f32 1.0, %v2726
    %v2728 = vrcp.pop %v2725
    %v2729 = vmul.f32 1.0, %v2728
    %v2730 = vmul.f32 %v2727, 1.0614054
    %v2731 = vmul.f32 %v2729, 1.0614054
    %v2732 = vadd.f32 %v2730, -1.4531521
    %v2733 = vadd.f32 %v2731, -1.4531521
    %v2734 = vmul.f32 %v2727, %v2732
    %v2735 = vmul.f32 %v2729, %v2733
    %v2736 = vadd.f32 %v2734, 1.4214138
    %v2737 = vadd.f32 %v2735, 1.4214138
    %v2738 = vmul.f32 %v2727, %v2736
    %v2739 = vmul.f32 %v2729, %v2737
    %v2740 = vadd.f32 %v2738, -0.28449672
    %v2741 = vadd.f32 %v2739, -0.28449672
    %v2742 = vmul.f32 %v2727, %v2740
    %v2743 = vmul.f32 %v2729, %v2741
    %v2744 = vadd.f32 %v2742, 0.2548296
    %v2745 = vadd.f32 %v2743, 0.2548296
    %v2746 = vmul.f32 %v2727, %v2744
    %v2747 = vmul.f32 %v2729, %v2745
    %v2748 = vsub.f32 0.0, %v2720
    %v2749 = vsub.f32 0.0, %v2721
    %v2750 = vmul.f32 %v2748, %v2720
    %v2751 = vmul.f32 %v2749, %v2721
    %v2752 = vmul.f32 %v2750, 1.442695
    %v2753 = vpow.pop %v2752
    %v2754 = vmul.f32 %v2751, 1.442695
    %v2755 = vpow.pop %v2754
    %v2756 = vmul.f32 %v2746, %v2753
    %v2757 = vmul.f32 %v2747, %v2755
    %v2758 = vsub.f32 1.0, %v2756
    %v2759 = vsub.f32 1.0, %v2757
    %v2760 = vmul.f32 %v2718, %v2758
    %v2761 = vmul.f32 %v2719, %v2759
    %v2762 = vadd.f32 %v2760, 1.0
    %v2763 = vadd.f32 %v2761, 1.0
    %v2764 = vmul.f32 %v2712, %v2762
    %v2765 = vmul.f32 %v2713, %v2763
    %s2766 = scalar_lea.vmem %s12, 128
    %v2767 = vld [vmem:[%s2766] sm:$0xff]
    %v2768 = vld [vmem:[%s2766 + $0x8] sm:$0xff]
    %v2769 = vld [vmem:[%s2766 + $0x10] sm:$0xff]
    %v2770 = vld [vmem:[%s2766 + $0x18] sm:$0xff]
    %v2771 = vld [vmem:[%s2766 + $0x20] sm:$0xff]
    %v2772 = vld [vmem:[%s2766 + $0x28] sm:$0xff]
    %v2773 = vld [vmem:[%s2766 + $0x30] sm:$0xff]
    %v2774 = vld [vmem:[%s2766 + $0x38] sm:$0xff]
    %v2775 = vld [vmem:[%s2766 + $0x40] sm:$0xff]
    %v2776 = vld [vmem:[%s2766 + $0x48] sm:$0xff]
    %v2777 = vld [vmem:[%s2766 + $0x50] sm:$0xff]
    %v2778 = vld [vmem:[%s2766 + $0x58] sm:$0xff]
    %v2779 = vld [vmem:[%s2766 + $0x60] sm:$0xff]
    %v2780 = vld [vmem:[%s2766 + $0x68] sm:$0xff]
    %v2781 = vld [vmem:[%s2766 + $0x70] sm:$0xff]
    %v2782 = vld [vmem:[%s2766 + $0x78] sm:$0xff]
    %s2783 = scalar_lea.vmem %s13, 1
    %v2784 = vld [vmem:[%s2783] sm:$0x1]
    %v2786 = vlaneseq
    %v2787 = vshrl.u32 %v2786, 7
    %v2788 = vsub.s32 0, %v2787
    %v2789 = vrot.slane %v2784, %v2788
    %2791 = vmatprep.subr.mxu0 0.0
    %2792 = vmatpush1.msra.mxu0 %v2767
    %2793 = vmatprep.subr.mxu0 0.0
    %2794 = vmatpush1.msra.mxu0 %v2768
    %2795 = vmatprep.subr.mxu0 0.0
    %2796 = vmatpush1.msra.mxu0 %v2769
    %2797 = vmatprep.subr.mxu0 0.0
    %2798 = vmatpush1.msra.mxu0 %v2770
    %2799 = vmatprep.subr.mxu0 0.0
    %2800 = vmatpush1.msra.mxu0 %v2771
    %2801 = vmatprep.subr.mxu0 0.0
    %2802 = vmatpush1.msra.mxu0 %v2772
    %2803 = vmatprep.subr.mxu0 0.0
    %2804 = vmatpush1.msra.mxu0 %v2773
    %2805 = vmatprep.subr.mxu0 0.0
    %2806 = vmatpush1.msra.mxu0 %v2774
    %2807 = vmatprep.subr.mxu0 0.0
    %2808 = vmatpush1.msra.mxu0 %v2775
    %2809 = vmatprep.subr.mxu0 0.0
    %2810 = vmatpush1.msra.mxu0 %v2776
    %2811 = vmatprep.subr.mxu0 0.0
    %2812 = vmatpush1.msra.mxu0 %v2777
    %2813 = vmatprep.subr.mxu0 0.0
    %2814 = vmatpush1.msra.mxu0 %v2778
    %2815 = vmatprep.subr.mxu0 0.0
    %2816 = vmatpush1.msra.mxu0 %v2779
    %2817 = vmatprep.subr.mxu0 0.0
    %2818 = vmatpush1.msra.mxu0 %v2780
    %2819 = vmatprep.subr.mxu0 0.0
    %2820 = vmatpush1.msra.mxu0 %v2781
    %2821 = vmatprep.subr.mxu0 0.0
    %2822 = vmatpush1.msra.mxu0 %v2782
    %2823 = vmatprep.subr.mxu0 0.0
    %2824 = vmatpush1.msra.mxu0 0.0
    %2825 = vmatprep.subr.mxu0 0.0
    %2826 = vmatpush1.msra.mxu0 0.0
    %2827 = vmatprep.subr.mxu0 0.0
    %2828 = vmatpush1.msra.mxu0 0.0
    %2829 = vmatprep.subr.mxu0 0.0
    %2830 = vmatpush1.msra.mxu0 0.0
    %2831 = vmatprep.subr.mxu0 0.0
    %2832 = vmatpush1.msra.mxu0 0.0
    %2833 = vmatprep.subr.mxu0 0.0
    %2834 = vmatpush1.msra.mxu0 0.0
    %2835 = vmatprep.subr.mxu0 0.0
    %2836 = vmatpush1.msra.mxu0 0.0
    %2837 = vmatprep.subr.mxu0 0.0
    %2838 = vmatpush1.msra.mxu0 0.0
    %2839 = vmatprep.subr.mxu0 0.0
    %2840 = vmatpush1.msra.mxu0 0.0
    %2841 = vmatprep.subr.mxu0 0.0
    %2842 = vmatpush1.msra.mxu0 0.0
    %2843 = vmatprep.subr.mxu0 0.0
    %2844 = vmatpush1.msra.mxu0 0.0
    %2845 = vmatprep.subr.mxu0 0.0
    %2846 = vmatpush1.msra.mxu0 0.0
    %2847 = vmatprep.subr.mxu0 0.0
    %2848 = vmatpush1.msra.mxu0 0.0
    %2849 = vmatprep.subr.mxu0 0.0
    %2850 = vmatpush1.msra.mxu0 0.0
    %2851 = vmatprep.subr.mxu0 0.0
    %2852 = vmatpush1.msra.mxu0 0.0
    %2853 = vmatprep.subr.mxu0 0.0
    %2854 = vmatpush1.msra.mxu0 0.0
    %2855 = vmatprep.mubr.f32.mxu0 0.0
    %2856 = vmatmul.mubr.f32.gmra.mrb[0].mxu0 %v2764
    %v2857 = vpop.f32.mrb[0].mxu0
    %v2858 = vadd.f32 %v2789, %v2857
    %v2859 = vpop.f32.mrb[0].mxu0
    %2860 = vmatprep.mubr.f32.mxu0 0.0
    %2861 = vmatmul.mubr.f32.gmra.mrb[0].mxu0 %v2765
    %v2862 = vpop.f32.mrb[0].mxu0
    %v2863 = vadd.f32 %v2789, %v2862
    %v2864 = vpop.f32.mrb[0].mxu0
    %2865 = vdwg.mxu0
    %v2866 = vadd.f32 %v2858, %v2612
    %v2867 = vadd.f32 %v2863, %v2613
    %s2868 = scalar_lea.vmem %s14, 1
    %v2869 = vld [vmem:[%s2868] sm:$0x1]
    %s2870 = scalar_lea.vmem %s15, 1
    %v2871 = vld [vmem:[%s2870] sm:$0x1]
    %v2872 = vsel %vm70, %v2866, 0.0
    %2873 = vadd.xlane.f32.xlu0 %v2872
    %v2874 = vpop.xlane.xlu0 %2873
    %v2875 = vsel %vm70, %v2867, 0.0
    %2876 = vadd.xlane.f32.xlu0 %v2875
    %v2877 = vpop.xlane.xlu0 %2876
    %v2878 = vmul.f32 %v2874, %v77
    %v2879 = vmul.f32 %v2877, %v77
    %v2880 = vsub.f32 %v2866, %v2878
    %v2881 = vsub.f32 %v2867, %v2879
    %v2882 = vmul.f32 %v2880, %v2880
    %v2883 = vmul.f32 %v2881, %v2881
    %v2884 = vsel %vm70, %v2882, 0.0
    %2885 = vadd.xlane.f32.xlu0 %v2884
    %v2886 = vpop.xlane.xlu0 %2885
    %v2887 = vsel %vm70, %v2883, 0.0
    %2888 = vadd.xlane.f32.xlu0 %v2887
    %v2889 = vpop.xlane.xlu0 %2888
    %v2890 = vmul.f32 %v2886, %v77
    %v2891 = vmul.f32 %v2889, %v77
    %v2892 = vadd.f32 %v2890, 1e-05
    %v2893 = vadd.f32 %v2891, 1e-05
    %v2894 = vrsqrt.pop %v2892
    %v2895 = vrsqrt.pop %v2893
    %v2896 = vmul.f32 %v2880, %v2894
    %v2897 = vmul.f32 %v2881, %v2895
    %v2899 = vlaneseq
    %v2900 = vshrl.u32 %v2899, 7
    %v2901 = vsub.s32 0, %v2900
    %v2902 = vrot.slane %v2869, %v2901
    %v2904 = vmul.f32 %v2896, %v2902
    %v2905 = vmul.f32 %v2897, %v2902
    %v2907 = vlaneseq
    %v2908 = vshrl.u32 %v2907, 7
    %v2909 = vsub.s32 0, %v2908
    %v2910 = vrot.slane %v2871, %v2909
    %v2912 = vadd.f32 %v2904, %v2910
    %v2913 = vadd.f32 %v2905, %v2910
    %v2915 = vrot.slane %v2913, 7
    %vm2917 = vcmask 1040384
    %v2918 = vsel %vm2917, %v2912, %v2915
    %v2919 = vld [vmem:[%s16] sm:$0xff]
    %v2920 = vld [vmem:[%s16 + $0x8] sm:$0xff]
    %v2921 = vld [vmem:[%s16 + $0x10] sm:$0xff]
    %v2922 = vld [vmem:[%s16 + $0x18] sm:$0xff]
    %v2923 = vld [vmem:[%s16 + $0x20] sm:$0xff]
    %v2924 = vld [vmem:[%s16 + $0x28] sm:$0xff]
    %v2925 = vld [vmem:[%s16 + $0x30] sm:$0xff]
    %v2926 = vld [vmem:[%s16 + $0x38] sm:$0xff]
    %v2927 = vld [vmem:[%s17] sm:$0x1]
    %v2929 = vlaneseq
    %v2930 = vshrl.u32 %v2929, 7
    %v2931 = vsub.s32 0, %v2930
    %v2932 = vrot.slane %v2927, %v2931
    %v2935 = vsel %vm70, %v2918, 0
    %2937 = vmatprep.subr.mxu0 0.0
    %2938 = vmatpush1.msra.mxu0 %v2919
    %2939 = vmatprep.subr.mxu0 0.0
    %2940 = vmatpush1.msra.mxu0 %v2920
    %2941 = vmatprep.subr.mxu0 0.0
    %2942 = vmatpush1.msra.mxu0 %v2921
    %2943 = vmatprep.subr.mxu0 0.0
    %2944 = vmatpush1.msra.mxu0 %v2922
    %2945 = vmatprep.subr.mxu0 0.0
    %2946 = vmatpush1.msra.mxu0 %v2923
    %2947 = vmatprep.subr.mxu0 0.0
    %2948 = vmatpush1.msra.mxu0 %v2924
    %2949 = vmatprep.subr.mxu0 0.0
    %2950 = vmatpush1.msra.mxu0 %v2925
    %2951 = vmatprep.subr.mxu0 0.0
    %2952 = vmatpush1.msra.mxu0 %v2926
    %2953 = vmatprep.subr.mxu0 0.0
    %2954 = vmatpush1.msra.mxu0 0.0
    %2955 = vmatprep.subr.mxu0 0.0
    %2956 = vmatpush1.msra.mxu0 0.0
    %2957 = vmatprep.subr.mxu0 0.0
    %2958 = vmatpush1.msra.mxu0 0.0
    %2959 = vmatprep.subr.mxu0 0.0
    %2960 = vmatpush1.msra.mxu0 0.0
    %2961 = vmatprep.subr.mxu0 0.0
    %2962 = vmatpush1.msra.mxu0 0.0
    %2963 = vmatprep.subr.mxu0 0.0
    %2964 = vmatpush1.msra.mxu0 0.0
    %2965 = vmatprep.subr.mxu0 0.0
    %2966 = vmatpush1.msra.mxu0 0.0
    %2967 = vmatprep.subr.mxu0 0.0
    %2968 = vmatpush1.msra.mxu0 0.0
    %2969 = vmatprep.subr.mxu0 0.0
    %2970 = vmatpush1.msra.mxu0 0.0
    %2971 = vmatprep.subr.mxu0 0.0
    %2972 = vmatpush1.msra.mxu0 0.0
    %2973 = vmatprep.subr.mxu0 0.0
    %2974 = vmatpush1.msra.mxu0 0.0
    %2975 = vmatprep.subr.mxu0 0.0
    %2976 = vmatpush1.msra.mxu0 0.0
    %2977 = vmatprep.subr.mxu0 0.0
    %2978 = vmatpush1.msra.mxu0 0.0
    %2979 = vmatprep.subr.mxu0 0.0
    %2980 = vmatpush1.msra.mxu0 0.0
    %2981 = vmatprep.subr.mxu0 0.0
    %2982 = vmatpush1.msra.mxu0 0.0
    %2983 = vmatprep.subr.mxu0 0.0
    %2984 = vmatpush1.msra.mxu0 0.0
    %2985 = vmatprep.subr.mxu0 0.0
    %2986 = vmatpush1.msra.mxu0 0.0
    %2987 = vmatprep.subr.mxu0 0.0
    %2988 = vmatpush1.msra.mxu0 0.0
    %2989 = vmatprep.subr.mxu0 0.0
    %2990 = vmatpush1.msra.mxu0 0.0
    %2991 = vmatprep.subr.mxu0 0.0
    %2992 = vmatpush1.msra.mxu0 0.0
    %2993 = vmatprep.subr.mxu0 0.0
    %2994 = vmatpush1.msra.mxu0 0.0
    %2995 = vmatprep.subr.mxu0 0.0
    %2996 = vmatpush1.msra.mxu0 0.0
    %2997 = vmatprep.subr.mxu0 0.0
    %2998 = vmatpush1.msra.mxu0 0.0
    %2999 = vmatprep.subr.mxu0 0.0
    %3000 = vmatpush1.msra.mxu0 0.0
    %3001 = vmatprep.mubr.f32.mxu0 0.0
    %3002 = vmatmul.mubr.f32.gmra.mrb[0].mxu0 %v2935
    %v3003 = vpop.f32.mrb[0].mxu0
    %v3004 = vadd.f32 %v2932, %v3003
    %v3005 = vpop.f32.mrb[0].mxu0
    %3006 = vdwg.mxu0
    %v3007 = vtanh.pop %v3004
    %v3008 = vld [vmem:[%s18] sm:$0xff]
    %v3009 = vld [vmem:[%s18 + $0x8] sm:$0xff]
    %v3010 = vld [vmem:[%s18 + $0x10] sm:$0xff]
    %v3011 = vld [vmem:[%s18 + $0x18] sm:$0xff]
    %v3012 = vld [vmem:[%s18 + $0x20] sm:$0xff]
    %v3013 = vld [vmem:[%s18 + $0x28] sm:$0xff]
    %v3014 = vld [vmem:[%s18 + $0x30] sm:$0xff]
    %v3015 = vld [vmem:[%s18 + $0x38] sm:$0xff]
    %v3016 = vld [vmem:[%s19] sm:$0x1]
    %v3018 = vlaneseq
    %v3019 = vshrl.u32 %v3018, 7
    %v3020 = vsub.s32 0, %v3019
    %v3021 = vrot.slane %v3016, %v3020
    %v3024 = vsel %vm70, %v3007, 0
    %3026 = vmatprep.subr.mxu0 0.0
    %3027 = vmatpush1.msra.mxu0 %v3008
    %3028 = vmatprep.subr.mxu0 0.0
    %3029 = vmatpush1.msra.mxu0 %v3009
    %3030 = vmatprep.subr.mxu0 0.0
    %3031 = vmatpush1.msra.mxu0 %v3010
    %3032 = vmatprep.subr.mxu0 0.0
    %3033 = vmatpush1.msra.mxu0 %v3011
    %3034 = vmatprep.subr.mxu0 0.0
    %3035 = vmatpush1.msra.mxu0 %v3012
    %3036 = vmatprep.subr.mxu0 0.0
    %3037 = vmatpush1.msra.mxu0 %v3013
    %3038 = vmatprep.subr.mxu0 0.0
    %3039 = vmatpush1.msra.mxu0 %v3014
    %3040 = vmatprep.subr.mxu0 0.0
    %3041 = vmatpush1.msra.mxu0 %v3015
    %3042 = vmatprep.subr.mxu0 0.0
    %3043 = vmatpush1.msra.mxu0 0.0
    %3044 = vmatprep.subr.mxu0 0.0
    %3045 = vmatpush1.msra.mxu0 0.0
    %3046 = vmatprep.subr.mxu0 0.0
    %3047 = vmatpush1.msra.mxu0 0.0
    %3048 = vmatprep.subr.mxu0 0.0
    %3049 = vmatpush1.msra.mxu0 0.0
    %3050 = vmatprep.subr.mxu0 0.0
    %3051 = vmatpush1.msra.mxu0 0.0
    %3052 = vmatprep.subr.mxu0 0.0
    %3053 = vmatpush1.msra.mxu0 0.0
    %3054 = vmatprep.subr.mxu0 0.0
    %3055 = vmatpush1.msra.mxu0 0.0
    %3056 = vmatprep.subr.mxu0 0.0
    %3057 = vmatpush1.msra.mxu0 0.0
    %3058 = vmatprep.subr.mxu0 0.0
    %3059 = vmatpush1.msra.mxu0 0.0
    %3060 = vmatprep.subr.mxu0 0.0
    %3061 = vmatpush1.msra.mxu0 0.0
    %3062 = vmatprep.subr.mxu0 0.0
    %3063 = vmatpush1.msra.mxu0 0.0
    %3064 = vmatprep.subr.mxu0 0.0
    %3065 = vmatpush1.msra.mxu0 0.0
    %3066 = vmatprep.subr.mxu0 0.0
    %3067 = vmatpush1.msra.mxu0 0.0
    %3068 = vmatprep.subr.mxu0 0.0
    %3069 = vmatpush1.msra.mxu0 0.0
    %3070 = vmatprep.subr.mxu0 0.0
    %3071 = vmatpush1.msra.mxu0 0.0
    %3072 = vmatprep.subr.mxu0 0.0
    %3073 = vmatpush1.msra.mxu0 0.0
    %3074 = vmatprep.subr.mxu0 0.0
    %3075 = vmatpush1.msra.mxu0 0.0
    %3076 = vmatprep.subr.mxu0 0.0
    %3077 = vmatpush1.msra.mxu0 0.0
    %3078 = vmatprep.subr.mxu0 0.0
    %3079 = vmatpush1.msra.mxu0 0.0
    %3080 = vmatprep.subr.mxu0 0.0
    %3081 = vmatpush1.msra.mxu0 0.0
    %3082 = vmatprep.subr.mxu0 0.0
    %3083 = vmatpush1.msra.mxu0 0.0
    %3084 = vmatprep.subr.mxu0 0.0
    %3085 = vmatpush1.msra.mxu0 0.0
    %3086 = vmatprep.subr.mxu0 0.0
    %3087 = vmatpush1.msra.mxu0 0.0
    %3088 = vmatprep.subr.mxu0 0.0
    %3089 = vmatpush1.msra.mxu0 0.0
    %3090 = vmatprep.mubr.f32.mxu0 0.0
    %3091 = vmatmul.mubr.f32.gmra.mrb[0].mxu0 %v3024
    %v3092 = vpop.f32.mrb[0].mxu0
    %v3093 = vadd.f32 %v3021, %v3092
    %v3094 = vpop.f32.mrb[0].mxu0
    %3095 = vdwg.mxu0
    %vm3096 = vcmask 17408
    %3097 = vst.msk [vmem:[#allocation3] sm:$0x3] %vm3096, %v3093
    // Predicated region
    $region82: #{_lambda_.1} parent=1 // pred_check
      _
    $region83: #{_lambda_.1} parent=1 // pred_check_branch
      %3099 = sbr.rel (0) target = $region85
    $region84: #{_lambda_.1} parent=1 // pred_region
      %s3101 = ssub.s32 32, 32
      %3102 = vsyncadd [#allocation4], %s3101
      %s3104 = sshll.u32 [#allocation3], 4
      %s3105 = int_to_ptr.vmem [resolvable:$true] %s3104
      %3107 = dma.vmem_to_hbm [thread:$0]  %s3105, 32, %s20, [#allocation4]
    $region85: #{_lambda_.1} parent=1 // pred_fallthru
      _
    // Predicated region
    $region86: #{_lambda_.1} parent=1 // pred_check
      _
    $region87: #{_lambda_.1} parent=1 // pred_check_branch
      %3109 = sbr.rel (0) target = $region89
    $region88: #{_lambda_.1} parent=1 // pred_region
      %3110 = dma.done [#allocation4], 32
    $region89: #{_lambda_.1} parent=1 // pred_fallthru
      _
    %3111 = vsyncpa [#allocation4], 1

</llo_original>
